<compile_context>
chip_gen: v7x
topology: tpu7x:2x2x1
jax: 0.10.0
libtpu: 0.0.40
codegen_flags: <defaults>
</compile_context>

<pallas_src>
import math
import functools

import numpy as np
import jax
import jax.numpy as jnp
from jax.experimental import pallas as pl
from jax.experimental.pallas import tpu as pltpu


# ----------------------------------------------------------------------------
# Host-side graph construction (faithful numpy port of _construct_graph).
# ----------------------------------------------------------------------------
def construct_graph_np(pos, cell, natoms, radius_rate):
    pos = np.asarray(pos, np.float64)
    cell = np.asarray(cell, np.float64)
    natoms = np.asarray(natoms, np.int64)
    B = natoms.shape[0]

    na_sqr = natoms ** 2
    index_offset = np.cumsum(natoms) - natoms
    index_offset_expand = np.repeat(index_offset, na_sqr)
    na_expand = np.repeat(natoms, na_sqr)
    num_atom_pairs = int(na_sqr.sum())
    index_sqr_offset = np.cumsum(na_sqr) - na_sqr
    index_sqr_offset = np.repeat(index_sqr_offset, na_sqr)
    atom_count_sqr = np.arange(num_atom_pairs) - index_sqr_offset
    index1 = atom_count_sqr // na_expand + index_offset_expand
    index2 = atom_count_sqr % na_expand + index_offset_expand
    pos1 = pos[index1]
    pos2 = pos[index2]

    cross_a2a3 = np.cross(cell[:, 1], cell[:, 2])
    cell_vol = np.sum(cell[:, 0] * cross_a2a3, axis=-1, keepdims=True)
    radius = radius_rate * (np.abs(cell_vol.reshape(-1)) / natoms) ** (1.0 / 3.0)
    rep_a1 = np.ceil(radius * np.linalg.norm(cross_a2a3 / cell_vol, axis=-1))
    cross_a3a1 = np.cross(cell[:, 2], cell[:, 0])
    rep_a2 = np.ceil(radius * np.linalg.norm(cross_a3a1 / cell_vol, axis=-1))
    cross_a1a2 = np.cross(cell[:, 0], cell[:, 1])
    rep_a3 = np.ceil(radius * np.linalg.norm(cross_a1a2 / cell_vol, axis=-1))

    num_cells = []
    pbc_offsets = []
    for i in range(B):
        r1 = np.arange(-rep_a1[i], rep_a1[i] + 1)
        r2 = np.arange(-rep_a2[i], rep_a2[i] + 1)
        r3 = np.arange(-rep_a3[i], rep_a3[i] + 1)
        uc = np.stack(np.meshgrid(r1, r2, r3, indexing="ij"), axis=-1).reshape(-1, 3)
        num_cells.append(len(uc))
        pbc_offsets.append(np.tile(uc @ cell[i], (int(na_sqr[i]), 1)))
    num_cells = np.asarray(num_cells)
    ncells_per_pair = np.repeat(num_cells, na_sqr)
    pbc_offsets = np.concatenate(pbc_offsets, axis=0)

    pos1 = np.repeat(pos1, ncells_per_pair, axis=0)
    pos2 = np.repeat(pos2, ncells_per_pair, axis=0) + pbc_offsets
    index1 = np.repeat(index1, ncells_per_pair)
    index2 = np.repeat(index2, ncells_per_pair)

    dist_sqr = np.sum((pos1 - pos2) ** 2, axis=1)
    batch = np.repeat(np.arange(B), natoms)
    radius_edge = radius[batch[index1]]
    mask = (dist_sqr <= radius_edge * radius_edge) & (dist_sqr > 1e-4)

    src = index2[mask]          # edge_index[0]
    dst = index1[mask]          # edge_index[1]
    distance = np.sqrt(dist_sqr[mask])
    radius_edge = radius_edge[mask]
    return src, dst, distance, radius_edge, batch


# ----------------------------------------------------------------------------
# Pallas kernels.
# ----------------------------------------------------------------------------
def _softplus(x):
    # numerically-stable softplus (matches F.softplus)
    return jnp.maximum(x, 0.0) + jnp.log(1.0 + jnp.exp(-jnp.abs(x)))


def _tanh_embed(feat0):
    """tanh(embedding) on the gathered/padded node features (tiny, gridless)."""
    def kernel(x_ref, o_ref):
        o_ref[...] = jnp.tanh(x_ref[...])

    return pl.pallas_call(
        kernel,
        out_shape=jax.ShapeDtypeStruct(feat0.shape, jnp.float32),
        in_specs=[pl.BlockSpec(memory_space=pltpu.MemorySpace.VMEM)],
        out_specs=pl.BlockSpec(memory_space=pltpu.MemorySpace.VMEM),
    )(feat0)


def _edge_prep(dist, irp, goff, *, gauss_coeff, te):
    """edge_weight = cos(d*pi/r)+1 and edge_attr = GaussianSmearing(d).

    Computed once (layer-independent), edge-tiled 1-D grid.
    Padded edges produce nonzero values but are killed later by the zero
    one-hot gather rows / scatter columns.
    """
    E_pad = dist.shape[0]
    Fp = goff.shape[1]
    n_edge_tiles = E_pad // te

    def kernel(dist_ref, irp_ref, goff_ref, ew_ref, ea_ref):
        d = dist_ref[...]                                  # (te, 1)
        ew_ref[...] = jnp.cos(d * irp_ref[...]) + 1.0
        dd = d - goff_ref[...]                             # (te, Fp)
        ea_ref[...] = jnp.exp(gauss_coeff * dd * dd)

    return pl.pallas_call(
        kernel,
        out_shape=(jax.ShapeDtypeStruct((E_pad, 1), jnp.float32),
                   jax.ShapeDtypeStruct((E_pad, Fp), jnp.float32)),
        grid=(n_edge_tiles,),
        in_specs=[pl.BlockSpec((te, 1), lambda k: (k, 0)),
                  pl.BlockSpec((te, 1), lambda k: (k, 0)),
                  pl.BlockSpec((1, Fp), lambda k: (0, 0))],
        out_specs=[pl.BlockSpec((te, 1), lambda k: (k, 0)),
                   pl.BlockSpec((te, Fp), lambda k: (k, 0))],
        compiler_params=pltpu.CompilerParams(
            dimension_semantics=("parallel",)),
    )(dist, irp, goff)


def _messages(feat, edge_w, edge_attr, gsrc_bf, we, be, *, te, vmem_limit_bytes):
    """Per-layer messages: msg = feat[src] * softplus(edge_attr @ We + be) * ew.

    1-D edge-tiled grid; the full node-feature block stays VMEM-resident.
    Output is bf16 (feeds the scatter matmul of _aggregate).
    """
    Np, Cp = feat.shape
    E_pad = edge_w.shape[0]
    Fp = edge_attr.shape[1]
    n_edge_tiles = E_pad // te

    def kernel(feat_ref, ew_ref, ea_ref, gsrc_ref, we_ref, be_ref, msg_ref):
        filt = _softplus(
            jnp.dot(ea_ref[...], we_ref[...], preferred_element_type=jnp.float32)
            + be_ref[...])                                          # (te, Cp)
        feat_bf = feat_ref[...].astype(jnp.bfloat16)
        src_feat = jnp.dot(gsrc_ref[...], feat_bf,
                           preferred_element_type=jnp.float32)      # (te, Cp)
        msg_ref[...] = (src_feat * filt * ew_ref[...]).astype(jnp.bfloat16)

    flops = int(n_edge_tiles * (2 * te * Fp * Cp + 2 * te * Np * Cp + 3 * te * Cp))
    transcend = int(E_pad * Cp)
    bytes_acc = int(feat.size * 4 + edge_w.size * 4 + edge_attr.size * 4
                    + gsrc_bf.size * 2 + we.size * 4 + be.size * 4
                    + E_pad * Cp * 2)

    return pl.pallas_call(
        kernel,
        out_shape=jax.ShapeDtypeStruct((E_pad, Cp), jnp.bfloat16),
        grid=(n_edge_tiles,),
        in_specs=[
            pl.BlockSpec((Np, Cp), lambda k: (0, 0)),   # feat (full, resident)
            pl.BlockSpec((te, 1), lambda k: (k, 0)),    # edge weight
            pl.BlockSpec((te, Fp), lambda k: (k, 0)),   # edge attr (smearing)
            pl.BlockSpec((te, Np), lambda k: (k, 0)),   # gather one-hot (bf16)
            pl.BlockSpec((Fp, Cp), lambda k: (0, 0)),   # We
            pl.BlockSpec((1, Cp), lambda k: (0, 0)),    # be
        ],
        out_specs=pl.BlockSpec((te, Cp), lambda k: (k, 0)),
        compiler_params=pltpu.CompilerParams(
            dimension_semantics=("parallel",),
            vmem_limit_bytes=vmem_limit_bytes),
        cost_estimate=pl.CostEstimate(flops=flops, transcendentals=transcend,
                                      bytes_accessed=bytes_acc),
    )(feat, edge_w, edge_attr, gsrc_bf, we, be)


def _aggregate(feat, msg_bf, sdst_bf, wn, bn, wm, bm, *, tn, te, vmem_limit_bytes):
    """Scatter-sum of messages + node/message linears + softplus.

    grid = (node tiles [parallel], edge tiles [arbitrary/reduction]).
    The per-node-tile aggregate lives in a VMEM scratch accumulator.
    """
    Np, Cp = feat.shape
    E_pad = msg_bf.shape[0]
    n_node_tiles = Np // tn
    n_edge_tiles = E_pad // te

    def kernel(feat_ref, msg_ref, sdst_ref, wn_ref, bn_ref, wm_ref, bm_ref,
               out_ref, agg_ref):
        k = pl.program_id(1)

        @pl.when(k == 0)
        def _():
            agg_ref[...] = jnp.zeros_like(agg_ref)

        agg_ref[...] += jnp.dot(sdst_ref[...], msg_ref[...],
                                preferred_element_type=jnp.float32)  # (tn, Cp)

        @pl.when(k == pl.num_programs(1) - 1)
        def _():
            pre = (jnp.dot(feat_ref[...], wn_ref[...],
                           preferred_element_type=jnp.float32)
                   + bn_ref[...]
                   + jnp.dot(agg_ref[...], wm_ref[...],
                             preferred_element_type=jnp.float32)
                   + bm_ref[...])
            out_ref[...] = _softplus(pre)

    flops = int(n_node_tiles * n_edge_tiles * 2 * tn * te * Cp
                + n_node_tiles * 2 * 2 * tn * Cp * Cp)
    transcend = int(Np * Cp)
    bytes_acc = int(feat.size * 4 + n_node_tiles * msg_bf.size * 2
                    + sdst_bf.size * 2
                    + (wn.size + wm.size + bn.size + bm.size) * 4
                    + Np * Cp * 4)

    return pl.pallas_call(
        kernel,
        out_shape=jax.ShapeDtypeStruct((Np, Cp), jnp.float32),
        grid=(n_node_tiles, n_edge_tiles),
        in_specs=[
            pl.BlockSpec((tn, Cp), lambda i, k: (i, 0)),   # feat (node tile)
            pl.BlockSpec((te, Cp), lambda i, k: (k, 0)),   # messages (bf16)
            pl.BlockSpec((tn, te), lambda i, k: (i, k)),   # scatter one-hot (bf16)
            pl.BlockSpec((Cp, Cp), lambda i, k: (0, 0)),   # Wn
            pl.BlockSpec((1, Cp), lambda i, k: (0, 0)),    # bn
            pl.BlockSpec((Cp, Cp), lambda i, k: (0, 0)),   # Wm
            pl.BlockSpec((1, Cp), lambda i, k: (0, 0)),    # bm
        ],
        out_specs=pl.BlockSpec((tn, Cp), lambda i, k: (i, 0)),
        scratch_shapes=[pltpu.VMEM((tn, Cp), jnp.float32)],
        compiler_params=pltpu.CompilerParams(
            dimension_semantics=("parallel", "arbitrary"),
            vmem_limit_bytes=vmem_limit_bytes),
        cost_estimate=pl.CostEstimate(flops=flops, transcendentals=transcend,
                                      bytes_accessed=bytes_acc),
    )(feat, msg_bf, sdst_bf, wn, bn, wm, bm)


def _readout(feat, pool, wfc, bfc, wfin, bfin):
    """global mean pool + spectral-norm FC + softplus + final linear (tiny)."""
    B = pool.shape[0]

    def kernel(feat_ref, pool_ref, wfc_ref, bfc_ref, wfin_ref, bfin_ref, out_ref):
        pooled = jnp.dot(pool_ref[...], feat_ref[...],
                         preferred_element_type=jnp.float32)
        h = _softplus(jnp.dot(pooled, wfc_ref[...],
                              preferred_element_type=jnp.float32) + bfc_ref[...])
        out_ref[...] = (jnp.dot(h, wfin_ref[...],
                                preferred_element_type=jnp.float32) + bfin_ref[...])

    return pl.pallas_call(
        kernel,
        out_shape=jax.ShapeDtypeStruct((B, 1), jnp.float32),
        in_specs=[pl.BlockSpec(memory_space=pltpu.MemorySpace.VMEM)] * 6,
        out_specs=pl.BlockSpec(memory_space=pltpu.MemorySpace.VMEM),
    )(feat, pool, wfc, bfc, wfin, bfin)


def continuous_energy_forward(feat0, dist, irp, goff, gsrc_bf, sdst_bf, pool,
                              we, be, wn, bn, wm, bm, wfc, bfc, wfin, bfin,
                              *, gauss_coeff, tn, te, vmem_limit_bytes):
    feat = _tanh_embed(feat0)
    edge_w, edge_attr = _edge_prep(dist, irp, goff,
                                   gauss_coeff=gauss_coeff, te=te)
    num_layers = we.shape[0]
    for l in range(num_layers):
        msg = _messages(feat, edge_w, edge_attr, gsrc_bf, we[l], be[l],
                        te=te, vmem_limit_bytes=vmem_limit_bytes)
        feat = _aggregate(feat, msg, sdst_bf, wn[l], bn[l], wm[l], bm[l],
                          tn=tn, te=te, vmem_limit_bytes=vmem_limit_bytes)
    return _readout(feat, pool, wfc, bfc, wfin, bfin)


# ----------------------------------------------------------------------------
# Main: deterministic inputs / parameters, run, sanity-check vs numpy ref.
# ----------------------------------------------------------------------------
if __name__ == "__main__":
    # hyperparameters (module __init__ args relevant to forward)
    num_atomic_numbers = 16
    atom_embedding_size = 32     # C
    edge_feat_size = 32          # F
    num_graph_conv_layers = 2
    fc_feat_size = 32            # H
    num_fc_layers = 2            # -> 1 spectral-norm FC + fc_final
    gaussian_stop = 6.0
    basis_width_scalar = 1.0
    radius_rate = 1.0

    LANE = 128
    Cp = Fp = Hp = LANE          # lane-padded feature widths
    TN = 16                      # node tile (bf16-friendly sublane multiple)
    TE = 128                     # edge tile; sweep to 256-1024 at real sizes

    B = 2
    natoms = np.array([6, 14], dtype=np.int64)
    N = int(natoms.sum())

    key = jax.random.PRNGKey(0)
    keys = jax.random.split(key, 16)

    cell = np.tile(4.0 * np.eye(3, dtype=np.float64), (B, 1, 1))
    cell += 0.05 * np.asarray(jax.random.normal(keys[0], (B, 3, 3)), np.float64)
    pos = 4.0 * np.asarray(jax.random.uniform(keys[1], (N, 3)), np.float64)
    atomic_numbers = np.asarray(
        jax.random.randint(keys[2], (N,), 1, num_atomic_numbers + 1), np.int32)

    # host-side graph construction (glue; data-dependent shapes)
    src, dst, distance, radius_edge, batch = construct_graph_np(
        pos, cell, natoms, radius_rate)
    E_real = int(distance.shape[0])
    E_pad = max(2 * TE, int(math.ceil(max(E_real, 1) / TE)) * TE)
    Np = max(TN, int(math.ceil(N / TN)) * TN)

    # padded edge arrays (pad radius=1 only guards cos(); pad edges are killed
    # by the zero one-hot rows/cols, so no explicit edge mask is needed)
    dist_p = np.zeros((E_pad, 1), np.float32)
    irp_p = np.full((E_pad, 1), math.pi, np.float32)
    dist_p[:E_real, 0] = distance
    irp_p[:E_real, 0] = math.pi / radius_edge

    gsrc = np.zeros((E_pad, Np), np.float32)
    sdst = np.zeros((Np, E_pad), np.float32)
    gsrc[np.arange(E_real), src] = 1.0
    sdst[dst, np.arange(E_real)] = 1.0
    gsrc_bf = jnp.asarray(gsrc, jnp.bfloat16)   # 0/1 exact in bf16
    sdst_bf = jnp.asarray(sdst, jnp.bfloat16)

    pool = np.zeros((B, Np), np.float32)
    for b in range(B):
        pool[b, np.where(batch == b)[0]] = 1.0 / float(natoms[b])

    # GaussianSmearing constants (lane-padded with zeros; padded We rows are 0)
    goff32 = np.linspace(0.0, gaussian_stop, edge_feat_size).astype(np.float32)
    gauss_coeff = float(-0.5 / (basis_width_scalar * (goff32[1] - goff32[0])) ** 2)
    goff_p = np.zeros((1, Fp), np.float32)
    goff_p[0, :edge_feat_size] = goff32

    # deterministic parameter init (real 32-wide blocks, zero-padded to 128)
    def init(k, shape, scale=0.1):
        return scale * np.asarray(jax.random.normal(k, shape, dtype=jnp.float32))

    def pad_last2(x, rows, cols):
        x = np.asarray(x, np.float32)
        out = np.zeros(x.shape[:-2] + (rows, cols), np.float32)
        out[..., :x.shape[-2], :x.shape[-1]] = x
        return out

    C, F, H, L = atom_embedding_size, edge_feat_size, fc_feat_size, num_graph_conv_layers
    emb32 = init(keys[3], (num_atomic_numbers, C), 1.0)
    we32 = init(keys[4], (L, F, C)); be32 = init(keys[5], (L, 1, C))
    wn32 = init(keys[6], (L, C, C)); bn32 = init(keys[7], (L, 1, C))
    wm32 = init(keys[8], (L, C, C)); bm32 = init(keys[9], (L, 1, C))
    wfc32 = init(keys[10], (C, H))
    sigma = float(np.linalg.svd(wfc32, compute_uv=False)[0])   # spectral_norm (host glue)
    wfc32 = wfc32 / sigma
    bfc32 = init(keys[11], (1, H))
    wfin32 = init(keys[12], (H, 1))
    bfin32 = init(keys[13], (1, 1))

    emb_p = pad_last2(emb32, num_atomic_numbers, Cp)
    we_p = pad_last2(we32, Fp, Cp);  be_p = pad_last2(be32, 1, Cp)
    wn_p = pad_last2(wn32, Cp, Cp);  bn_p = pad_last2(bn32, 1, Cp)
    wm_p = pad_last2(wm32, Cp, Cp);  bm_p = pad_last2(bm32, 1, Cp)
    wfc_p = pad_last2(wfc32, Cp, Hp); bfc_p = pad_last2(bfc32, 1, Hp)
    wfin_p = pad_last2(wfin32, Hp, 1)
    bfin_p = np.asarray(bfin32, np.float32)

    # embedding row gather in the wrapper, tanh in-kernel
    feat0 = np.zeros((Np, Cp), np.float32)
    feat0[:N] = emb_p[atomic_numbers - 1]

    # TODO(synk): re-derive vmem_limit_bytes per chip (v7x has only 64 MiB VMEM)
    vmem_limit_bytes = 32 * 1024 * 1024

    fwd = jax.jit(functools.partial(
        continuous_energy_forward,
        gauss_coeff=gauss_coeff, tn=TN, te=TE,
        vmem_limit_bytes=vmem_limit_bytes))

    out = fwd(jnp.asarray(feat0), jnp.asarray(dist_p), jnp.asarray(irp_p),
              jnp.asarray(goff_p), gsrc_bf, sdst_bf, jnp.asarray(pool),
              jnp.asarray(we_p), jnp.asarray(be_p), jnp.asarray(wn_p),
              jnp.asarray(bn_p), jnp.asarray(wm_p), jnp.asarray(bm_p),
              jnp.asarray(wfc_p), jnp.asarray(bfc_p), jnp.asarray(wfin_p),
              jnp.asarray(bfin_p))
    out = jax.block_until_ready(out)
    out_np = np.asarray(out)

    # pure-numpy reference of the same forward pass (unpadded, f32/f64)
    def softplus_np(x):
        return np.maximum(x, 0.0) + np.log1p(np.exp(-np.abs(x)))

    featr = np.tanh(emb32[atomic_numbers - 1])
    ewr = (np.cos(distance * math.pi / radius_edge) + 1.0)[:, None]
    ear = np.exp(gauss_coeff * (distance[:, None] - goff32[None, :]) ** 2)
    for l in range(L):
        filtr = softplus_np(ear @ we32[l] + be32[l])
        msgr = featr[src] * filtr * ewr
        aggr = np.zeros((N, C), np.float64)
        np.add.at(aggr, dst, msgr)
        featr = softplus_np(featr @ wn32[l] + bn32[l] + aggr @ wm32[l] + bm32[l])
    pooledr = np.stack([featr[batch == b].mean(axis=0) for b in range(B)])
    hr = softplus_np(pooledr @ wfc32 + bfc32)
    refr = hr @ wfin32 + bfin32

    assert out_np.shape == (B, 1) and np.all(np.isfinite(out_np))
    np.testing.assert_allclose(out_np, refr, rtol=1e-1, atol=1e-1)
    print("KERNEL_OK")
</pallas_src>

<mosaic_0001>
module attributes {stable_mosaic.version = 11 : i64} {
  func.func @kernel(%arg0: i32, %arg1: memref<128x1xf32, #tpu.memory_space<vmem>>, %arg2: memref<128x1xf32, #tpu.memory_space<vmem>>, %arg3: memref<1x128xf32, #tpu.memory_space<vmem>>, %arg4: memref<128x1xf32, #tpu.memory_space<vmem>>, %arg5: memref<128x128xf32, #tpu.memory_space<vmem>>) attributes {dimension_semantics = [#tpu.dimension_semantics<parallel>], iteration_bounds = array<i64: 2>, scalar_prefetch = 0 : i64, scratch_operands = 0 : i64, tpu.core_type = #tpu.core_type<tc>, window_params = [{transform_indices = @transform_0, window_bounds = array<i64: 128, 1>}, {transform_indices = @transform_1, window_bounds = array<i64: 128, 1>}, {pipeline_mode = #tpu.pipeline_mode<synchronous>, transform_indices = @transform_2, window_bounds = array<i64: 1, 128>}, {transform_indices = @transform_3, window_bounds = array<i64: 128, 1>}, {transform_indices = @transform_4, window_bounds = array<i64: 128, 128>}]} {
    %c0 = arith.constant 0 : index
    %c0_0 = arith.constant 0 : index
    %0 = vector.load %arg1[%c0, %c0_0] : memref<128x1xf32, #tpu.memory_space<vmem>>, vector<128x1xf32>
    %c0_1 = arith.constant 0 : index
    %c0_2 = arith.constant 0 : index
    %1 = vector.load %arg2[%c0_1, %c0_2] : memref<128x1xf32, #tpu.memory_space<vmem>>, vector<128x1xf32>
    %2 = arith.mulf %0, %1 : vector<128x1xf32>
    %3 = math.cos %2 : vector<128x1xf32>
    %cst = arith.constant 1.000000e+00 : f32
    %4 = vector.broadcast %cst : f32 to vector<128x1xf32>
    %5 = arith.addf %3, %4 : vector<128x1xf32>
    %c0_3 = arith.constant 0 : index
    %c0_4 = arith.constant 0 : index
    %6 = vector.load %arg4[%c0_3, %c0_4] : memref<128x1xf32, #tpu.memory_space<vmem>>, vector<128x1xf32>
    tpu.vector_store %arg4[%c0_3, %c0_4], %5 {strides = array<i32>} : memref<128x1xf32, #tpu.memory_space<vmem>>, vector<128x1xf32>,
    %c0_5 = arith.constant 0 : index
    %c0_6 = arith.constant 0 : index
    %7 = vector.load %arg3[%c0_5, %c0_6] : memref<1x128xf32, #tpu.memory_space<vmem>>, vector<1x128xf32>
    %8 = vector.broadcast %0 : vector<128x1xf32> to vector<128x128xf32>
    %9 = vector.broadcast %7 : vector<1x128xf32> to vector<128x128xf32>
    %10 = arith.subf %8, %9 : vector<128x128xf32>
    %cst_7 = arith.constant -13.3472233 : f32
    %11 = vector.broadcast %cst_7 : f32 to vector<128x128xf32>
    %12 = arith.mulf %11, %10 : vector<128x128xf32>
    %13 = arith.mulf %12, %10 : vector<128x128xf32>
    %14 = math.exp %13 : vector<128x128xf32>
    %c0_8 = arith.constant 0 : index
    %c0_9 = arith.constant 0 : index
    %15 = vector.load %arg5[%c0_8, %c0_9] : memref<128x128xf32, #tpu.memory_space<vmem>>, vector<128x128xf32>
    tpu.vector_store %arg5[%c0_8, %c0_9], %14 {strides = array<i32>} : memref<128x128xf32, #tpu.memory_space<vmem>>, vector<128x128xf32>,
    return
  }
  func.func @transform_0(%arg0: i32) -> (i32, i32) {
    %c0_i32 = arith.constant 0 : i32
    %c0_i32_0 = arith.constant 0 : i32
    return %arg0, %c0_i32 : i32, i32
  }
  func.func @transform_1(%arg0: i32) -> (i32, i32) {
    %c0_i32 = arith.constant 0 : i32
    %c0_i32_0 = arith.constant 0 : i32
    return %arg0, %c0_i32 : i32, i32
  }
  func.func @transform_2(%arg0: i32) -> (i32, i32) {
    %c0_i32 = arith.constant 0 : i32
    %c0_i32_0 = arith.constant 0 : i32
    %c0_i32_1 = arith.constant 0 : i32
    return %c0_i32, %c0_i32_0 : i32, i32
  }
  func.func @transform_3(%arg0: i32) -> (i32, i32) {
    %c0_i32 = arith.constant 0 : i32
    %c0_i32_0 = arith.constant 0 : i32
    return %arg0, %c0_i32 : i32, i32
  }
  func.func @transform_4(%arg0: i32) -> (i32, i32) {
    %c0_i32 = arith.constant 0 : i32
    %c0_i32_0 = arith.constant 0 : i32
    return %arg0, %c0_i32 : i32, i32
  }
}

module attributes {stable_mosaic.version = 11 : i64} {
  func.func @kernel(%arg0: memref<32x128xf32, #tpu.memory_space<vmem>>, %arg1: memref<32x128xf32, #tpu.memory_space<vmem>>) attributes {dimension_semantics = [], scalar_prefetch = 0 : i64, scratch_operands = 0 : i64, tpu.core_type = #tpu.core_type<tc>} {
    %c0 = arith.constant 0 : index
    %c0_0 = arith.constant 0 : index
    %0 = vector.load %arg0[%c0, %c0_0] : memref<32x128xf32, #tpu.memory_space<vmem>>, vector<32x128xf32>
    %1 = math.tanh %0 : vector<32x128xf32>
    %c0_1 = arith.constant 0 : index
    %c0_2 = arith.constant 0 : index
    %2 = vector.load %arg1[%c0_1, %c0_2] : memref<32x128xf32, #tpu.memory_space<vmem>>, vector<32x128xf32>
    tpu.vector_store %arg1[%c0_1, %c0_2], %1 {strides = array<i32>} : memref<32x128xf32, #tpu.memory_space<vmem>>, vector<32x128xf32>,
    return
  }
}

module attributes {stable_mosaic.version = 11 : i64} {
  func.func @kernel(%arg0: i32, %arg1: memref<32x128xf32, #tpu.memory_space<vmem>>, %arg2: memref<128x1xf32, #tpu.memory_space<vmem>>, %arg3: memref<128x128xf32, #tpu.memory_space<vmem>>, %arg4: memref<128x32xbf16, #tpu.memory_space<vmem>>, %arg5: memref<128x128xf32, #tpu.memory_space<vmem>>, %arg6: memref<1x128xf32, #tpu.memory_space<vmem>>, %arg7: memref<128x128xbf16, #tpu.memory_space<vmem>>) attributes {dimension_semantics = [#tpu.dimension_semantics<parallel>], iteration_bounds = array<i64: 2>, scalar_prefetch = 0 : i64, scratch_operands = 0 : i64, tpu.core_type = #tpu.core_type<tc>, window_params = [{pipeline_mode = #tpu.pipeline_mode<synchronous>, transform_indices = @transform_0, window_bounds = array<i64: 32, 128>}, {transform_indices = @transform_1, window_bounds = array<i64: 128, 1>}, {transform_indices = @transform_2, window_bounds = array<i64: 128, 128>}, {transform_indices = @transform_3, window_bounds = array<i64: 128, 32>}, {pipeline_mode = #tpu.pipeline_mode<synchronous>, transform_indices = @transform_4, window_bounds = array<i64: 128, 128>}, {pipeline_mode = #tpu.pipeline_mode<synchronous>, transform_indices = @transform_5, window_bounds = array<i64: 1, 128>}, {transform_indices = @transform_6, window_bounds = array<i64: 128, 128>}]} {
    %c0 = arith.constant 0 : index
    %c0_0 = arith.constant 0 : index
    %0 = vector.load %arg3[%c0, %c0_0] : memref<128x128xf32, #tpu.memory_space<vmem>>, vector<128x128xf32>
    %c0_1 = arith.constant 0 : index
    %c0_2 = arith.constant 0 : index
    %1 = vector.load %arg5[%c0_1, %c0_2] : memref<128x128xf32, #tpu.memory_space<vmem>>, vector<128x128xf32>
    %cst = arith.constant dense<0.000000e+00> : vector<128x128xf32>
    %2 = tpu.matmul %0, %1, %cst {dimension_numbers = #tpu.dot_dimension_numbers<[1], [0], [0], [1], [0, 0, 1, 1], [], []>} : vector<128x128xf32>, vector<128x128xf32>, vector<128x128xf32> -> vector<128x128xf32>
    %c0_3 = arith.constant 0 : index
    %c0_4 = arith.constant 0 : index
    %3 = vector.load %arg6[%c0_3, %c0_4] : memref<1x128xf32, #tpu.memory_space<vmem>>, vector<1x128xf32>
    %4 = vector.broadcast %3 : vector<1x128xf32> to vector<128x128xf32>
    %5 = arith.addf %2, %4 : vector<128x128xf32>
    %cst_5 = arith.constant 0.000000e+00 : f32
    %6 = vector.broadcast %cst_5 : f32 to vector<128x128xf32>
    %7 = arith.maximumf %5, %6 : vector<128x128xf32>
    %8 = math.absf %5 : vector<128x128xf32>
    %cst_6 = arith.constant 0.000000e+00 : f32
    %9 = vector.broadcast %cst_6 : f32 to vector<128x128xf32>
    %10 = arith.subf %9, %8 : vector<128x128xf32>
    %11 = math.exp %10 : vector<128x128xf32>
    %cst_7 = arith.constant 1.000000e+00 : f32
    %12 = vector.broadcast %cst_7 : f32 to vector<128x128xf32>
    %13 = arith.addf %12, %11 : vector<128x128xf32>
    %14 = math.log %13 : vector<128x128xf32>
    %15 = arith.addf %7, %14 : vector<128x128xf32>
    %c0_8 = arith.constant 0 : index
    %c0_9 = arith.constant 0 : index
    %16 = vector.load %arg1[%c0_8, %c0_9] : memref<32x128xf32, #tpu.memory_space<vmem>>, vector<32x128xf32>
    %17 = arith.truncf %16 : vector<32x128xf32> to vector<32x128xbf16>
    %c0_10 = arith.constant 0 : index
    %c0_11 = arith.constant 0 : index
    %18 = vector.load %arg4[%c0_10, %c0_11] : memref<128x32xbf16, #tpu.memory_space<vmem>>, vector<128x32xbf16>
    %cst_12 = arith.constant dense<0.000000e+00> : vector<128x128xf32>
    %19 = tpu.matmul %18, %17, %cst_12 {dimension_numbers = #tpu.dot_dimension_numbers<[1], [0], [0], [1], [0, 0, 1, 1], [], []>} : vector<128x32xbf16>, vector<32x128xbf16>, vector<128x128xf32> -> vector<128x128xf32>
    %20 = arith.mulf %19, %15 : vector<128x128xf32>
    %c0_13 = arith.constant 0 : index
    %c0_14 = arith.constant 0 : index
    %21 = vector.load %arg2[%c0_13, %c0_14] : memref<128x1xf32, #tpu.memory_space<vmem>>, vector<128x1xf32>
    %22 = vector.broadcast %21 : vector<128x1xf32> to vector<128x128xf32>
    %23 = arith.mulf %20, %22 : vector<128x128xf32>
    %24 = arith.truncf %23 : vector<128x128xf32> to vector<128x128xbf16>
    %c0_15 = arith.constant 0 : index
    %c0_16 = arith.constant 0 : index
    %25 = vector.load %arg7[%c0_15, %c0_16] : memref<128x128xbf16, #tpu.memory_space<vmem>>, vector<128x128xbf16>
    tpu.vector_store %arg7[%c0_15, %c0_16], %24 {strides = array<i32>} : memref<128x128xbf16, #tpu.memory_space<vmem>>, vector<128x128xbf16>,
    return
  }
  func.func @transform_0(%arg0: i32) -> (i32, i32) {
    %c0_i32 = arith.constant 0 : i32
    %c0_i32_0 = arith.constant 0 : i32
    %c0_i32_1 = arith.constant 0 : i32
    return %c0_i32, %c0_i32_0 : i32, i32
  }
  func.func @transform_1(%arg0: i32) -> (i32, i32) {
    %c0_i32 = arith.constant 0 : i32
    %c0_i32_0 = arith.constant 0 : i32
    return %arg0, %c0_i32 : i32, i32
  }
  func.func @transform_2(%arg0: i32) -> (i32, i32) {
    %c0_i32 = arith.constant 0 : i32
    %c0_i32_0 = arith.constant 0 : i32
    return %arg0, %c0_i32 : i32, i32
  }
  func.func @transform_3(%arg0: i32) -> (i32, i32) {
    %c0_i32 = arith.constant 0 : i32
    %c0_i32_0 = arith.constant 0 : i32
    return %arg0, %c0_i32 : i32, i32
  }
  func.func @transform_4(%arg0: i32) -> (i32, i32) {
    %c0_i32 = arith.constant 0 : i32
    %c0_i32_0 = arith.constant 0 : i32
    %c0_i32_1 = arith.constant 0 : i32
    return %c0_i32, %c0_i32_0 : i32, i32
  }
  func.func @transform_5(%arg0: i32) -> (i32, i32) {
    %c0_i32 = arith.constant 0 : i32
    %c0_i32_0 = arith.constant 0 : i32
    %c0_i32_1 = arith.constant 0 : i32
    return %c0_i32, %c0_i32_0 : i32, i32
  }
  func.func @transform_6(%arg0: i32) -> (i32, i32) {
    %c0_i32 = arith.constant 0 : i32
    %c0_i32_0 = arith.constant 0 : i32
    return %arg0, %c0_i32 : i32, i32
  }
}

module attributes {stable_mosaic.version = 11 : i64} {
  func.func @kernel(%arg0: i32, %arg1: i32, %arg2: memref<16x128xf32, #tpu.memory_space<vmem>>, %arg3: memref<128x128xbf16, #tpu.memory_space<vmem>>, %arg4: memref<16x128xbf16, #tpu.memory_space<vmem>>, %arg5: memref<128x128xf32, #tpu.memory_space<vmem>>, %arg6: memref<1x128xf32, #tpu.memory_space<vmem>>, %arg7: memref<128x128xf32, #tpu.memory_space<vmem>>, %arg8: memref<1x128xf32, #tpu.memory_space<vmem>>, %arg9: memref<16x128xf32, #tpu.memory_space<vmem>>, %arg10: memref<16x128xf32, #tpu.memory_space<vmem>>) attributes {dimension_semantics = [#tpu.dimension_semantics<parallel>, #tpu.dimension_semantics<arbitrary>], iteration_bounds = array<i64: 2, 2>, scalar_prefetch = 0 : i64, scratch_operands = 1 : i64, tpu.core_type = #tpu.core_type<tc>, window_params = [{transform_indices = @transform_0, window_bounds = array<i64: 16, 128>}, {transform_indices = @transform_1, window_bounds = array<i64: 128, 128>}, {transform_indices = @transform_2, window_bounds = array<i64: 16, 128>}, {pipeline_mode = #tpu.pipeline_mode<synchronous>, transform_indices = @transform_3, window_bounds = array<i64: 128, 128>}, {pipeline_mode = #tpu.pipeline_mode<synchronous>, transform_indices = @transform_4, window_bounds = array<i64: 1, 128>}, {pipeline_mode = #tpu.pipeline_mode<synchronous>, transform_indices = @transform_5, window_bounds = array<i64: 128, 128>}, {pipeline_mode = #tpu.pipeline_mode<synchronous>, transform_indices = @transform_6, window_bounds = array<i64: 1, 128>}, {transform_indices = @transform_7, window_bounds = array<i64: 16, 128>}]} {
    %c0_i32 = arith.constant 0 : i32
    %0 = arith.cmpi eq, %arg1, %c0_i32 : i32
    %1 = arith.extui %0 : i1 to i32
    %c0_i32_0 = arith.constant 0 : i32
    %2 = arith.cmpi ne, %1, %c0_i32_0 : i32
    scf.if %2 {
      %cst_9 = arith.constant 0.000000e+00 : f32
      %12 = vector.broadcast %cst_9 : f32 to vector<16x128xf32>
      %c0_10 = arith.constant 0 : index
      %c0_11 = arith.constant 0 : index
      %13 = vector.load %arg10[%c0_10, %c0_11] : memref<16x128xf32, #tpu.memory_space<vmem>>, vector<16x128xf32>
      tpu.vector_store %arg10[%c0_10, %c0_11], %12 {strides = array<i32>} : memref<16x128xf32, #tpu.memory_space<vmem>>, vector<16x128xf32>,
    } else {
    }
    %c0 = arith.constant 0 : index
    %c0_1 = arith.constant 0 : index
    %3 = vector.load %arg10[%c0, %c0_1] : memref<16x128xf32, #tpu.memory_space<vmem>>, vector<16x128xf32>
    %c0_2 = arith.constant 0 : index
    %c0_3 = arith.constant 0 : index
    %4 = vector.load %arg4[%c0_2, %c0_3] : memref<16x128xbf16, #tpu.memory_space<vmem>>, vector<16x128xbf16>
    %c0_4 = arith.constant 0 : index
    %c0_5 = arith.constant 0 : index
    %5 = vector.load %arg3[%c0_4, %c0_5] : memref<128x128xbf16, #tpu.memory_space<vmem>>, vector<128x128xbf16>
    %cst = arith.constant dense<0.000000e+00> : vector<16x128xf32>
    %6 = tpu.matmul %4, %5, %cst {dimension_numbers = #tpu.dot_dimension_numbers<[1], [0], [0], [1], [0, 0, 1, 1], [], []>} : vector<16x128xbf16>, vector<128x128xbf16>, vector<16x128xf32> -> vector<16x128xf32>
    %7 = arith.addf %3, %6 : vector<16x128xf32>
    %c0_6 = arith.constant 0 : index
    %c0_7 = arith.constant 0 : index
    %8 = vector.load %arg10[%c0_6, %c0_7] : memref<16x128xf32, #tpu.memory_space<vmem>>, vector<16x128xf32>
    tpu.vector_store %arg10[%c0_6, %c0_7], %7 {strides = array<i32>} : memref<16x128xf32, #tpu.memory_space<vmem>>, vector<16x128xf32>,
    %c1_i32 = arith.constant 1 : i32
    %9 = arith.cmpi eq, %arg1, %c1_i32 : i32
    %10 = arith.extui %9 : i1 to i32
    %c0_i32_8 = arith.constant 0 : i32
    %11 = arith.cmpi ne, %10, %c0_i32_8 : i32
    scf.if %11 {
      %c0_9 = arith.constant 0 : index
      %c0_10 = arith.constant 0 : index
      %12 = vector.load %arg2[%c0_9, %c0_10] : memref<16x128xf32, #tpu.memory_space<vmem>>, vector<16x128xf32>
      %c0_11 = arith.constant 0 : index
      %c0_12 = arith.constant 0 : index
      %13 = vector.load %arg5[%c0_11, %c0_12] : memref<128x128xf32, #tpu.memory_space<vmem>>, vector<128x128xf32>
      %cst_13 = arith.constant dense<0.000000e+00> : vector<16x128xf32>
      %14 = tpu.matmul %12, %13, %cst_13 {dimension_numbers = #tpu.dot_dimension_numbers<[1], [0], [0], [1], [0, 0, 1, 1], [], []>} : vector<16x128xf32>, vector<128x128xf32>, vector<16x128xf32> -> vector<16x128xf32>
      %c0_14 = arith.constant 0 : index
      %c0_15 = arith.constant 0 : index
      %15 = vector.load %arg6[%c0_14, %c0_15] : memref<1x128xf32, #tpu.memory_space<vmem>>, vector<1x128xf32>
      %16 = vector.broadcast %15 : vector<1x128xf32> to vector<16x128xf32>
      %17 = arith.addf %14, %16 : vector<16x128xf32>
      %c0_16 = arith.constant 0 : index
      %c0_17 = arith.constant 0 : index
      %18 = vector.load %arg10[%c0_16, %c0_17] : memref<16x128xf32, #tpu.memory_space<vmem>>, vector<16x128xf32>
      %c0_18 = arith.constant 0 : index
      %c0_19 = arith.constant 0 : index
      %19 = vector.load %arg7[%c0_18, %c0_19] : memref<128x128xf32, #tpu.memory_space<vmem>>, vector<128x128xf32>
      %cst_20 = arith.constant dense<0.000000e+00> : vector<16x128xf32>
      %20 = tpu.matmul %18, %19, %cst_20 {dimension_numbers = #tpu.dot_dimension_numbers<[1], [0], [0], [1], [0, 0, 1, 1], [], []>} : vector<16x128xf32>, vector<128x128xf32>, vector<16x128xf32> -> vector<16x128xf32>
      %21 = arith.addf %17, %20 : vector<16x128xf32>
      %c0_21 = arith.constant 0 : index
      %c0_22 = arith.constant 0 : index
      %22 = vector.load %arg8[%c0_21, %c0_22] : memref<1x128xf32, #tpu.memory_space<vmem>>, vector<1x128xf32>
      %23 = vector.broadcast %22 : vector<1x128xf32> to vector<16x128xf32>
      %24 = arith.addf %21, %23 : vector<16x128xf32>
      %cst_23 = arith.constant 0.000000e+00 : f32
      %25 = vector.broadcast %cst_23 : f32 to vector<16x128xf32>
      %26 = arith.maximumf %24, %25 : vector<16x128xf32>
      %27 = math.absf %24 : vector<16x128xf32>
      %cst_24 = arith.constant 0.000000e+00 : f32
      %28 = vector.broadcast %cst_24 : f32 to vector<16x128xf32>
      %29 = arith.subf %28, %27 : vector<16x128xf32>
      %30 = math.exp %29 : vector<16x128xf32>
      %cst_25 = arith.constant 1.000000e+00 : f32
      %31 = vector.broadcast %cst_25 : f32 to vector<16x128xf32>
      %32 = arith.addf %31, %30 : vector<16x128xf32>
      %33 = math.log %32 : vector<16x128xf32>
      %34 = arith.addf %26, %33 : vector<16x128xf32>
      %c0_26 = arith.constant 0 : index
      %c0_27 = arith.constant 0 : index
      %35 = vector.load %arg9[%c0_26, %c0_27] : memref<16x128xf32, #tpu.memory_space<vmem>>, vector<16x128xf32>
      tpu.vector_store %arg9[%c0_26, %c0_27], %34 {strides = array<i32>} : memref<16x128xf32, #tpu.memory_space<vmem>>, vector<16x128xf32>,
    } else {
    }
    return
  }
  func.func @transform_0(%arg0: i32, %arg1: i32) -> (i32, i32) {
    %c0_i32 = arith.constant 0 : i32
    %c0_i32_0 = arith.constant 0 : i32
    return %arg0, %c0_i32 : i32, i32
  }
  func.func @transform_1(%arg0: i32, %arg1: i32) -> (i32, i32) {
    %c0_i32 = arith.constant 0 : i32
    %c0_i32_0 = arith.constant 0 : i32
    return %arg1, %c0_i32 : i32, i32
  }
  func.func @transform_2(%arg0: i32, %arg1: i32) -> (i32, i32) {
    %c0_i32 = arith.constant 0 : i32
    return %arg0, %arg1 : i32, i32
  }
  func.func @transform_3(%arg0: i32, %arg1: i32) -> (i32, i32) {
    %c0_i32 = arith.constant 0 : i32
    %c0_i32_0 = arith.constant 0 : i32
    %c0_i32_1 = arith.constant 0 : i32
    return %c0_i32, %c0_i32_0 : i32, i32
  }
  func.func @transform_4(%arg0: i32, %arg1: i32) -> (i32, i32) {
    %c0_i32 = arith.constant 0 : i32
    %c0_i32_0 = arith.constant 0 : i32
    %c0_i32_1 = arith.constant 0 : i32
    return %c0_i32, %c0_i32_0 : i32, i32
  }
  func.func @transform_5(%arg0: i32, %arg1: i32) -> (i32, i32) {
    %c0_i32 = arith.constant 0 : i32
    %c0_i32_0 = arith.constant 0 : i32
    %c0_i32_1 = arith.constant 0 : i32
    return %c0_i32, %c0_i32_0 : i32, i32
  }
  func.func @transform_6(%arg0: i32, %arg1: i32) -> (i32, i32) {
    %c0_i32 = arith.constant 0 : i32
    %c0_i32_0 = arith.constant 0 : i32
    %c0_i32_1 = arith.constant 0 : i32
    return %c0_i32, %c0_i32_0 : i32, i32
  }
  func.func @transform_7(%arg0: i32, %arg1: i32) -> (i32, i32) {
    %c0_i32 = arith.constant 0 : i32
    %c0_i32_0 = arith.constant 0 : i32
    return %arg0, %c0_i32 : i32, i32
  }
}

module attributes {stable_mosaic.version = 11 : i64} {
  func.func @kernel(%arg0: memref<32x128xf32, #tpu.memory_space<vmem>>, %arg1: memref<2x32xf32, #tpu.memory_space<vmem>>, %arg2: memref<128x128xf32, #tpu.memory_space<vmem>>, %arg3: memref<1x128xf32, #tpu.memory_space<vmem>>, %arg4: memref<128x1xf32, #tpu.memory_space<vmem>>, %arg5: memref<1x1xf32, #tpu.memory_space<vmem>>, %arg6: memref<2x1xf32, #tpu.memory_space<vmem>>) attributes {dimension_semantics = [], scalar_prefetch = 0 : i64, scratch_operands = 0 : i64, tpu.core_type = #tpu.core_type<tc>} {
    %c0 = arith.constant 0 : index
    %c0_0 = arith.constant 0 : index
    %0 = vector.load %arg1[%c0, %c0_0] : memref<2x32xf32, #tpu.memory_space<vmem>>, vector<2x32xf32>
    %c0_1 = arith.constant 0 : index
    %c0_2 = arith.constant 0 : index
    %1 = vector.load %arg0[%c0_1, %c0_2] : memref<32x128xf32, #tpu.memory_space<vmem>>, vector<32x128xf32>
    %cst = arith.constant dense<0.000000e+00> : vector<2x128xf32>
    %2 = tpu.matmul %0, %1, %cst {dimension_numbers = #tpu.dot_dimension_numbers<[1], [0], [0], [1], [0, 0, 1, 1], [], []>} : vector<2x32xf32>, vector<32x128xf32>, vector<2x128xf32> -> vector<2x128xf32>
    %c0_3 = arith.constant 0 : index
    %c0_4 = arith.constant 0 : index
    %3 = vector.load %arg2[%c0_3, %c0_4] : memref<128x128xf32, #tpu.memory_space<vmem>>, vector<128x128xf32>
    %cst_5 = arith.constant dense<0.000000e+00> : vector<2x128xf32>
    %4 = tpu.matmul %2, %3, %cst_5 {dimension_numbers = #tpu.dot_dimension_numbers<[1], [0], [0], [1], [0, 0, 1, 1], [], []>} : vector<2x128xf32>, vector<128x128xf32>, vector<2x128xf32> -> vector<2x128xf32>
    %c0_6 = arith.constant 0 : index
    %c0_7 = arith.constant 0 : index
    %5 = vector.load %arg3[%c0_6, %c0_7] : memref<1x128xf32, #tpu.memory_space<vmem>>, vector<1x128xf32>
    %6 = vector.broadcast %5 : vector<1x128xf32> to vector<2x128xf32>
    %7 = arith.addf %4, %6 : vector<2x128xf32>
    %cst_8 = arith.constant 0.000000e+00 : f32
    %8 = vector.broadcast %cst_8 : f32 to vector<2x128xf32>
    %9 = arith.maximumf %7, %8 : vector<2x128xf32>
    %10 = math.absf %7 : vector<2x128xf32>
    %cst_9 = arith.constant 0.000000e+00 : f32
    %11 = vector.broadcast %cst_9 : f32 to vector<2x128xf32>
    %12 = arith.subf %11, %10 : vector<2x128xf32>
    %13 = math.exp %12 : vector<2x128xf32>
    %cst_10 = arith.constant 1.000000e+00 : f32
    %14 = vector.broadcast %cst_10 : f32 to vector<2x128xf32>
    %15 = arith.addf %14, %13 : vector<2x128xf32>
    %16 = math.log %15 : vector<2x128xf32>
    %17 = arith.addf %9, %16 : vector<2x128xf32>
    %c0_11 = arith.constant 0 : index
    %c0_12 = arith.constant 0 : index
    %18 = vector.load %arg4[%c0_11, %c0_12] : memref<128x1xf32, #tpu.memory_space<vmem>>, vector<128x1xf32>
    %cst_13 = arith.constant dense<0.000000e+00> : vector<2x1xf32>
    %19 = tpu.matmul %17, %18, %cst_13 {dimension_numbers = #tpu.dot_dimension_numbers<[1], [0], [0], [1], [0, 0, 1, 1], [], []>} : vector<2x128xf32>, vector<128x1xf32>, vector<2x1xf32> -> vector<2x1xf32>
    %c0_14 = arith.constant 0 : index
    %c0_15 = arith.constant 0 : index
    %20 = vector.load %arg5[%c0_14, %c0_15] : memref<1x1xf32, #tpu.memory_space<vmem>>, vector<1x1xf32>
    %21 = vector.broadcast %20 : vector<1x1xf32> to vector<2x1xf32>
    %22 = arith.addf %19, %21 : vector<2x1xf32>
    %c0_16 = arith.constant 0 : index
    %c0_17 = arith.constant 0 : index
    %23 = vector.load %arg6[%c0_16, %c0_17] : memref<2x1xf32, #tpu.memory_space<vmem>>, vector<2x1xf32>
    tpu.vector_store %arg6[%c0_16, %c0_17], %22 {strides = array<i32>} : memref<2x1xf32, #tpu.memory_space<vmem>>, vector<2x1xf32>,
    return
  }
}

</mosaic_0001>

<llo_original>
// kernel: continuous_energy_forward.7
$region0: #{continuous_energy_forward.7}
  #allocation0 [shape = 'u32[]', space=smem, size = 0x4, offset = 0x4, fixed_abs, tag = 'smem constant byte address 0x4 - core index']
  #allocation1 [shape = 'u32[144,128]{1,0:T(1,128)}', space=vmem, size = 0x12000, scoped, tag = 'internal scratch']
  %s0 = inlined_call_operand.vmem [shape: f32[32,128], index: 0, kind: input, shape index: {}]
  %s1 = inlined_call_operand.vmem [shape: f32[32,128], index: 1, kind: output, shape index: {}]
  %s2 = sld [smem:[#allocation0]]
  $region14: #{continuous_energy_forward.7} parent=0
    _
  %s4 = ssub.s32 1, %s2
  %s5 = scalar_select 0, %s4, %s2
  // Predicated region
  $region2: #{continuous_energy_forward.7} parent=0 // pred_check
    _
  $region3: #{continuous_energy_forward.7} parent=0 // pred_check_branch
    %7 = sbr.rel (0) target = $region5
  $region4: #{continuous_energy_forward.7} parent=0 // pred_region
    _
  $region5: #{continuous_energy_forward.7} parent=0 // pred_fallthru
    _
  %v8 = vld [vmem:[%s0] sm:$0xff]
  %v9 = vld [vmem:[%s0 + $0x8] sm:$0xff]
  %v10 = vld [vmem:[%s0 + $0x10] sm:$0xff]
  %v11 = vld [vmem:[%s0 + $0x18] sm:$0xff]
  %v12 = vtanh.pop %v8
  %v13 = vtanh.pop %v9
  %v14 = vtanh.pop %v10
  %v15 = vtanh.pop %v11
  %16 = vst [vmem:[%s1] sm:$0xff] %v12
  %17 = vst [vmem:[%s1 + $0x8] sm:$0xff] %v13
  %18 = vst [vmem:[%s1 + $0x10] sm:$0xff] %v14
  %19 = vst [vmem:[%s1 + $0x18] sm:$0xff] %v15
  // Predicated region
  $region6: #{continuous_energy_forward.7} parent=0 // pred_check
    _
  $region7: #{continuous_energy_forward.7} parent=0 // pred_check_branch
    %21 = sbr.rel (0) target = $region9
  $region8: #{continuous_energy_forward.7} parent=0 // pred_region
    _
  $region9: #{continuous_energy_forward.7} parent=0 // pred_fallthru
    _
  // Predicated region
  $region10: #{continuous_energy_forward.7} parent=0 // pred_check
    _
  $region11: #{continuous_energy_forward.7} parent=0 // pred_check_branch
    %23 = sbr.rel (0) target = $region13
  $region12: #{continuous_energy_forward.7} parent=0 // pred_region
    _
  $region13: #{continuous_energy_forward.7} parent=0 // pred_fallthru
    _

// kernel: continuous_energy_forward.8
$region0: #{continuous_energy_forward.8}
  #allocation0 [shape = 'u32[]', space=smem, size = 0x4, offset = 0x4, fixed_abs, tag = 'smem constant byte address 0x4 - core index']
  #allocation1 [shape = 'u32[144,128]{1,0:T(1,128)}', space=vmem, size = 0x12000, scoped, tag = 'internal scratch']
  %s0 = inlined_call_operand.vmem [shape: f32[256,1], index: 0, kind: input, shape index: {}]
  %s1 = inlined_call_operand.vmem [shape: f32[256,1], index: 1, kind: input, shape index: {}]
  %s2 = inlined_call_operand.vmem [shape: f32[1,128], index: 2, kind: input, shape index: {}]
  %s3 = inlined_call_operand.vmem [shape: f32[256,1], index: 3, kind: output, shape index: {0}]
  %s4 = inlined_call_operand.vmem [shape: f32[256,128], index: 4, kind: output, shape index: {1}]
  %5 = xla_tuple %s3, %s4
  %s6 = sld [smem:[#allocation0]]
  $region53: #{continuous_energy_forward.8} parent=0
    _
  %s8 = ssub.s32 1, %s6
  %s9 = scalar_select 0, %s8, %s6
  loop: start=0, step=1, limit=4
  $region2: #{continuous_energy_forward.8} parent=0 // loop_pre_header
    _
  $region3: #{continuous_energy_forward.8} parent=0 // loop_header
    %s11 = sphi 0, %s15
    %p12 = scmp.ge.s32.totalorder %s11, 4
    %s21 = sphi 0, %s23
    %s24 = sphi 0, %s21
    %s25 = sphi 0, %s24
    %s41 = sphi 0, %s25
    %s47 = sphi 0, %s49
    %s50 = sphi 0, %s47
    %s51 = sphi 0, %s50
    %s67 = sphi 0, %s51
    %s71 = sphi 0, %s71
    %s73 = sphi 0, %s71
    %s74 = sphi 0, %s73
    %s88 = sphi 0, %s74
    %s94 = sphi 0, %s96
    %s97 = sphi 0, %s94
    %s98 = sphi 0, %s97
    %s114 = sphi 0, %s98
    %s120 = sphi 0, %s122
    %s123 = sphi 0, %s120
    %s124 = sphi 0, %s123
    %s140 = sphi 0, %s124
  $region4: #{continuous_energy_forward.8} parent=0 // loop_header_branch
    %14 = sbr.rel (%p12) target = $region8
  $region5: #{continuous_energy_forward.8} parent=0 // loop_body
    %s16 = ssub.s32 %s11, 1
    %s17 = ssub.s32 %s11, 2
    %s18 = sadd.s32 %s11, 1
    %s19 = ssub.s32 %s11, %s18
    %p20 = scmp.eq.s32.totalorder %s19, 0
    %s22 = sadd.s32 %s21, 1
    %s23 = scalar_select %p20, %s21, %s22
    %p26 = pneg %p20
    %p27 = scmp.eq.s32.totalorder %s11, 1
    %p28 = por %p26, %p27
    %p29 = scmp.ne.s32.totalorder %s21, %s24
    %p30 = scmp.eq.s32.totalorder %s11, 0
    %p31 = por %p29, %p30
    %p32 = scmp.ne.s32.totalorder %s21, %s24
    %p33 = scmp.eq.s32.totalorder %s16, 1
    %p34 = por %p32, %p33
    %p35 = scmp.ne.s32.totalorder %s24, %s25
    %p36 = scmp.eq.s32.totalorder %s16, 0
    %p37 = por %p35, %p36
    %p38 = scmp.ne.s32.totalorder %s24, %s25
    %p39 = scmp.eq.s32.totalorder %s17, 1
    %p40 = por %p38, %p39
    %p42 = scmp.ne.s32.totalorder %s25, %s41
    %p43 = scmp.eq.s32.totalorder %s17, 0
    %p44 = por %p42, %p43
    %s45 = ssub.s32 %s11, %s18
    %p46 = scmp.eq.s32.totalorder %s45, 0
    %s48 = sadd.s32 %s47, 1
    %s49 = scalar_select %p46, %s47, %s48
    %p52 = pneg %p46
    %p53 = scmp.eq.s32.totalorder %s11, 1
    %p54 = por %p52, %p53
    %p55 = scmp.ne.s32.totalorder %s47, %s50
    %p56 = scmp.eq.s32.totalorder %s11, 0
    %p57 = por %p55, %p56
    %p58 = scmp.ne.s32.totalorder %s47, %s50
    %p59 = scmp.eq.s32.totalorder %s16, 1
    %p60 = por %p58, %p59
    %p61 = scmp.ne.s32.totalorder %s50, %s51
    %p62 = scmp.eq.s32.totalorder %s16, 0
    %p63 = por %p61, %p62
    %p64 = scmp.ne.s32.totalorder %s50, %s51
    %p65 = scmp.eq.s32.totalorder %s17, 1
    %p66 = por %p64, %p65
    %p68 = scmp.ne.s32.totalorder %s51, %s67
    %p69 = scmp.eq.s32.totalorder %s17, 0
    %p70 = por %p68, %p69
    %s72 = sadd.s32 %s71, 1
    %p75 = scmp.eq.s32.totalorder %s11, 1
    %p76 = scmp.ne.s32.totalorder %s71, %s73
    %p77 = scmp.eq.s32.totalorder %s11, 0
    %p78 = por %p76, %p77
    %p79 = scmp.ne.s32.totalorder %s71, %s73
    %p80 = scmp.eq.s32.totalorder %s16, 1
    %p81 = por %p79, %p80
    %p82 = scmp.ne.s32.totalorder %s73, %s74
    %p83 = scmp.eq.s32.totalorder %s16, 0
    %p84 = por %p82, %p83
    %p85 = scmp.ne.s32.totalorder %s73, %s74
    %p86 = scmp.eq.s32.totalorder %s17, 1
    %p87 = por %p85, %p86
    %p89 = scmp.ne.s32.totalorder %s74, %s88
    %p90 = scmp.eq.s32.totalorder %s17, 0
    %p91 = por %p89, %p90
    %s92 = ssub.s32 %s11, %s18
    %p93 = scmp.eq.s32.totalorder %s92, 0
    %s95 = sadd.s32 %s94, 1
    %s96 = scalar_select %p93, %s94, %s95
    %p99 = pneg %p93
    %p100 = scmp.eq.s32.totalorder %s11, 1
    %p101 = por %p99, %p100
    %p102 = scmp.ne.s32.totalorder %s94, %s97
    %p103 = scmp.eq.s32.totalorder %s11, 0
    %p104 = por %p102, %p103
    %p105 = scmp.ne.s32.totalorder %s94, %s97
    %p106 = scmp.eq.s32.totalorder %s16, 1
    %p107 = por %p105, %p106
    %p108 = scmp.ne.s32.totalorder %s97, %s98
    %p109 = scmp.eq.s32.totalorder %s16, 0
    %p110 = por %p108, %p109
    %p111 = scmp.ne.s32.totalorder %s97, %s98
    %p112 = scmp.eq.s32.totalorder %s17, 1
    %p113 = por %p111, %p112
    %p115 = scmp.ne.s32.totalorder %s98, %s114
    %p116 = scmp.eq.s32.totalorder %s17, 0
    %p117 = por %p115, %p116
    %s118 = ssub.s32 %s11, %s18
    %p119 = scmp.eq.s32.totalorder %s118, 0
    %s121 = sadd.s32 %s120, 1
    %s122 = scalar_select %p119, %s120, %s121
    %p125 = pneg %p119
    %p126 = scmp.eq.s32.totalorder %s11, 1
    %p127 = por %p125, %p126
    %p128 = scmp.ne.s32.totalorder %s120, %s123
    %p129 = scmp.eq.s32.totalorder %s11, 0
    %p130 = por %p128, %p129
    %p131 = scmp.ne.s32.totalorder %s120, %s123
    %p132 = scmp.eq.s32.totalorder %s16, 1
    %p133 = por %p131, %p132
    %p134 = scmp.ne.s32.totalorder %s123, %s124
    %p135 = scmp.eq.s32.totalorder %s16, 0
    %p136 = por %p134, %p135
    %p137 = scmp.ne.s32.totalorder %s123, %s124
    %p138 = scmp.eq.s32.totalorder %s17, 1
    %p139 = por %p137, %p138
    %p141 = scmp.ne.s32.totalorder %s124, %s140
    %p142 = scmp.eq.s32.totalorder %s17, 0
    %p143 = por %p141, %p142
    %p144 = scmp.le.s32.totalorder 1, %s11
    %p145 = scmp.lt.s32.totalorder %s11, 3
    %p146 = pnand %p144, %p145
    %p147 = pneg %p146
    // Predicated region
    $region9: #{continuous_energy_forward.8} parent=5 // pred_check
      _
    $region10: #{continuous_energy_forward.8} parent=5 // pred_check_branch
      %149 = sbr.rel (%p146) target = $region12
    $region11: #{continuous_energy_forward.8} parent=5 // pred_region
      %s150 = ssub.s32 %s11, 1
      // Predicated region
      $region13: #{continuous_energy_forward.8} parent=11 // pred_check
        %p151 = pneg %p84
      $region14: #{continuous_energy_forward.8} parent=11 // pred_check_branch
        %153 = sbr.rel (%p151) target = $region16
      $region15: #{continuous_energy_forward.8} parent=11 // pred_region
        _
      $region16: #{continuous_energy_forward.8} parent=11 // pred_fallthru
        _
    $region12: #{continuous_energy_forward.8} parent=5 // pred_fallthru
      _
    %p154 = scmp.lt.s32.totalorder %s11, 2
    // Predicated region
    $region17: #{continuous_energy_forward.8} parent=5 // pred_check
      %p155 = pneg %p154
    $region18: #{continuous_energy_forward.8} parent=5 // pred_check_branch
      %157 = sbr.rel (%p155) target = $region20
    $region19: #{continuous_energy_forward.8} parent=5 // pred_region
      // Predicated region
      $region21: #{continuous_energy_forward.8} parent=19 // pred_check
        %p158 = pneg %p31
      $region22: #{continuous_energy_forward.8} parent=19 // pred_check_branch
        %160 = sbr.rel (%p158) target = $region24
      $region23: #{continuous_energy_forward.8} parent=19 // pred_region
        %s161 = smul.u32 16, %s11
        %p162 = scmp.lt.s32.totalorder %s161, 31
        %s163 = scalar_select %p162, %s161, 31
        %s164 = smul.addr %s163, 8
        %s165 = scalar_lea.vmem %s0, %s164
        %s166 = smul.u32 16, %s11
      $region24: #{continuous_energy_forward.8} parent=19 // pred_fallthru
        _
      // Predicated region
      $region25: #{continuous_energy_forward.8} parent=19 // pred_check
        %p167 = pneg %p57
      $region26: #{continuous_energy_forward.8} parent=19 // pred_check_branch
        %169 = sbr.rel (%p167) target = $region28
      $region27: #{continuous_energy_forward.8} parent=19 // pred_region
        %s170 = smul.u32 16, %s11
        %p171 = scmp.lt.s32.totalorder %s170, 31
        %s172 = scalar_select %p171, %s170, 31
        %s173 = smul.addr %s172, 8
        %s174 = scalar_lea.vmem %s1, %s173
        %s175 = smul.u32 16, %s11
      $region28: #{continuous_energy_forward.8} parent=19 // pred_fallthru
        _
    $region20: #{continuous_energy_forward.8} parent=5 // pred_fallthru
      _
    %p176 = scmp.le.s32.totalorder 1, %s11
    %p177 = scmp.lt.s32.totalorder %s11, 3
    %p178 = pnand %p176, %p177
    %p179 = pneg %p178
    // Predicated region
    $region29: #{continuous_energy_forward.8} parent=5 // pred_check
      _
    $region30: #{continuous_energy_forward.8} parent=5 // pred_check_branch
      %181 = sbr.rel (%p178) target = $region32
    $region31: #{continuous_energy_forward.8} parent=5 // pred_region
      %s182 = ssub.s32 %s11, 1
      %s183 = smul.u32 16, %s16
      %p184 = scmp.lt.s32.totalorder %s183, 31
      %s185 = scalar_select %p184, %s183, 31
      %s186 = smul.addr %s185, 8
      %s187 = scalar_lea.vmem %s0, %s186
      %p188 = pneg %p37
      %p189 = pneg %p34
      %s190 = smul.u32 16, %s16
      %p191 = scmp.lt.s32.totalorder %s190, 31
      %s192 = scalar_select %p191, %s190, 31
      %s193 = smul.addr %s192, 8
      %s194 = scalar_lea.vmem %s1, %s193
      %p195 = pneg %p63
      %p196 = pneg %p60
      %p197 = pneg %p84
      %p198 = pneg %p81
      %p199 = pneg %p110
      %p200 = pneg %p107
      %s201 = smul.u32 16, %s16
      %p202 = scmp.lt.s32.totalorder %s201, 31
      %s203 = scalar_select %p202, %s201, 31
      %s204 = smul.addr %s203, 8
      %s205 = scalar_lea.vmem %s3, %s204
      %p206 = pneg %p136
      %p207 = pneg %p133
      %s208 = smul.u32 16, %s16
      %p209 = scmp.lt.s32.totalorder %s208, 31
      %s210 = scalar_select %p209, %s208, 31
      %s211 = smul.addr %s210, 8
      %s212 = scalar_lea.vmem %s4, %s211
      %s213 = smul.u32 16, %s16
      %p214 = scmp.lt.s32.totalorder %s213, 31
      %s215 = scalar_select %p214, %s213, 31
      %s216 = smul.addr %s215, 8
      %s217 = scalar_lea.vmem %s0, %s216
      %s218 = smul.u32 16, %s16
      %s219 = smul.u32 16, %s16
      %p220 = scmp.lt.s32.totalorder %s219, 31
      %s221 = scalar_select %p220, %s219, 31
      %s222 = smul.addr %s221, 8
      %s223 = scalar_lea.vmem %s1, %s222
      %s224 = smul.u32 16, %s16
      %s225 = smul.u32 16, %s16
      %p226 = scmp.lt.s32.totalorder %s225, 31
      %s227 = scalar_select %p226, %s225, 31
      %s228 = smul.addr %s227, 8
      %s229 = scalar_lea.vmem %s3, %s228
      %s230 = smul.u32 16, %s16
      %s231 = smul.u32 16, %s16
      %p232 = scmp.lt.s32.totalorder %s231, 31
      %s233 = scalar_select %p232, %s231, 31
      %s234 = smul.addr %s233, 8
      %s235 = scalar_lea.vmem %s4, %s234
      %s236 = smul.u32 16, %s16
      %v237 = vld [vmem:[%s217] sm:$0xff]
      %v238 = vld [vmem:[%s217 + $0x8] sm:$0xff]
      %v239 = vld [vmem:[%s217 + $0x10] sm:$0xff]
      %v240 = vld [vmem:[%s217 + $0x18] sm:$0xff]
      %v241 = vld [vmem:[%s217 + $0x20] sm:$0xff]
      %v242 = vld [vmem:[%s217 + $0x28] sm:$0xff]
      %v243 = vld [vmem:[%s217 + $0x30] sm:$0xff]
      %v244 = vld [vmem:[%s217 + $0x38] sm:$0xff]
      %v245 = vld [vmem:[%s217 + $0x40] sm:$0xff]
      %v246 = vld [vmem:[%s217 + $0x48] sm:$0xff]
      %v247 = vld [vmem:[%s217 + $0x50] sm:$0xff]
      %v248 = vld [vmem:[%s217 + $0x58] sm:$0xff]
      %v249 = vld [vmem:[%s217 + $0x60] sm:$0xff]
      %v250 = vld [vmem:[%s217 + $0x68] sm:$0xff]
      %v251 = vld [vmem:[%s217 + $0x70] sm:$0xff]
      %v252 = vld [vmem:[%s217 + $0x78] sm:$0xff]
      %v253 = vld [vmem:[%s223] sm:$0xff]
      %v254 = vld [vmem:[%s223 + $0x8] sm:$0xff]
      %v255 = vld [vmem:[%s223 + $0x10] sm:$0xff]
      %v256 = vld [vmem:[%s223 + $0x18] sm:$0xff]
      %v257 = vld [vmem:[%s223 + $0x20] sm:$0xff]
      %v258 = vld [vmem:[%s223 + $0x28] sm:$0xff]
      %v259 = vld [vmem:[%s223 + $0x30] sm:$0xff]
      %v260 = vld [vmem:[%s223 + $0x38] sm:$0xff]
      %v261 = vld [vmem:[%s223 + $0x40] sm:$0xff]
      %v262 = vld [vmem:[%s223 + $0x48] sm:$0xff]
      %v263 = vld [vmem:[%s223 + $0x50] sm:$0xff]
      %v264 = vld [vmem:[%s223 + $0x58] sm:$0xff]
      %v265 = vld [vmem:[%s223 + $0x60] sm:$0xff]
      %v266 = vld [vmem:[%s223 + $0x68] sm:$0xff]
      %v267 = vld [vmem:[%s223 + $0x70] sm:$0xff]
      %v268 = vld [vmem:[%s223 + $0x78] sm:$0xff]
      %v269 = vmul.f32 %v237, %v253
      %v270 = vmul.f32 %v238, %v254
      %v271 = vmul.f32 %v239, %v255
      %v272 = vmul.f32 %v240, %v256
      %v273 = vmul.f32 %v241, %v257
      %v274 = vmul.f32 %v242, %v258
      %v275 = vmul.f32 %v243, %v259
      %v276 = vmul.f32 %v244, %v260
      %v277 = vmul.f32 %v245, %v261
      %v278 = vmul.f32 %v246, %v262
      %v279 = vmul.f32 %v247, %v263
      %v280 = vmul.f32 %v248, %v264
      %v281 = vmul.f32 %v249, %v265
      %v282 = vmul.f32 %v250, %v266
      %v283 = vmul.f32 %v251, %v267
      %v284 = vmul.f32 %v252, %v268
      %v285 = vand.u32 2147483647, %v269
      %vm286 = vcmp.le.f32.partialorder %v285, 0.7853982
      %vm287 = vcmp.lt.s32.totalorder %v269, 0
      %v288 = vand.u32 %v269, 2139095040
      %v289 = vshrl.u32 %v288, 23
      %v290 = vsub.s32 %v289, 127
      %v291 = vand.u32 2147483647, %v269
      %v292 = vand.u32 %v291, 8388607
      %v293 = vor.u32 %v292, 8388608
      %v294 = vsub.s32 0, %v293
      %v295 = vadd.s32 %v290, 1
      %vm296 = vcmp.gt.s32.totalorder %v295, 0
      %v297 = vsel %vm296, %v295, 0
      %v298 = vshrl.u32 %v297, 5
      %v299 = vand.u32 %v297, 31
      %v300 = vsub.s32 32, %v299
      %v301 = vshrl.u32 683565275, %v300
      %v302 = vshll.u32 683565275, %v299
      %v303 = vshrl.u32 2475754826, %v300
      %v304 = vor.u32 %v302, %v303
      %v305 = vshll.u32 2475754826, %v299
      %v306 = vshrl.u32 2131351028, %v300
      %v307 = vor.u32 %v305, %v306
      %v308 = vshll.u32 2131351028, %v299
      %v309 = vshrl.u32 2102212464, %v300
      %v310 = vor.u32 %v308, %v309
      %v311 = vshll.u32 2102212464, %v299
      %v312 = vshrl.u32 920167782, %v300
      %v313 = vor.u32 %v311, %v312
      %v314 = vshll.u32 920167782, %v299
      %v315 = vshrl.u32 1326507024, %v300
      %v316 = vor.u32 %v314, %v315
      %vm317 = vcmp.lt.s32.totalorder %v298, 1
      %vm318 = vcmp.lt.s32.totalorder %v298, 2
      %vm319 = vcmp.lt.s32.totalorder %v298, 3
      %vm320 = vcmp.lt.s32.totalorder %v298, 4
      %v321 = vsel %vm317, %v301, %v304
      %v322 = vsel %vm320, %v310, 2102212464
      %v323 = vsel %vm319, %v307, %v322
      %v324 = vsel %vm318, %v321, %v323
      %v325 = vsel %vm317, %v304, %v307
      %v326 = vsel %vm320, %v313, 920167782
      %v327 = vsel %vm319, %v310, %v326
      %v328 = vsel %vm318, %v325, %v327
      %v329 = vsel %vm317, %v307, %v310
      %v330 = vsel %vm320, %v316, 1326507024
      %v331 = vsel %vm319, %v313, %v330
      %v332 = vsel %vm318, %v329, %v331
      %v333 = vshll.u32 %v293, 8
      %v334 = vmul.u32.u64.compose %v333, %v332
      %v335 = vextract.low.u32 %v334
      %v336 = vextract.high.u32 %v334
      %v337 = vmul.u32.u64.compose %v333, %v328
      %v338 = vextract.low.u32 %v337
      %v339 = vextract.high.u32 %v337
      %v340 = vmul.u32 %v333, %v324
      %v341 = vadd.s32 %v336, %v338
      %vm342 = vc.u32 %v336, %v338
      %v343 = vadd.s32 %v339, 1
      %v344 = vsel %vm342, %v343, %v339
      %v345 = vadd.s32 %v340, %v344
      %v346 = vadd.s32 %v345, 536870912
      %v347 = vshrl.u32 %v346, 30
      %v348 = vshll.u32 %v347, 30
      %v349 = vsub.s32 %v345, %v348
      %vm350 = vcmp.lt.s32.totalorder %v349, 0
      %v351 = vsub.s32 0, %v349
      %v352 = vsel %vm350, %v351, %v349
      %v353 = vclz %v352
      %v354 = vsub.s32 %v353, 2
      %vm355 = vcmp.gt.s32.totalorder 0, %v354
      %v356 = vsel %vm355, 0, %v354
      %v357 = vsub.s32 32, %v356
      %v358 = vshll.u32 %v349, %v356
      %v359 = vshrl.u32 %v341, %v357
      %v360 = vor.u32 %v358, %v359
      %v361 = vsub.s32 4294967266, %v356
      %v362 = vadd.s32 %v361, 127
      %v363 = vshll.u32 %v362, 23
      %v364 = vor.u32 4788187, %v363
      %v365 = vand.u32 2147483647, %v364
      %v367 = vcvt.s32.f32 %v360
      %v368 = vmul.f32 %v367, %v365
      %v369 = vxor.u32 %v368, 2147483648
      %v370 = vsel %vm287, %v369, %v368
      %v371 = vsub.s32 4, %v347
      %v372 = vsel %vm287, %v371, %v347
      %v373 = vsel %vm286, %v269, %v370
      %v374 = vsel %vm286, 0, %v372
      %v375 = vcosq.f32.pop %v373
      %v376 = vsinq.f32.pop %v373
      %vm377 = vweird.f32 %v269
      %v378 = vand.u32 %v374, 3
      %vm379 = vcmp.lt.s32.totalorder %v378, 2
      %vm380 = vcmp.eq.s32.totalorder %v378, 0
      %v381 = vxor.u32 %v376, 2147483648
      %v382 = vsel %vm380, %v375, %v381
      %vm383 = vcmp.eq.s32.totalorder %v378, 2
      %v384 = vxor.u32 %v375, 2147483648
      %v385 = vsel %vm383, %v384, %v376
      %v386 = vsel %vm379, %v382, %v385
      %v387 = vsel %vm377, nan, %v386
      %v388 = vand.u32 2147483647, %v270
      %vm389 = vcmp.le.f32.partialorder %v388, 0.7853982
      %vm390 = vcmp.lt.s32.totalorder %v270, 0
      %v391 = vand.u32 %v270, 2139095040
      %v392 = vshrl.u32 %v391, 23
      %v393 = vsub.s32 %v392, 127
      %v394 = vand.u32 2147483647, %v270
      %v395 = vand.u32 %v394, 8388607
      %v396 = vor.u32 %v395, 8388608
      %v397 = vsub.s32 0, %v396
      %v398 = vadd.s32 %v393, 1
      %vm399 = vcmp.gt.s32.totalorder %v398, 0
      %v400 = vsel %vm399, %v398, 0
      %v401 = vshrl.u32 %v400, 5
      %v402 = vand.u32 %v400, 31
      %v403 = vsub.s32 32, %v402
      %v404 = vshrl.u32 683565275, %v403
      %v405 = vshll.u32 683565275, %v402
      %v406 = vshrl.u32 2475754826, %v403
      %v407 = vor.u32 %v405, %v406
      %v408 = vshll.u32 2475754826, %v402
      %v409 = vshrl.u32 2131351028, %v403
      %v410 = vor.u32 %v408, %v409
      %v411 = vshll.u32 2131351028, %v402
      %v412 = vshrl.u32 2102212464, %v403
      %v413 = vor.u32 %v411, %v412
      %v414 = vshll.u32 2102212464, %v402
      %v415 = vshrl.u32 920167782, %v403
      %v416 = vor.u32 %v414, %v415
      %v417 = vshll.u32 920167782, %v402
      %v418 = vshrl.u32 1326507024, %v403
      %v419 = vor.u32 %v417, %v418
      %vm420 = vcmp.lt.s32.totalorder %v401, 1
      %vm421 = vcmp.lt.s32.totalorder %v401, 2
      %vm422 = vcmp.lt.s32.totalorder %v401, 3
      %vm423 = vcmp.lt.s32.totalorder %v401, 4
      %v424 = vsel %vm420, %v404, %v407
      %v425 = vsel %vm423, %v413, 2102212464
      %v426 = vsel %vm422, %v410, %v425
      %v427 = vsel %vm421, %v424, %v426
      %v428 = vsel %vm420, %v407, %v410
      %v429 = vsel %vm423, %v416, 920167782
      %v430 = vsel %vm422, %v413, %v429
      %v431 = vsel %vm421, %v428, %v430
      %v432 = vsel %vm420, %v410, %v413
      %v433 = vsel %vm423, %v419, 1326507024
      %v434 = vsel %vm422, %v416, %v433
      %v435 = vsel %vm421, %v432, %v434
      %v436 = vshll.u32 %v396, 8
      %v437 = vmul.u32.u64.compose %v436, %v435
      %v438 = vextract.low.u32 %v437
      %v439 = vextract.high.u32 %v437
      %v440 = vmul.u32.u64.compose %v436, %v431
      %v441 = vextract.low.u32 %v440
      %v442 = vextract.high.u32 %v440
      %v443 = vmul.u32 %v436, %v427
      %v444 = vadd.s32 %v439, %v441
      %vm445 = vc.u32 %v439, %v441
      %v446 = vadd.s32 %v442, 1
      %v447 = vsel %vm445, %v446, %v442
      %v448 = vadd.s32 %v443, %v447
      %v449 = vadd.s32 %v448, 536870912
      %v450 = vshrl.u32 %v449, 30
      %v451 = vshll.u32 %v450, 30
      %v452 = vsub.s32 %v448, %v451
      %vm453 = vcmp.lt.s32.totalorder %v452, 0
      %v454 = vsub.s32 0, %v452
      %v455 = vsel %vm453, %v454, %v452
      %v456 = vclz %v455
      %v457 = vsub.s32 %v456, 2
      %vm458 = vcmp.gt.s32.totalorder 0, %v457
      %v459 = vsel %vm458, 0, %v457
      %v460 = vsub.s32 32, %v459
      %v461 = vshll.u32 %v452, %v459
      %v462 = vshrl.u32 %v444, %v460
      %v463 = vor.u32 %v461, %v462
      %v464 = vsub.s32 4294967266, %v459
      %v465 = vadd.s32 %v464, 127
      %v466 = vshll.u32 %v465, 23
      %v467 = vor.u32 4788187, %v466
      %v468 = vand.u32 2147483647, %v467
      %v470 = vcvt.s32.f32 %v463
      %v471 = vmul.f32 %v470, %v468
      %v472 = vxor.u32 %v471, 2147483648
      %v473 = vsel %vm390, %v472, %v471
      %v474 = vsub.s32 4, %v450
      %v475 = vsel %vm390, %v474, %v450
      %v476 = vsel %vm389, %v270, %v473
      %v477 = vsel %vm389, 0, %v475
      %v478 = vcosq.f32.pop %v476
      %v479 = vsinq.f32.pop %v476
      %vm480 = vweird.f32 %v270
      %v481 = vand.u32 %v477, 3
      %vm482 = vcmp.lt.s32.totalorder %v481, 2
      %vm483 = vcmp.eq.s32.totalorder %v481, 0
      %v484 = vxor.u32 %v479, 2147483648
      %v485 = vsel %vm483, %v478, %v484
      %vm486 = vcmp.eq.s32.totalorder %v481, 2
      %v487 = vxor.u32 %v478, 2147483648
      %v488 = vsel %vm486, %v487, %v479
      %v489 = vsel %vm482, %v485, %v488
      %v490 = vsel %vm480, nan, %v489
      %v491 = vand.u32 2147483647, %v271
      %vm492 = vcmp.le.f32.partialorder %v491, 0.7853982
      %vm493 = vcmp.lt.s32.totalorder %v271, 0
      %v494 = vand.u32 %v271, 2139095040
      %v495 = vshrl.u32 %v494, 23
      %v496 = vsub.s32 %v495, 127
      %v497 = vand.u32 2147483647, %v271
      %v498 = vand.u32 %v497, 8388607
      %v499 = vor.u32 %v498, 8388608
      %v500 = vsub.s32 0, %v499
      %v501 = vadd.s32 %v496, 1
      %vm502 = vcmp.gt.s32.totalorder %v501, 0
      %v503 = vsel %vm502, %v501, 0
      %v504 = vshrl.u32 %v503, 5
      %v505 = vand.u32 %v503, 31
      %v506 = vsub.s32 32, %v505
      %v507 = vshrl.u32 683565275, %v506
      %v508 = vshll.u32 683565275, %v505
      %v509 = vshrl.u32 2475754826, %v506
      %v510 = vor.u32 %v508, %v509
      %v511 = vshll.u32 2475754826, %v505
      %v512 = vshrl.u32 2131351028, %v506
      %v513 = vor.u32 %v511, %v512
      %v514 = vshll.u32 2131351028, %v505
      %v515 = vshrl.u32 2102212464, %v506
      %v516 = vor.u32 %v514, %v515
      %v517 = vshll.u32 2102212464, %v505
      %v518 = vshrl.u32 920167782, %v506
      %v519 = vor.u32 %v517, %v518
      %v520 = vshll.u32 920167782, %v505
      %v521 = vshrl.u32 1326507024, %v506
      %v522 = vor.u32 %v520, %v521
      %vm523 = vcmp.lt.s32.totalorder %v504, 1
      %vm524 = vcmp.lt.s32.totalorder %v504, 2
      %vm525 = vcmp.lt.s32.totalorder %v504, 3
      %vm526 = vcmp.lt.s32.totalorder %v504, 4
      %v527 = vsel %vm523, %v507, %v510
      %v528 = vsel %vm526, %v516, 2102212464
      %v529 = vsel %vm525, %v513, %v528
      %v530 = vsel %vm524, %v527, %v529
      %v531 = vsel %vm523, %v510, %v513
      %v532 = vsel %vm526, %v519, 920167782
      %v533 = vsel %vm525, %v516, %v532
      %v534 = vsel %vm524, %v531, %v533
      %v535 = vsel %vm523, %v513, %v516
      %v536 = vsel %vm526, %v522, 1326507024
      %v537 = vsel %vm525, %v519, %v536
      %v538 = vsel %vm524, %v535, %v537
      %v539 = vshll.u32 %v499, 8
      %v540 = vmul.u32.u64.compose %v539, %v538
      %v541 = vextract.low.u32 %v540
      %v542 = vextract.high.u32 %v540
      %v543 = vmul.u32.u64.compose %v539, %v534
      %v544 = vextract.low.u32 %v543
      %v545 = vextract.high.u32 %v543
      %v546 = vmul.u32 %v539, %v530
      %v547 = vadd.s32 %v542, %v544
      %vm548 = vc.u32 %v542, %v544
      %v549 = vadd.s32 %v545, 1
      %v550 = vsel %vm548, %v549, %v545
      %v551 = vadd.s32 %v546, %v550
      %v552 = vadd.s32 %v551, 536870912
      %v553 = vshrl.u32 %v552, 30
      %v554 = vshll.u32 %v553, 30
      %v555 = vsub.s32 %v551, %v554
      %vm556 = vcmp.lt.s32.totalorder %v555, 0
      %v557 = vsub.s32 0, %v555
      %v558 = vsel %vm556, %v557, %v555
      %v559 = vclz %v558
      %v560 = vsub.s32 %v559, 2
      %vm561 = vcmp.gt.s32.totalorder 0, %v560
      %v562 = vsel %vm561, 0, %v560
      %v563 = vsub.s32 32, %v562
      %v564 = vshll.u32 %v555, %v562
      %v565 = vshrl.u32 %v547, %v563
      %v566 = vor.u32 %v564, %v565
      %v567 = vsub.s32 4294967266, %v562
      %v568 = vadd.s32 %v567, 127
      %v569 = vshll.u32 %v568, 23
      %v570 = vor.u32 4788187, %v569
      %v571 = vand.u32 2147483647, %v570
      %v573 = vcvt.s32.f32 %v566
      %v574 = vmul.f32 %v573, %v571
      %v575 = vxor.u32 %v574, 2147483648
      %v576 = vsel %vm493, %v575, %v574
      %v577 = vsub.s32 4, %v553
      %v578 = vsel %vm493, %v577, %v553
      %v579 = vsel %vm492, %v271, %v576
      %v580 = vsel %vm492, 0, %v578
      %v581 = vcosq.f32.pop %v579
      %v582 = vsinq.f32.pop %v579
      %vm583 = vweird.f32 %v271
      %v584 = vand.u32 %v580, 3
      %vm585 = vcmp.lt.s32.totalorder %v584, 2
      %vm586 = vcmp.eq.s32.totalorder %v584, 0
      %v587 = vxor.u32 %v582, 2147483648
      %v588 = vsel %vm586, %v581, %v587
      %vm589 = vcmp.eq.s32.totalorder %v584, 2
      %v590 = vxor.u32 %v581, 2147483648
      %v591 = vsel %vm589, %v590, %v582
      %v592 = vsel %vm585, %v588, %v591
      %v593 = vsel %vm583, nan, %v592
      %v594 = vand.u32 2147483647, %v272
      %vm595 = vcmp.le.f32.partialorder %v594, 0.7853982
      %vm596 = vcmp.lt.s32.totalorder %v272, 0
      %v597 = vand.u32 %v272, 2139095040
      %v598 = vshrl.u32 %v597, 23
      %v599 = vsub.s32 %v598, 127
      %v600 = vand.u32 2147483647, %v272
      %v601 = vand.u32 %v600, 8388607
      %v602 = vor.u32 %v601, 8388608
      %v603 = vsub.s32 0, %v602
      %v604 = vadd.s32 %v599, 1
      %vm605 = vcmp.gt.s32.totalorder %v604, 0
      %v606 = vsel %vm605, %v604, 0
      %v607 = vshrl.u32 %v606, 5
      %v608 = vand.u32 %v606, 31
      %v609 = vsub.s32 32, %v608
      %v610 = vshrl.u32 683565275, %v609
      %v611 = vshll.u32 683565275, %v608
      %v612 = vshrl.u32 2475754826, %v609
      %v613 = vor.u32 %v611, %v612
      %v614 = vshll.u32 2475754826, %v608
      %v615 = vshrl.u32 2131351028, %v609
      %v616 = vor.u32 %v614, %v615
      %v617 = vshll.u32 2131351028, %v608
      %v618 = vshrl.u32 2102212464, %v609
      %v619 = vor.u32 %v617, %v618
      %v620 = vshll.u32 2102212464, %v608
      %v621 = vshrl.u32 920167782, %v609
      %v622 = vor.u32 %v620, %v621
      %v623 = vshll.u32 920167782, %v608
      %v624 = vshrl.u32 1326507024, %v609
      %v625 = vor.u32 %v623, %v624
      %vm626 = vcmp.lt.s32.totalorder %v607, 1
      %vm627 = vcmp.lt.s32.totalorder %v607, 2
      %vm628 = vcmp.lt.s32.totalorder %v607, 3
      %vm629 = vcmp.lt.s32.totalorder %v607, 4
      %v630 = vsel %vm626, %v610, %v613
      %v631 = vsel %vm629, %v619, 2102212464
      %v632 = vsel %vm628, %v616, %v631
      %v633 = vsel %vm627, %v630, %v632
      %v634 = vsel %vm626, %v613, %v616
      %v635 = vsel %vm629, %v622, 920167782
      %v636 = vsel %vm628, %v619, %v635
      %v637 = vsel %vm627, %v634, %v636
      %v638 = vsel %vm626, %v616, %v619
      %v639 = vsel %vm629, %v625, 1326507024
      %v640 = vsel %vm628, %v622, %v639
      %v641 = vsel %vm627, %v638, %v640
      %v642 = vshll.u32 %v602, 8
      %v643 = vmul.u32.u64.compose %v642, %v641
      %v644 = vextract.low.u32 %v643
      %v645 = vextract.high.u32 %v643
      %v646 = vmul.u32.u64.compose %v642, %v637
      %v647 = vextract.low.u32 %v646
      %v648 = vextract.high.u32 %v646
      %v649 = vmul.u32 %v642, %v633
      %v650 = vadd.s32 %v645, %v647
      %vm651 = vc.u32 %v645, %v647
      %v652 = vadd.s32 %v648, 1
      %v653 = vsel %vm651, %v652, %v648
      %v654 = vadd.s32 %v649, %v653
      %v655 = vadd.s32 %v654, 536870912
      %v656 = vshrl.u32 %v655, 30
      %v657 = vshll.u32 %v656, 30
      %v658 = vsub.s32 %v654, %v657
      %vm659 = vcmp.lt.s32.totalorder %v658, 0
      %v660 = vsub.s32 0, %v658
      %v661 = vsel %vm659, %v660, %v658
      %v662 = vclz %v661
      %v663 = vsub.s32 %v662, 2
      %vm664 = vcmp.gt.s32.totalorder 0, %v663
      %v665 = vsel %vm664, 0, %v663
      %v666 = vsub.s32 32, %v665
      %v667 = vshll.u32 %v658, %v665
      %v668 = vshrl.u32 %v650, %v666
      %v669 = vor.u32 %v667, %v668
      %v670 = vsub.s32 4294967266, %v665
      %v671 = vadd.s32 %v670, 127
      %v672 = vshll.u32 %v671, 23
      %v673 = vor.u32 4788187, %v672
      %v674 = vand.u32 2147483647, %v673
      %v676 = vcvt.s32.f32 %v669
      %v677 = vmul.f32 %v676, %v674
      %v678 = vxor.u32 %v677, 2147483648
      %v679 = vsel %vm596, %v678, %v677
      %v680 = vsub.s32 4, %v656
      %v681 = vsel %vm596, %v680, %v656
      %v682 = vsel %vm595, %v272, %v679
      %v683 = vsel %vm595, 0, %v681
      %v684 = vcosq.f32.pop %v682
      %v685 = vsinq.f32.pop %v682
      %vm686 = vweird.f32 %v272
      %v687 = vand.u32 %v683, 3
      %vm688 = vcmp.lt.s32.totalorder %v687, 2
      %vm689 = vcmp.eq.s32.totalorder %v687, 0
      %v690 = vxor.u32 %v685, 2147483648
      %v691 = vsel %vm689, %v684, %v690
      %vm692 = vcmp.eq.s32.totalorder %v687, 2
      %v693 = vxor.u32 %v684, 2147483648
      %v694 = vsel %vm692, %v693, %v685
      %v695 = vsel %vm688, %v691, %v694
      %v696 = vsel %vm686, nan, %v695
      %v697 = vand.u32 2147483647, %v273
      %vm698 = vcmp.le.f32.partialorder %v697, 0.7853982
      %vm699 = vcmp.lt.s32.totalorder %v273, 0
      %v700 = vand.u32 %v273, 2139095040
      %v701 = vshrl.u32 %v700, 23
      %v702 = vsub.s32 %v701, 127
      %v703 = vand.u32 2147483647, %v273
      %v704 = vand.u32 %v703, 8388607
      %v705 = vor.u32 %v704, 8388608
      %v706 = vsub.s32 0, %v705
      %v707 = vadd.s32 %v702, 1
      %vm708 = vcmp.gt.s32.totalorder %v707, 0
      %v709 = vsel %vm708, %v707, 0
      %v710 = vshrl.u32 %v709, 5
      %v711 = vand.u32 %v709, 31
      %v712 = vsub.s32 32, %v711
      %v713 = vshrl.u32 683565275, %v712
      %v714 = vshll.u32 683565275, %v711
      %v715 = vshrl.u32 2475754826, %v712
      %v716 = vor.u32 %v714, %v715
      %v717 = vshll.u32 2475754826, %v711
      %v718 = vshrl.u32 2131351028, %v712
      %v719 = vor.u32 %v717, %v718
      %v720 = vshll.u32 2131351028, %v711
      %v721 = vshrl.u32 2102212464, %v712
      %v722 = vor.u32 %v720, %v721
      %v723 = vshll.u32 2102212464, %v711
      %v724 = vshrl.u32 920167782, %v712
      %v725 = vor.u32 %v723, %v724
      %v726 = vshll.u32 920167782, %v711
      %v727 = vshrl.u32 1326507024, %v712
      %v728 = vor.u32 %v726, %v727
      %vm729 = vcmp.lt.s32.totalorder %v710, 1
      %vm730 = vcmp.lt.s32.totalorder %v710, 2
      %vm731 = vcmp.lt.s32.totalorder %v710, 3
      %vm732 = vcmp.lt.s32.totalorder %v710, 4
      %v733 = vsel %vm729, %v713, %v716
      %v734 = vsel %vm732, %v722, 2102212464
      %v735 = vsel %vm731, %v719, %v734
      %v736 = vsel %vm730, %v733, %v735
      %v737 = vsel %vm729, %v716, %v719
      %v738 = vsel %vm732, %v725, 920167782
      %v739 = vsel %vm731, %v722, %v738
      %v740 = vsel %vm730, %v737, %v739
      %v741 = vsel %vm729, %v719, %v722
      %v742 = vsel %vm732, %v728, 1326507024
      %v743 = vsel %vm731, %v725, %v742
      %v744 = vsel %vm730, %v741, %v743
      %v745 = vshll.u32 %v705, 8
      %v746 = vmul.u32.u64.compose %v745, %v744
      %v747 = vextract.low.u32 %v746
      %v748 = vextract.high.u32 %v746
      %v749 = vmul.u32.u64.compose %v745, %v740
      %v750 = vextract.low.u32 %v749
      %v751 = vextract.high.u32 %v749
      %v752 = vmul.u32 %v745, %v736
      %v753 = vadd.s32 %v748, %v750
      %vm754 = vc.u32 %v748, %v750
      %v755 = vadd.s32 %v751, 1
      %v756 = vsel %vm754, %v755, %v751
      %v757 = vadd.s32 %v752, %v756
      %v758 = vadd.s32 %v757, 536870912
      %v759 = vshrl.u32 %v758, 30
      %v760 = vshll.u32 %v759, 30
      %v761 = vsub.s32 %v757, %v760
      %vm762 = vcmp.lt.s32.totalorder %v761, 0
      %v763 = vsub.s32 0, %v761
      %v764 = vsel %vm762, %v763, %v761
      %v765 = vclz %v764
      %v766 = vsub.s32 %v765, 2
      %vm767 = vcmp.gt.s32.totalorder 0, %v766
      %v768 = vsel %vm767, 0, %v766
      %v769 = vsub.s32 32, %v768
      %v770 = vshll.u32 %v761, %v768
      %v771 = vshrl.u32 %v753, %v769
      %v772 = vor.u32 %v770, %v771
      %v773 = vsub.s32 4294967266, %v768
      %v774 = vadd.s32 %v773, 127
      %v775 = vshll.u32 %v774, 23
      %v776 = vor.u32 4788187, %v775
      %v777 = vand.u32 2147483647, %v776
      %v779 = vcvt.s32.f32 %v772
      %v780 = vmul.f32 %v779, %v777
      %v781 = vxor.u32 %v780, 2147483648
      %v782 = vsel %vm699, %v781, %v780
      %v783 = vsub.s32 4, %v759
      %v784 = vsel %vm699, %v783, %v759
      %v785 = vsel %vm698, %v273, %v782
      %v786 = vsel %vm698, 0, %v784
      %v787 = vcosq.f32.pop %v785
      %v788 = vsinq.f32.pop %v785
      %vm789 = vweird.f32 %v273
      %v790 = vand.u32 %v786, 3
      %vm791 = vcmp.lt.s32.totalorder %v790, 2
      %vm792 = vcmp.eq.s32.totalorder %v790, 0
      %v793 = vxor.u32 %v788, 2147483648
      %v794 = vsel %vm792, %v787, %v793
      %vm795 = vcmp.eq.s32.totalorder %v790, 2
      %v796 = vxor.u32 %v787, 2147483648
      %v797 = vsel %vm795, %v796, %v788
      %v798 = vsel %vm791, %v794, %v797
      %v799 = vsel %vm789, nan, %v798
      %v800 = vand.u32 2147483647, %v274
      %vm801 = vcmp.le.f32.partialorder %v800, 0.7853982
      %vm802 = vcmp.lt.s32.totalorder %v274, 0
      %v803 = vand.u32 %v274, 2139095040
      %v804 = vshrl.u32 %v803, 23
      %v805 = vsub.s32 %v804, 127
      %v806 = vand.u32 2147483647, %v274
      %v807 = vand.u32 %v806, 8388607
      %v808 = vor.u32 %v807, 8388608
      %v809 = vsub.s32 0, %v808
      %v810 = vadd.s32 %v805, 1
      %vm811 = vcmp.gt.s32.totalorder %v810, 0
      %v812 = vsel %vm811, %v810, 0
      %v813 = vshrl.u32 %v812, 5
      %v814 = vand.u32 %v812, 31
      %v815 = vsub.s32 32, %v814
      %v816 = vshrl.u32 683565275, %v815
      %v817 = vshll.u32 683565275, %v814
      %v818 = vshrl.u32 2475754826, %v815
      %v819 = vor.u32 %v817, %v818
      %v820 = vshll.u32 2475754826, %v814
      %v821 = vshrl.u32 2131351028, %v815
      %v822 = vor.u32 %v820, %v821
      %v823 = vshll.u32 2131351028, %v814
      %v824 = vshrl.u32 2102212464, %v815
      %v825 = vor.u32 %v823, %v824
      %v826 = vshll.u32 2102212464, %v814
      %v827 = vshrl.u32 920167782, %v815
      %v828 = vor.u32 %v826, %v827
      %v829 = vshll.u32 920167782, %v814
      %v830 = vshrl.u32 1326507024, %v815
      %v831 = vor.u32 %v829, %v830
      %vm832 = vcmp.lt.s32.totalorder %v813, 1
      %vm833 = vcmp.lt.s32.totalorder %v813, 2
      %vm834 = vcmp.lt.s32.totalorder %v813, 3
      %vm835 = vcmp.lt.s32.totalorder %v813, 4
      %v836 = vsel %vm832, %v816, %v819
      %v837 = vsel %vm835, %v825, 2102212464
      %v838 = vsel %vm834, %v822, %v837
      %v839 = vsel %vm833, %v836, %v838
      %v840 = vsel %vm832, %v819, %v822
      %v841 = vsel %vm835, %v828, 920167782
      %v842 = vsel %vm834, %v825, %v841
      %v843 = vsel %vm833, %v840, %v842
      %v844 = vsel %vm832, %v822, %v825
      %v845 = vsel %vm835, %v831, 1326507024
      %v846 = vsel %vm834, %v828, %v845
      %v847 = vsel %vm833, %v844, %v846
      %v848 = vshll.u32 %v808, 8
      %v849 = vmul.u32.u64.compose %v848, %v847
      %v850 = vextract.low.u32 %v849
      %v851 = vextract.high.u32 %v849
      %v852 = vmul.u32.u64.compose %v848, %v843
      %v853 = vextract.low.u32 %v852
      %v854 = vextract.high.u32 %v852
      %v855 = vmul.u32 %v848, %v839
      %v856 = vadd.s32 %v851, %v853
      %vm857 = vc.u32 %v851, %v853
      %v858 = vadd.s32 %v854, 1
      %v859 = vsel %vm857, %v858, %v854
      %v860 = vadd.s32 %v855, %v859
      %v861 = vadd.s32 %v860, 536870912
      %v862 = vshrl.u32 %v861, 30
      %v863 = vshll.u32 %v862, 30
      %v864 = vsub.s32 %v860, %v863
      %vm865 = vcmp.lt.s32.totalorder %v864, 0
      %v866 = vsub.s32 0, %v864
      %v867 = vsel %vm865, %v866, %v864
      %v868 = vclz %v867
      %v869 = vsub.s32 %v868, 2
      %vm870 = vcmp.gt.s32.totalorder 0, %v869
      %v871 = vsel %vm870, 0, %v869
      %v872 = vsub.s32 32, %v871
      %v873 = vshll.u32 %v864, %v871
      %v874 = vshrl.u32 %v856, %v872
      %v875 = vor.u32 %v873, %v874
      %v876 = vsub.s32 4294967266, %v871
      %v877 = vadd.s32 %v876, 127
      %v878 = vshll.u32 %v877, 23
      %v879 = vor.u32 4788187, %v878
      %v880 = vand.u32 2147483647, %v879
      %v882 = vcvt.s32.f32 %v875
      %v883 = vmul.f32 %v882, %v880
      %v884 = vxor.u32 %v883, 2147483648
      %v885 = vsel %vm802, %v884, %v883
      %v886 = vsub.s32 4, %v862
      %v887 = vsel %vm802, %v886, %v862
      %v888 = vsel %vm801, %v274, %v885
      %v889 = vsel %vm801, 0, %v887
      %v890 = vcosq.f32.pop %v888
      %v891 = vsinq.f32.pop %v888
      %vm892 = vweird.f32 %v274
      %v893 = vand.u32 %v889, 3
      %vm894 = vcmp.lt.s32.totalorder %v893, 2
      %vm895 = vcmp.eq.s32.totalorder %v893, 0
      %v896 = vxor.u32 %v891, 2147483648
      %v897 = vsel %vm895, %v890, %v896
      %vm898 = vcmp.eq.s32.totalorder %v893, 2
      %v899 = vxor.u32 %v890, 2147483648
      %v900 = vsel %vm898, %v899, %v891
      %v901 = vsel %vm894, %v897, %v900
      %v902 = vsel %vm892, nan, %v901
      %v903 = vand.u32 2147483647, %v275
      %vm904 = vcmp.le.f32.partialorder %v903, 0.7853982
      %vm905 = vcmp.lt.s32.totalorder %v275, 0
      %v906 = vand.u32 %v275, 2139095040
      %v907 = vshrl.u32 %v906, 23
      %v908 = vsub.s32 %v907, 127
      %v909 = vand.u32 2147483647, %v275
      %v910 = vand.u32 %v909, 8388607
      %v911 = vor.u32 %v910, 8388608
      %v912 = vsub.s32 0, %v911
      %v913 = vadd.s32 %v908, 1
      %vm914 = vcmp.gt.s32.totalorder %v913, 0
      %v915 = vsel %vm914, %v913, 0
      %v916 = vshrl.u32 %v915, 5
      %v917 = vand.u32 %v915, 31
      %v918 = vsub.s32 32, %v917
      %v919 = vshrl.u32 683565275, %v918
      %v920 = vshll.u32 683565275, %v917
      %v921 = vshrl.u32 2475754826, %v918
      %v922 = vor.u32 %v920, %v921
      %v923 = vshll.u32 2475754826, %v917
      %v924 = vshrl.u32 2131351028, %v918
      %v925 = vor.u32 %v923, %v924
      %v926 = vshll.u32 2131351028, %v917
      %v927 = vshrl.u32 2102212464, %v918
      %v928 = vor.u32 %v926, %v927
      %v929 = vshll.u32 2102212464, %v917
      %v930 = vshrl.u32 920167782, %v918
      %v931 = vor.u32 %v929, %v930
      %v932 = vshll.u32 920167782, %v917
      %v933 = vshrl.u32 1326507024, %v918
      %v934 = vor.u32 %v932, %v933
      %vm935 = vcmp.lt.s32.totalorder %v916, 1
      %vm936 = vcmp.lt.s32.totalorder %v916, 2
      %vm937 = vcmp.lt.s32.totalorder %v916, 3
      %vm938 = vcmp.lt.s32.totalorder %v916, 4
      %v939 = vsel %vm935, %v919, %v922
      %v940 = vsel %vm938, %v928, 2102212464
      %v941 = vsel %vm937, %v925, %v940
      %v942 = vsel %vm936, %v939, %v941
      %v943 = vsel %vm935, %v922, %v925
      %v944 = vsel %vm938, %v931, 920167782
      %v945 = vsel %vm937, %v928, %v944
      %v946 = vsel %vm936, %v943, %v945
      %v947 = vsel %vm935, %v925, %v928
      %v948 = vsel %vm938, %v934, 1326507024
      %v949 = vsel %vm937, %v931, %v948
      %v950 = vsel %vm936, %v947, %v949
      %v951 = vshll.u32 %v911, 8
      %v952 = vmul.u32.u64.compose %v951, %v950
      %v953 = vextract.low.u32 %v952
      %v954 = vextract.high.u32 %v952
      %v955 = vmul.u32.u64.compose %v951, %v946
      %v956 = vextract.low.u32 %v955
      %v957 = vextract.high.u32 %v955
      %v958 = vmul.u32 %v951, %v942
      %v959 = vadd.s32 %v954, %v956
      %vm960 = vc.u32 %v954, %v956
      %v961 = vadd.s32 %v957, 1
      %v962 = vsel %vm960, %v961, %v957
      %v963 = vadd.s32 %v958, %v962
      %v964 = vadd.s32 %v963, 536870912
      %v965 = vshrl.u32 %v964, 30
      %v966 = vshll.u32 %v965, 30
      %v967 = vsub.s32 %v963, %v966
      %vm968 = vcmp.lt.s32.totalorder %v967, 0
      %v969 = vsub.s32 0, %v967
      %v970 = vsel %vm968, %v969, %v967
      %v971 = vclz %v970
      %v972 = vsub.s32 %v971, 2
      %vm973 = vcmp.gt.s32.totalorder 0, %v972
      %v974 = vsel %vm973, 0, %v972
      %v975 = vsub.s32 32, %v974
      %v976 = vshll.u32 %v967, %v974
      %v977 = vshrl.u32 %v959, %v975
      %v978 = vor.u32 %v976, %v977
      %v979 = vsub.s32 4294967266, %v974
      %v980 = vadd.s32 %v979, 127
      %v981 = vshll.u32 %v980, 23
      %v982 = vor.u32 4788187, %v981
      %v983 = vand.u32 2147483647, %v982
      %v985 = vcvt.s32.f32 %v978
      %v986 = vmul.f32 %v985, %v983
      %v987 = vxor.u32 %v986, 2147483648
      %v988 = vsel %vm905, %v987, %v986
      %v989 = vsub.s32 4, %v965
      %v990 = vsel %vm905, %v989, %v965
      %v991 = vsel %vm904, %v275, %v988
      %v992 = vsel %vm904, 0, %v990
      %v993 = vcosq.f32.pop %v991
      %v994 = vsinq.f32.pop %v991
      %vm995 = vweird.f32 %v275
      %v996 = vand.u32 %v992, 3
      %vm997 = vcmp.lt.s32.totalorder %v996, 2
      %vm998 = vcmp.eq.s32.totalorder %v996, 0
      %v999 = vxor.u32 %v994, 2147483648
      %v1000 = vsel %vm998, %v993, %v999
      %vm1001 = vcmp.eq.s32.totalorder %v996, 2
      %v1002 = vxor.u32 %v993, 2147483648
      %v1003 = vsel %vm1001, %v1002, %v994
      %v1004 = vsel %vm997, %v1000, %v1003
      %v1005 = vsel %vm995, nan, %v1004
      %v1006 = vand.u32 2147483647, %v276
      %vm1007 = vcmp.le.f32.partialorder %v1006, 0.7853982
      %vm1008 = vcmp.lt.s32.totalorder %v276, 0
      %v1009 = vand.u32 %v276, 2139095040
      %v1010 = vshrl.u32 %v1009, 23
      %v1011 = vsub.s32 %v1010, 127
      %v1012 = vand.u32 2147483647, %v276
      %v1013 = vand.u32 %v1012, 8388607
      %v1014 = vor.u32 %v1013, 8388608
      %v1015 = vsub.s32 0, %v1014
      %v1016 = vadd.s32 %v1011, 1
      %vm1017 = vcmp.gt.s32.totalorder %v1016, 0
      %v1018 = vsel %vm1017, %v1016, 0
      %v1019 = vshrl.u32 %v1018, 5
      %v1020 = vand.u32 %v1018, 31
      %v1021 = vsub.s32 32, %v1020
      %v1022 = vshrl.u32 683565275, %v1021
      %v1023 = vshll.u32 683565275, %v1020
      %v1024 = vshrl.u32 2475754826, %v1021
      %v1025 = vor.u32 %v1023, %v1024
      %v1026 = vshll.u32 2475754826, %v1020
      %v1027 = vshrl.u32 2131351028, %v1021
      %v1028 = vor.u32 %v1026, %v1027
      %v1029 = vshll.u32 2131351028, %v1020
      %v1030 = vshrl.u32 2102212464, %v1021
      %v1031 = vor.u32 %v1029, %v1030
      %v1032 = vshll.u32 2102212464, %v1020
      %v1033 = vshrl.u32 920167782, %v1021
      %v1034 = vor.u32 %v1032, %v1033
      %v1035 = vshll.u32 920167782, %v1020
      %v1036 = vshrl.u32 1326507024, %v1021
      %v1037 = vor.u32 %v1035, %v1036
      %vm1038 = vcmp.lt.s32.totalorder %v1019, 1
      %vm1039 = vcmp.lt.s32.totalorder %v1019, 2
      %vm1040 = vcmp.lt.s32.totalorder %v1019, 3
      %vm1041 = vcmp.lt.s32.totalorder %v1019, 4
      %v1042 = vsel %vm1038, %v1022, %v1025
      %v1043 = vsel %vm1041, %v1031, 2102212464
      %v1044 = vsel %vm1040, %v1028, %v1043
      %v1045 = vsel %vm1039, %v1042, %v1044
      %v1046 = vsel %vm1038, %v1025, %v1028
      %v1047 = vsel %vm1041, %v1034, 920167782
      %v1048 = vsel %vm1040, %v1031, %v1047
      %v1049 = vsel %vm1039, %v1046, %v1048
      %v1050 = vsel %vm1038, %v1028, %v1031
      %v1051 = vsel %vm1041, %v1037, 1326507024
      %v1052 = vsel %vm1040, %v1034, %v1051
      %v1053 = vsel %vm1039, %v1050, %v1052
      %v1054 = vshll.u32 %v1014, 8
      %v1055 = vmul.u32.u64.compose %v1054, %v1053
      %v1056 = vextract.low.u32 %v1055
      %v1057 = vextract.high.u32 %v1055
      %v1058 = vmul.u32.u64.compose %v1054, %v1049
      %v1059 = vextract.low.u32 %v1058
      %v1060 = vextract.high.u32 %v1058
      %v1061 = vmul.u32 %v1054, %v1045
      %v1062 = vadd.s32 %v1057, %v1059
      %vm1063 = vc.u32 %v1057, %v1059
      %v1064 = vadd.s32 %v1060, 1
      %v1065 = vsel %vm1063, %v1064, %v1060
      %v1066 = vadd.s32 %v1061, %v1065
      %v1067 = vadd.s32 %v1066, 536870912
      %v1068 = vshrl.u32 %v1067, 30
      %v1069 = vshll.u32 %v1068, 30
      %v1070 = vsub.s32 %v1066, %v1069
      %vm1071 = vcmp.lt.s32.totalorder %v1070, 0
      %v1072 = vsub.s32 0, %v1070
      %v1073 = vsel %vm1071, %v1072, %v1070
      %v1074 = vclz %v1073
      %v1075 = vsub.s32 %v1074, 2
      %vm1076 = vcmp.gt.s32.totalorder 0, %v1075
      %v1077 = vsel %vm1076, 0, %v1075
      %v1078 = vsub.s32 32, %v1077
      %v1079 = vshll.u32 %v1070, %v1077
      %v1080 = vshrl.u32 %v1062, %v1078
      %v1081 = vor.u32 %v1079, %v1080
      %v1082 = vsub.s32 4294967266, %v1077
      %v1083 = vadd.s32 %v1082, 127
      %v1084 = vshll.u32 %v1083, 23
      %v1085 = vor.u32 4788187, %v1084
      %v1086 = vand.u32 2147483647, %v1085
      %v1088 = vcvt.s32.f32 %v1081
      %v1089 = vmul.f32 %v1088, %v1086
      %v1090 = vxor.u32 %v1089, 2147483648
      %v1091 = vsel %vm1008, %v1090, %v1089
      %v1092 = vsub.s32 4, %v1068
      %v1093 = vsel %vm1008, %v1092, %v1068
      %v1094 = vsel %vm1007, %v276, %v1091
      %v1095 = vsel %vm1007, 0, %v1093
      %v1096 = vcosq.f32.pop %v1094
      %v1097 = vsinq.f32.pop %v1094
      %vm1098 = vweird.f32 %v276
      %v1099 = vand.u32 %v1095, 3
      %vm1100 = vcmp.lt.s32.totalorder %v1099, 2
      %vm1101 = vcmp.eq.s32.totalorder %v1099, 0
      %v1102 = vxor.u32 %v1097, 2147483648
      %v1103 = vsel %vm1101, %v1096, %v1102
      %vm1104 = vcmp.eq.s32.totalorder %v1099, 2
      %v1105 = vxor.u32 %v1096, 2147483648
      %v1106 = vsel %vm1104, %v1105, %v1097
      %v1107 = vsel %vm1100, %v1103, %v1106
      %v1108 = vsel %vm1098, nan, %v1107
      %v1109 = vand.u32 2147483647, %v277
      %vm1110 = vcmp.le.f32.partialorder %v1109, 0.7853982
      %vm1111 = vcmp.lt.s32.totalorder %v277, 0
      %v1112 = vand.u32 %v277, 2139095040
      %v1113 = vshrl.u32 %v1112, 23
      %v1114 = vsub.s32 %v1113, 127
      %v1115 = vand.u32 2147483647, %v277
      %v1116 = vand.u32 %v1115, 8388607
      %v1117 = vor.u32 %v1116, 8388608
      %v1118 = vsub.s32 0, %v1117
      %v1119 = vadd.s32 %v1114, 1
      %vm1120 = vcmp.gt.s32.totalorder %v1119, 0
      %v1121 = vsel %vm1120, %v1119, 0
      %v1122 = vshrl.u32 %v1121, 5
      %v1123 = vand.u32 %v1121, 31
      %v1124 = vsub.s32 32, %v1123
      %v1125 = vshrl.u32 683565275, %v1124
      %v1126 = vshll.u32 683565275, %v1123
      %v1127 = vshrl.u32 2475754826, %v1124
      %v1128 = vor.u32 %v1126, %v1127
      %v1129 = vshll.u32 2475754826, %v1123
      %v1130 = vshrl.u32 2131351028, %v1124
      %v1131 = vor.u32 %v1129, %v1130
      %v1132 = vshll.u32 2131351028, %v1123
      %v1133 = vshrl.u32 2102212464, %v1124
      %v1134 = vor.u32 %v1132, %v1133
      %v1135 = vshll.u32 2102212464, %v1123
      %v1136 = vshrl.u32 920167782, %v1124
      %v1137 = vor.u32 %v1135, %v1136
      %v1138 = vshll.u32 920167782, %v1123
      %v1139 = vshrl.u32 1326507024, %v1124
      %v1140 = vor.u32 %v1138, %v1139
      %vm1141 = vcmp.lt.s32.totalorder %v1122, 1
      %vm1142 = vcmp.lt.s32.totalorder %v1122, 2
      %vm1143 = vcmp.lt.s32.totalorder %v1122, 3
      %vm1144 = vcmp.lt.s32.totalorder %v1122, 4
      %v1145 = vsel %vm1141, %v1125, %v1128
      %v1146 = vsel %vm1144, %v1134, 2102212464
      %v1147 = vsel %vm1143, %v1131, %v1146
      %v1148 = vsel %vm1142, %v1145, %v1147
      %v1149 = vsel %vm1141, %v1128, %v1131
      %v1150 = vsel %vm1144, %v1137, 920167782
      %v1151 = vsel %vm1143, %v1134, %v1150
      %v1152 = vsel %vm1142, %v1149, %v1151
      %v1153 = vsel %vm1141, %v1131, %v1134
      %v1154 = vsel %vm1144, %v1140, 1326507024
      %v1155 = vsel %vm1143, %v1137, %v1154
      %v1156 = vsel %vm1142, %v1153, %v1155
      %v1157 = vshll.u32 %v1117, 8
      %v1158 = vmul.u32.u64.compose %v1157, %v1156
      %v1159 = vextract.low.u32 %v1158
      %v1160 = vextract.high.u32 %v1158
      %v1161 = vmul.u32.u64.compose %v1157, %v1152
      %v1162 = vextract.low.u32 %v1161
      %v1163 = vextract.high.u32 %v1161
      %v1164 = vmul.u32 %v1157, %v1148
      %v1165 = vadd.s32 %v1160, %v1162
      %vm1166 = vc.u32 %v1160, %v1162
      %v1167 = vadd.s32 %v1163, 1
      %v1168 = vsel %vm1166, %v1167, %v1163
      %v1169 = vadd.s32 %v1164, %v1168
      %v1170 = vadd.s32 %v1169, 536870912
      %v1171 = vshrl.u32 %v1170, 30
      %v1172 = vshll.u32 %v1171, 30
      %v1173 = vsub.s32 %v1169, %v1172
      %vm1174 = vcmp.lt.s32.totalorder %v1173, 0
      %v1175 = vsub.s32 0, %v1173
      %v1176 = vsel %vm1174, %v1175, %v1173
      %v1177 = vclz %v1176
      %v1178 = vsub.s32 %v1177, 2
      %vm1179 = vcmp.gt.s32.totalorder 0, %v1178
      %v1180 = vsel %vm1179, 0, %v1178
      %v1181 = vsub.s32 32, %v1180
      %v1182 = vshll.u32 %v1173, %v1180
      %v1183 = vshrl.u32 %v1165, %v1181
      %v1184 = vor.u32 %v1182, %v1183
      %v1185 = vsub.s32 4294967266, %v1180
      %v1186 = vadd.s32 %v1185, 127
      %v1187 = vshll.u32 %v1186, 23
      %v1188 = vor.u32 4788187, %v1187
      %v1189 = vand.u32 2147483647, %v1188
      %v1191 = vcvt.s32.f32 %v1184
      %v1192 = vmul.f32 %v1191, %v1189
      %v1193 = vxor.u32 %v1192, 2147483648
      %v1194 = vsel %vm1111, %v1193, %v1192
      %v1195 = vsub.s32 4, %v1171
      %v1196 = vsel %vm1111, %v1195, %v1171
      %v1197 = vsel %vm1110, %v277, %v1194
      %v1198 = vsel %vm1110, 0, %v1196
      %v1199 = vcosq.f32.pop %v1197
      %v1200 = vsinq.f32.pop %v1197
      %vm1201 = vweird.f32 %v277
      %v1202 = vand.u32 %v1198, 3
      %vm1203 = vcmp.lt.s32.totalorder %v1202, 2
      %vm1204 = vcmp.eq.s32.totalorder %v1202, 0
      %v1205 = vxor.u32 %v1200, 2147483648
      %v1206 = vsel %vm1204, %v1199, %v1205
      %vm1207 = vcmp.eq.s32.totalorder %v1202, 2
      %v1208 = vxor.u32 %v1199, 2147483648
      %v1209 = vsel %vm1207, %v1208, %v1200
      %v1210 = vsel %vm1203, %v1206, %v1209
      %v1211 = vsel %vm1201, nan, %v1210
      %v1212 = vand.u32 2147483647, %v278
      %vm1213 = vcmp.le.f32.partialorder %v1212, 0.7853982
      %vm1214 = vcmp.lt.s32.totalorder %v278, 0
      %v1215 = vand.u32 %v278, 2139095040
      %v1216 = vshrl.u32 %v1215, 23
      %v1217 = vsub.s32 %v1216, 127
      %v1218 = vand.u32 2147483647, %v278
      %v1219 = vand.u32 %v1218, 8388607
      %v1220 = vor.u32 %v1219, 8388608
      %v1221 = vsub.s32 0, %v1220
      %v1222 = vadd.s32 %v1217, 1
      %vm1223 = vcmp.gt.s32.totalorder %v1222, 0
      %v1224 = vsel %vm1223, %v1222, 0
      %v1225 = vshrl.u32 %v1224, 5
      %v1226 = vand.u32 %v1224, 31
      %v1227 = vsub.s32 32, %v1226
      %v1228 = vshrl.u32 683565275, %v1227
      %v1229 = vshll.u32 683565275, %v1226
      %v1230 = vshrl.u32 2475754826, %v1227
      %v1231 = vor.u32 %v1229, %v1230
      %v1232 = vshll.u32 2475754826, %v1226
      %v1233 = vshrl.u32 2131351028, %v1227
      %v1234 = vor.u32 %v1232, %v1233
      %v1235 = vshll.u32 2131351028, %v1226
      %v1236 = vshrl.u32 2102212464, %v1227
      %v1237 = vor.u32 %v1235, %v1236
      %v1238 = vshll.u32 2102212464, %v1226
      %v1239 = vshrl.u32 920167782, %v1227
      %v1240 = vor.u32 %v1238, %v1239
      %v1241 = vshll.u32 920167782, %v1226
      %v1242 = vshrl.u32 1326507024, %v1227
      %v1243 = vor.u32 %v1241, %v1242
      %vm1244 = vcmp.lt.s32.totalorder %v1225, 1
      %vm1245 = vcmp.lt.s32.totalorder %v1225, 2
      %vm1246 = vcmp.lt.s32.totalorder %v1225, 3
      %vm1247 = vcmp.lt.s32.totalorder %v1225, 4
      %v1248 = vsel %vm1244, %v1228, %v1231
      %v1249 = vsel %vm1247, %v1237, 2102212464
      %v1250 = vsel %vm1246, %v1234, %v1249
      %v1251 = vsel %vm1245, %v1248, %v1250
      %v1252 = vsel %vm1244, %v1231, %v1234
      %v1253 = vsel %vm1247, %v1240, 920167782
      %v1254 = vsel %vm1246, %v1237, %v1253
      %v1255 = vsel %vm1245, %v1252, %v1254
      %v1256 = vsel %vm1244, %v1234, %v1237
      %v1257 = vsel %vm1247, %v1243, 1326507024
      %v1258 = vsel %vm1246, %v1240, %v1257
      %v1259 = vsel %vm1245, %v1256, %v1258
      %v1260 = vshll.u32 %v1220, 8
      %v1261 = vmul.u32.u64.compose %v1260, %v1259
      %v1262 = vextract.low.u32 %v1261
      %v1263 = vextract.high.u32 %v1261
      %v1264 = vmul.u32.u64.compose %v1260, %v1255
      %v1265 = vextract.low.u32 %v1264
      %v1266 = vextract.high.u32 %v1264
      %v1267 = vmul.u32 %v1260, %v1251
      %v1268 = vadd.s32 %v1263, %v1265
      %vm1269 = vc.u32 %v1263, %v1265
      %v1270 = vadd.s32 %v1266, 1
      %v1271 = vsel %vm1269, %v1270, %v1266
      %v1272 = vadd.s32 %v1267, %v1271
      %v1273 = vadd.s32 %v1272, 536870912
      %v1274 = vshrl.u32 %v1273, 30
      %v1275 = vshll.u32 %v1274, 30
      %v1276 = vsub.s32 %v1272, %v1275
      %vm1277 = vcmp.lt.s32.totalorder %v1276, 0
      %v1278 = vsub.s32 0, %v1276
      %v1279 = vsel %vm1277, %v1278, %v1276
      %v1280 = vclz %v1279
      %v1281 = vsub.s32 %v1280, 2
      %vm1282 = vcmp.gt.s32.totalorder 0, %v1281
      %v1283 = vsel %vm1282, 0, %v1281
      %v1284 = vsub.s32 32, %v1283
      %v1285 = vshll.u32 %v1276, %v1283
      %v1286 = vshrl.u32 %v1268, %v1284
      %v1287 = vor.u32 %v1285, %v1286
      %v1288 = vsub.s32 4294967266, %v1283
      %v1289 = vadd.s32 %v1288, 127
      %v1290 = vshll.u32 %v1289, 23
      %v1291 = vor.u32 4788187, %v1290
      %v1292 = vand.u32 2147483647, %v1291
      %v1294 = vcvt.s32.f32 %v1287
      %v1295 = vmul.f32 %v1294, %v1292
      %v1296 = vxor.u32 %v1295, 2147483648
      %v1297 = vsel %vm1214, %v1296, %v1295
      %v1298 = vsub.s32 4, %v1274
      %v1299 = vsel %vm1214, %v1298, %v1274
      %v1300 = vsel %vm1213, %v278, %v1297
      %v1301 = vsel %vm1213, 0, %v1299
      %v1302 = vcosq.f32.pop %v1300
      %v1303 = vsinq.f32.pop %v1300
      %vm1304 = vweird.f32 %v278
      %v1305 = vand.u32 %v1301, 3
      %vm1306 = vcmp.lt.s32.totalorder %v1305, 2
      %vm1307 = vcmp.eq.s32.totalorder %v1305, 0
      %v1308 = vxor.u32 %v1303, 2147483648
      %v1309 = vsel %vm1307, %v1302, %v1308
      %vm1310 = vcmp.eq.s32.totalorder %v1305, 2
      %v1311 = vxor.u32 %v1302, 2147483648
      %v1312 = vsel %vm1310, %v1311, %v1303
      %v1313 = vsel %vm1306, %v1309, %v1312
      %v1314 = vsel %vm1304, nan, %v1313
      %v1315 = vand.u32 2147483647, %v279
      %vm1316 = vcmp.le.f32.partialorder %v1315, 0.7853982
      %vm1317 = vcmp.lt.s32.totalorder %v279, 0
      %v1318 = vand.u32 %v279, 2139095040
      %v1319 = vshrl.u32 %v1318, 23
      %v1320 = vsub.s32 %v1319, 127
      %v1321 = vand.u32 2147483647, %v279
      %v1322 = vand.u32 %v1321, 8388607
      %v1323 = vor.u32 %v1322, 8388608
      %v1324 = vsub.s32 0, %v1323
      %v1325 = vadd.s32 %v1320, 1
      %vm1326 = vcmp.gt.s32.totalorder %v1325, 0
      %v1327 = vsel %vm1326, %v1325, 0
      %v1328 = vshrl.u32 %v1327, 5
      %v1329 = vand.u32 %v1327, 31
      %v1330 = vsub.s32 32, %v1329
      %v1331 = vshrl.u32 683565275, %v1330
      %v1332 = vshll.u32 683565275, %v1329
      %v1333 = vshrl.u32 2475754826, %v1330
      %v1334 = vor.u32 %v1332, %v1333
      %v1335 = vshll.u32 2475754826, %v1329
      %v1336 = vshrl.u32 2131351028, %v1330
      %v1337 = vor.u32 %v1335, %v1336
      %v1338 = vshll.u32 2131351028, %v1329
      %v1339 = vshrl.u32 2102212464, %v1330
      %v1340 = vor.u32 %v1338, %v1339
      %v1341 = vshll.u32 2102212464, %v1329
      %v1342 = vshrl.u32 920167782, %v1330
      %v1343 = vor.u32 %v1341, %v1342
      %v1344 = vshll.u32 920167782, %v1329
      %v1345 = vshrl.u32 1326507024, %v1330
      %v1346 = vor.u32 %v1344, %v1345
      %vm1347 = vcmp.lt.s32.totalorder %v1328, 1
      %vm1348 = vcmp.lt.s32.totalorder %v1328, 2
      %vm1349 = vcmp.lt.s32.totalorder %v1328, 3
      %vm1350 = vcmp.lt.s32.totalorder %v1328, 4
      %v1351 = vsel %vm1347, %v1331, %v1334
      %v1352 = vsel %vm1350, %v1340, 2102212464
      %v1353 = vsel %vm1349, %v1337, %v1352
      %v1354 = vsel %vm1348, %v1351, %v1353
      %v1355 = vsel %vm1347, %v1334, %v1337
      %v1356 = vsel %vm1350, %v1343, 920167782
      %v1357 = vsel %vm1349, %v1340, %v1356
      %v1358 = vsel %vm1348, %v1355, %v1357
      %v1359 = vsel %vm1347, %v1337, %v1340
      %v1360 = vsel %vm1350, %v1346, 1326507024
      %v1361 = vsel %vm1349, %v1343, %v1360
      %v1362 = vsel %vm1348, %v1359, %v1361
      %v1363 = vshll.u32 %v1323, 8
      %v1364 = vmul.u32.u64.compose %v1363, %v1362
      %v1365 = vextract.low.u32 %v1364
      %v1366 = vextract.high.u32 %v1364
      %v1367 = vmul.u32.u64.compose %v1363, %v1358
      %v1368 = vextract.low.u32 %v1367
      %v1369 = vextract.high.u32 %v1367
      %v1370 = vmul.u32 %v1363, %v1354
      %v1371 = vadd.s32 %v1366, %v1368
      %vm1372 = vc.u32 %v1366, %v1368
      %v1373 = vadd.s32 %v1369, 1
      %v1374 = vsel %vm1372, %v1373, %v1369
      %v1375 = vadd.s32 %v1370, %v1374
      %v1376 = vadd.s32 %v1375, 536870912
      %v1377 = vshrl.u32 %v1376, 30
      %v1378 = vshll.u32 %v1377, 30
      %v1379 = vsub.s32 %v1375, %v1378
      %vm1380 = vcmp.lt.s32.totalorder %v1379, 0
      %v1381 = vsub.s32 0, %v1379
      %v1382 = vsel %vm1380, %v1381, %v1379
      %v1383 = vclz %v1382
      %v1384 = vsub.s32 %v1383, 2
      %vm1385 = vcmp.gt.s32.totalorder 0, %v1384
      %v1386 = vsel %vm1385, 0, %v1384
      %v1387 = vsub.s32 32, %v1386
      %v1388 = vshll.u32 %v1379, %v1386
      %v1389 = vshrl.u32 %v1371, %v1387
      %v1390 = vor.u32 %v1388, %v1389
      %v1391 = vsub.s32 4294967266, %v1386
      %v1392 = vadd.s32 %v1391, 127
      %v1393 = vshll.u32 %v1392, 23
      %v1394 = vor.u32 4788187, %v1393
      %v1395 = vand.u32 2147483647, %v1394
      %v1397 = vcvt.s32.f32 %v1390
      %v1398 = vmul.f32 %v1397, %v1395
      %v1399 = vxor.u32 %v1398, 2147483648
      %v1400 = vsel %vm1317, %v1399, %v1398
      %v1401 = vsub.s32 4, %v1377
      %v1402 = vsel %vm1317, %v1401, %v1377
      %v1403 = vsel %vm1316, %v279, %v1400
      %v1404 = vsel %vm1316, 0, %v1402
      %v1405 = vcosq.f32.pop %v1403
      %v1406 = vsinq.f32.pop %v1403
      %vm1407 = vweird.f32 %v279
      %v1408 = vand.u32 %v1404, 3
      %vm1409 = vcmp.lt.s32.totalorder %v1408, 2
      %vm1410 = vcmp.eq.s32.totalorder %v1408, 0
      %v1411 = vxor.u32 %v1406, 2147483648
      %v1412 = vsel %vm1410, %v1405, %v1411
      %vm1413 = vcmp.eq.s32.totalorder %v1408, 2
      %v1414 = vxor.u32 %v1405, 2147483648
      %v1415 = vsel %vm1413, %v1414, %v1406
      %v1416 = vsel %vm1409, %v1412, %v1415
      %v1417 = vsel %vm1407, nan, %v1416
      %v1418 = vand.u32 2147483647, %v280
      %vm1419 = vcmp.le.f32.partialorder %v1418, 0.7853982
      %vm1420 = vcmp.lt.s32.totalorder %v280, 0
      %v1421 = vand.u32 %v280, 2139095040
      %v1422 = vshrl.u32 %v1421, 23
      %v1423 = vsub.s32 %v1422, 127
      %v1424 = vand.u32 2147483647, %v280
      %v1425 = vand.u32 %v1424, 8388607
      %v1426 = vor.u32 %v1425, 8388608
      %v1427 = vsub.s32 0, %v1426
      %v1428 = vadd.s32 %v1423, 1
      %vm1429 = vcmp.gt.s32.totalorder %v1428, 0
      %v1430 = vsel %vm1429, %v1428, 0
      %v1431 = vshrl.u32 %v1430, 5
      %v1432 = vand.u32 %v1430, 31
      %v1433 = vsub.s32 32, %v1432
      %v1434 = vshrl.u32 683565275, %v1433
      %v1435 = vshll.u32 683565275, %v1432
      %v1436 = vshrl.u32 2475754826, %v1433
      %v1437 = vor.u32 %v1435, %v1436
      %v1438 = vshll.u32 2475754826, %v1432
      %v1439 = vshrl.u32 2131351028, %v1433
      %v1440 = vor.u32 %v1438, %v1439
      %v1441 = vshll.u32 2131351028, %v1432
      %v1442 = vshrl.u32 2102212464, %v1433
      %v1443 = vor.u32 %v1441, %v1442
      %v1444 = vshll.u32 2102212464, %v1432
      %v1445 = vshrl.u32 920167782, %v1433
      %v1446 = vor.u32 %v1444, %v1445
      %v1447 = vshll.u32 920167782, %v1432
      %v1448 = vshrl.u32 1326507024, %v1433
      %v1449 = vor.u32 %v1447, %v1448
      %vm1450 = vcmp.lt.s32.totalorder %v1431, 1
      %vm1451 = vcmp.lt.s32.totalorder %v1431, 2
      %vm1452 = vcmp.lt.s32.totalorder %v1431, 3
      %vm1453 = vcmp.lt.s32.totalorder %v1431, 4
      %v1454 = vsel %vm1450, %v1434, %v1437
      %v1455 = vsel %vm1453, %v1443, 2102212464
      %v1456 = vsel %vm1452, %v1440, %v1455
      %v1457 = vsel %vm1451, %v1454, %v1456
      %v1458 = vsel %vm1450, %v1437, %v1440
      %v1459 = vsel %vm1453, %v1446, 920167782
      %v1460 = vsel %vm1452, %v1443, %v1459
      %v1461 = vsel %vm1451, %v1458, %v1460
      %v1462 = vsel %vm1450, %v1440, %v1443
      %v1463 = vsel %vm1453, %v1449, 1326507024
      %v1464 = vsel %vm1452, %v1446, %v1463
      %v1465 = vsel %vm1451, %v1462, %v1464
      %v1466 = vshll.u32 %v1426, 8
      %v1467 = vmul.u32.u64.compose %v1466, %v1465
      %v1468 = vextract.low.u32 %v1467
      %v1469 = vextract.high.u32 %v1467
      %v1470 = vmul.u32.u64.compose %v1466, %v1461
      %v1471 = vextract.low.u32 %v1470
      %v1472 = vextract.high.u32 %v1470
      %v1473 = vmul.u32 %v1466, %v1457
      %v1474 = vadd.s32 %v1469, %v1471
      %vm1475 = vc.u32 %v1469, %v1471
      %v1476 = vadd.s32 %v1472, 1
      %v1477 = vsel %vm1475, %v1476, %v1472
      %v1478 = vadd.s32 %v1473, %v1477
      %v1479 = vadd.s32 %v1478, 536870912
      %v1480 = vshrl.u32 %v1479, 30
      %v1481 = vshll.u32 %v1480, 30
      %v1482 = vsub.s32 %v1478, %v1481
      %vm1483 = vcmp.lt.s32.totalorder %v1482, 0
      %v1484 = vsub.s32 0, %v1482
      %v1485 = vsel %vm1483, %v1484, %v1482
      %v1486 = vclz %v1485
      %v1487 = vsub.s32 %v1486, 2
      %vm1488 = vcmp.gt.s32.totalorder 0, %v1487
      %v1489 = vsel %vm1488, 0, %v1487
      %v1490 = vsub.s32 32, %v1489
      %v1491 = vshll.u32 %v1482, %v1489
      %v1492 = vshrl.u32 %v1474, %v1490
      %v1493 = vor.u32 %v1491, %v1492
      %v1494 = vsub.s32 4294967266, %v1489
      %v1495 = vadd.s32 %v1494, 127
      %v1496 = vshll.u32 %v1495, 23
      %v1497 = vor.u32 4788187, %v1496
      %v1498 = vand.u32 2147483647, %v1497
      %v1500 = vcvt.s32.f32 %v1493
      %v1501 = vmul.f32 %v1500, %v1498
      %v1502 = vxor.u32 %v1501, 2147483648
      %v1503 = vsel %vm1420, %v1502, %v1501
      %v1504 = vsub.s32 4, %v1480
      %v1505 = vsel %vm1420, %v1504, %v1480
      %v1506 = vsel %vm1419, %v280, %v1503
      %v1507 = vsel %vm1419, 0, %v1505
      %v1508 = vcosq.f32.pop %v1506
      %v1509 = vsinq.f32.pop %v1506
      %vm1510 = vweird.f32 %v280
      %v1511 = vand.u32 %v1507, 3
      %vm1512 = vcmp.lt.s32.totalorder %v1511, 2
      %vm1513 = vcmp.eq.s32.totalorder %v1511, 0
      %v1514 = vxor.u32 %v1509, 2147483648
      %v1515 = vsel %vm1513, %v1508, %v1514
      %vm1516 = vcmp.eq.s32.totalorder %v1511, 2
      %v1517 = vxor.u32 %v1508, 2147483648
      %v1518 = vsel %vm1516, %v1517, %v1509
      %v1519 = vsel %vm1512, %v1515, %v1518
      %v1520 = vsel %vm1510, nan, %v1519
      %v1521 = vand.u32 2147483647, %v281
      %vm1522 = vcmp.le.f32.partialorder %v1521, 0.7853982
      %vm1523 = vcmp.lt.s32.totalorder %v281, 0
      %v1524 = vand.u32 %v281, 2139095040
      %v1525 = vshrl.u32 %v1524, 23
      %v1526 = vsub.s32 %v1525, 127
      %v1527 = vand.u32 2147483647, %v281
      %v1528 = vand.u32 %v1527, 8388607
      %v1529 = vor.u32 %v1528, 8388608
      %v1530 = vsub.s32 0, %v1529
      %v1531 = vadd.s32 %v1526, 1
      %vm1532 = vcmp.gt.s32.totalorder %v1531, 0
      %v1533 = vsel %vm1532, %v1531, 0
      %v1534 = vshrl.u32 %v1533, 5
      %v1535 = vand.u32 %v1533, 31
      %v1536 = vsub.s32 32, %v1535
      %v1537 = vshrl.u32 683565275, %v1536
      %v1538 = vshll.u32 683565275, %v1535
      %v1539 = vshrl.u32 2475754826, %v1536
      %v1540 = vor.u32 %v1538, %v1539
      %v1541 = vshll.u32 2475754826, %v1535
      %v1542 = vshrl.u32 2131351028, %v1536
      %v1543 = vor.u32 %v1541, %v1542
      %v1544 = vshll.u32 2131351028, %v1535
      %v1545 = vshrl.u32 2102212464, %v1536
      %v1546 = vor.u32 %v1544, %v1545
      %v1547 = vshll.u32 2102212464, %v1535
      %v1548 = vshrl.u32 920167782, %v1536
      %v1549 = vor.u32 %v1547, %v1548
      %v1550 = vshll.u32 920167782, %v1535
      %v1551 = vshrl.u32 1326507024, %v1536
      %v1552 = vor.u32 %v1550, %v1551
      %vm1553 = vcmp.lt.s32.totalorder %v1534, 1
      %vm1554 = vcmp.lt.s32.totalorder %v1534, 2
      %vm1555 = vcmp.lt.s32.totalorder %v1534, 3
      %vm1556 = vcmp.lt.s32.totalorder %v1534, 4
      %v1557 = vsel %vm1553, %v1537, %v1540
      %v1558 = vsel %vm1556, %v1546, 2102212464
      %v1559 = vsel %vm1555, %v1543, %v1558
      %v1560 = vsel %vm1554, %v1557, %v1559
      %v1561 = vsel %vm1553, %v1540, %v1543
      %v1562 = vsel %vm1556, %v1549, 920167782
      %v1563 = vsel %vm1555, %v1546, %v1562
      %v1564 = vsel %vm1554, %v1561, %v1563
      %v1565 = vsel %vm1553, %v1543, %v1546
      %v1566 = vsel %vm1556, %v1552, 1326507024
      %v1567 = vsel %vm1555, %v1549, %v1566
      %v1568 = vsel %vm1554, %v1565, %v1567
      %v1569 = vshll.u32 %v1529, 8
      %v1570 = vmul.u32.u64.compose %v1569, %v1568
      %v1571 = vextract.low.u32 %v1570
      %v1572 = vextract.high.u32 %v1570
      %v1573 = vmul.u32.u64.compose %v1569, %v1564
      %v1574 = vextract.low.u32 %v1573
      %v1575 = vextract.high.u32 %v1573
      %v1576 = vmul.u32 %v1569, %v1560
      %v1577 = vadd.s32 %v1572, %v1574
      %vm1578 = vc.u32 %v1572, %v1574
      %v1579 = vadd.s32 %v1575, 1
      %v1580 = vsel %vm1578, %v1579, %v1575
      %v1581 = vadd.s32 %v1576, %v1580
      %v1582 = vadd.s32 %v1581, 536870912
      %v1583 = vshrl.u32 %v1582, 30
      %v1584 = vshll.u32 %v1583, 30
      %v1585 = vsub.s32 %v1581, %v1584
      %vm1586 = vcmp.lt.s32.totalorder %v1585, 0
      %v1587 = vsub.s32 0, %v1585
      %v1588 = vsel %vm1586, %v1587, %v1585
      %v1589 = vclz %v1588
      %v1590 = vsub.s32 %v1589, 2
      %vm1591 = vcmp.gt.s32.totalorder 0, %v1590
      %v1592 = vsel %vm1591, 0, %v1590
      %v1593 = vsub.s32 32, %v1592
      %v1594 = vshll.u32 %v1585, %v1592
      %v1595 = vshrl.u32 %v1577, %v1593
      %v1596 = vor.u32 %v1594, %v1595
      %v1597 = vsub.s32 4294967266, %v1592
      %v1598 = vadd.s32 %v1597, 127
      %v1599 = vshll.u32 %v1598, 23
      %v1600 = vor.u32 4788187, %v1599
      %v1601 = vand.u32 2147483647, %v1600
      %v1603 = vcvt.s32.f32 %v1596
      %v1604 = vmul.f32 %v1603, %v1601
      %v1605 = vxor.u32 %v1604, 2147483648
      %v1606 = vsel %vm1523, %v1605, %v1604
      %v1607 = vsub.s32 4, %v1583
      %v1608 = vsel %vm1523, %v1607, %v1583
      %v1609 = vsel %vm1522, %v281, %v1606
      %v1610 = vsel %vm1522, 0, %v1608
      %v1611 = vcosq.f32.pop %v1609
      %v1612 = vsinq.f32.pop %v1609
      %vm1613 = vweird.f32 %v281
      %v1614 = vand.u32 %v1610, 3
      %vm1615 = vcmp.lt.s32.totalorder %v1614, 2
      %vm1616 = vcmp.eq.s32.totalorder %v1614, 0
      %v1617 = vxor.u32 %v1612, 2147483648
      %v1618 = vsel %vm1616, %v1611, %v1617
      %vm1619 = vcmp.eq.s32.totalorder %v1614, 2
      %v1620 = vxor.u32 %v1611, 2147483648
      %v1621 = vsel %vm1619, %v1620, %v1612
      %v1622 = vsel %vm1615, %v1618, %v1621
      %v1623 = vsel %vm1613, nan, %v1622
      %v1624 = vand.u32 2147483647, %v282
      %vm1625 = vcmp.le.f32.partialorder %v1624, 0.7853982
      %vm1626 = vcmp.lt.s32.totalorder %v282, 0
      %v1627 = vand.u32 %v282, 2139095040
      %v1628 = vshrl.u32 %v1627, 23
      %v1629 = vsub.s32 %v1628, 127
      %v1630 = vand.u32 2147483647, %v282
      %v1631 = vand.u32 %v1630, 8388607
      %v1632 = vor.u32 %v1631, 8388608
      %v1633 = vsub.s32 0, %v1632
      %v1634 = vadd.s32 %v1629, 1
      %vm1635 = vcmp.gt.s32.totalorder %v1634, 0
      %v1636 = vsel %vm1635, %v1634, 0
      %v1637 = vshrl.u32 %v1636, 5
      %v1638 = vand.u32 %v1636, 31
      %v1639 = vsub.s32 32, %v1638
      %v1640 = vshrl.u32 683565275, %v1639
      %v1641 = vshll.u32 683565275, %v1638
      %v1642 = vshrl.u32 2475754826, %v1639
      %v1643 = vor.u32 %v1641, %v1642
      %v1644 = vshll.u32 2475754826, %v1638
      %v1645 = vshrl.u32 2131351028, %v1639
      %v1646 = vor.u32 %v1644, %v1645
      %v1647 = vshll.u32 2131351028, %v1638
      %v1648 = vshrl.u32 2102212464, %v1639
      %v1649 = vor.u32 %v1647, %v1648
      %v1650 = vshll.u32 2102212464, %v1638
      %v1651 = vshrl.u32 920167782, %v1639
      %v1652 = vor.u32 %v1650, %v1651
      %v1653 = vshll.u32 920167782, %v1638
      %v1654 = vshrl.u32 1326507024, %v1639
      %v1655 = vor.u32 %v1653, %v1654
      %vm1656 = vcmp.lt.s32.totalorder %v1637, 1
      %vm1657 = vcmp.lt.s32.totalorder %v1637, 2
      %vm1658 = vcmp.lt.s32.totalorder %v1637, 3
      %vm1659 = vcmp.lt.s32.totalorder %v1637, 4
      %v1660 = vsel %vm1656, %v1640, %v1643
      %v1661 = vsel %vm1659, %v1649, 2102212464
      %v1662 = vsel %vm1658, %v1646, %v1661
      %v1663 = vsel %vm1657, %v1660, %v1662
      %v1664 = vsel %vm1656, %v1643, %v1646
      %v1665 = vsel %vm1659, %v1652, 920167782
      %v1666 = vsel %vm1658, %v1649, %v1665
      %v1667 = vsel %vm1657, %v1664, %v1666
      %v1668 = vsel %vm1656, %v1646, %v1649
      %v1669 = vsel %vm1659, %v1655, 1326507024
      %v1670 = vsel %vm1658, %v1652, %v1669
      %v1671 = vsel %vm1657, %v1668, %v1670
      %v1672 = vshll.u32 %v1632, 8
      %v1673 = vmul.u32.u64.compose %v1672, %v1671
      %v1674 = vextract.low.u32 %v1673
      %v1675 = vextract.high.u32 %v1673
      %v1676 = vmul.u32.u64.compose %v1672, %v1667
      %v1677 = vextract.low.u32 %v1676
      %v1678 = vextract.high.u32 %v1676
      %v1679 = vmul.u32 %v1672, %v1663
      %v1680 = vadd.s32 %v1675, %v1677
      %vm1681 = vc.u32 %v1675, %v1677
      %v1682 = vadd.s32 %v1678, 1
      %v1683 = vsel %vm1681, %v1682, %v1678
      %v1684 = vadd.s32 %v1679, %v1683
      %v1685 = vadd.s32 %v1684, 536870912
      %v1686 = vshrl.u32 %v1685, 30
      %v1687 = vshll.u32 %v1686, 30
      %v1688 = vsub.s32 %v1684, %v1687
      %vm1689 = vcmp.lt.s32.totalorder %v1688, 0
      %v1690 = vsub.s32 0, %v1688
      %v1691 = vsel %vm1689, %v1690, %v1688
      %v1692 = vclz %v1691
      %v1693 = vsub.s32 %v1692, 2
      %vm1694 = vcmp.gt.s32.totalorder 0, %v1693
      %v1695 = vsel %vm1694, 0, %v1693
      %v1696 = vsub.s32 32, %v1695
      %v1697 = vshll.u32 %v1688, %v1695
      %v1698 = vshrl.u32 %v1680, %v1696
      %v1699 = vor.u32 %v1697, %v1698
      %v1700 = vsub.s32 4294967266, %v1695
      %v1701 = vadd.s32 %v1700, 127
      %v1702 = vshll.u32 %v1701, 23
      %v1703 = vor.u32 4788187, %v1702
      %v1704 = vand.u32 2147483647, %v1703
      %v1706 = vcvt.s32.f32 %v1699
      %v1707 = vmul.f32 %v1706, %v1704
      %v1708 = vxor.u32 %v1707, 2147483648
      %v1709 = vsel %vm1626, %v1708, %v1707
      %v1710 = vsub.s32 4, %v1686
      %v1711 = vsel %vm1626, %v1710, %v1686
      %v1712 = vsel %vm1625, %v282, %v1709
      %v1713 = vsel %vm1625, 0, %v1711
      %v1714 = vcosq.f32.pop %v1712
      %v1715 = vsinq.f32.pop %v1712
      %vm1716 = vweird.f32 %v282
      %v1717 = vand.u32 %v1713, 3
      %vm1718 = vcmp.lt.s32.totalorder %v1717, 2
      %vm1719 = vcmp.eq.s32.totalorder %v1717, 0
      %v1720 = vxor.u32 %v1715, 2147483648
      %v1721 = vsel %vm1719, %v1714, %v1720
      %vm1722 = vcmp.eq.s32.totalorder %v1717, 2
      %v1723 = vxor.u32 %v1714, 2147483648
      %v1724 = vsel %vm1722, %v1723, %v1715
      %v1725 = vsel %vm1718, %v1721, %v1724
      %v1726 = vsel %vm1716, nan, %v1725
      %v1727 = vand.u32 2147483647, %v283
      %vm1728 = vcmp.le.f32.partialorder %v1727, 0.7853982
      %vm1729 = vcmp.lt.s32.totalorder %v283, 0
      %v1730 = vand.u32 %v283, 2139095040
      %v1731 = vshrl.u32 %v1730, 23
      %v1732 = vsub.s32 %v1731, 127
      %v1733 = vand.u32 2147483647, %v283
      %v1734 = vand.u32 %v1733, 8388607
      %v1735 = vor.u32 %v1734, 8388608
      %v1736 = vsub.s32 0, %v1735
      %v1737 = vadd.s32 %v1732, 1
      %vm1738 = vcmp.gt.s32.totalorder %v1737, 0
      %v1739 = vsel %vm1738, %v1737, 0
      %v1740 = vshrl.u32 %v1739, 5
      %v1741 = vand.u32 %v1739, 31
      %v1742 = vsub.s32 32, %v1741
      %v1743 = vshrl.u32 683565275, %v1742
      %v1744 = vshll.u32 683565275, %v1741
      %v1745 = vshrl.u32 2475754826, %v1742
      %v1746 = vor.u32 %v1744, %v1745
      %v1747 = vshll.u32 2475754826, %v1741
      %v1748 = vshrl.u32 2131351028, %v1742
      %v1749 = vor.u32 %v1747, %v1748
      %v1750 = vshll.u32 2131351028, %v1741
      %v1751 = vshrl.u32 2102212464, %v1742
      %v1752 = vor.u32 %v1750, %v1751
      %v1753 = vshll.u32 2102212464, %v1741
      %v1754 = vshrl.u32 920167782, %v1742
      %v1755 = vor.u32 %v1753, %v1754
      %v1756 = vshll.u32 920167782, %v1741
      %v1757 = vshrl.u32 1326507024, %v1742
      %v1758 = vor.u32 %v1756, %v1757
      %vm1759 = vcmp.lt.s32.totalorder %v1740, 1
      %vm1760 = vcmp.lt.s32.totalorder %v1740, 2
      %vm1761 = vcmp.lt.s32.totalorder %v1740, 3
      %vm1762 = vcmp.lt.s32.totalorder %v1740, 4
      %v1763 = vsel %vm1759, %v1743, %v1746
      %v1764 = vsel %vm1762, %v1752, 2102212464
      %v1765 = vsel %vm1761, %v1749, %v1764
      %v1766 = vsel %vm1760, %v1763, %v1765
      %v1767 = vsel %vm1759, %v1746, %v1749
      %v1768 = vsel %vm1762, %v1755, 920167782
      %v1769 = vsel %vm1761, %v1752, %v1768
      %v1770 = vsel %vm1760, %v1767, %v1769
      %v1771 = vsel %vm1759, %v1749, %v1752
      %v1772 = vsel %vm1762, %v1758, 1326507024
      %v1773 = vsel %vm1761, %v1755, %v1772
      %v1774 = vsel %vm1760, %v1771, %v1773
      %v1775 = vshll.u32 %v1735, 8
      %v1776 = vmul.u32.u64.compose %v1775, %v1774
      %v1777 = vextract.low.u32 %v1776
      %v1778 = vextract.high.u32 %v1776
      %v1779 = vmul.u32.u64.compose %v1775, %v1770
      %v1780 = vextract.low.u32 %v1779
      %v1781 = vextract.high.u32 %v1779
      %v1782 = vmul.u32 %v1775, %v1766
      %v1783 = vadd.s32 %v1778, %v1780
      %vm1784 = vc.u32 %v1778, %v1780
      %v1785 = vadd.s32 %v1781, 1
      %v1786 = vsel %vm1784, %v1785, %v1781
      %v1787 = vadd.s32 %v1782, %v1786
      %v1788 = vadd.s32 %v1787, 536870912
      %v1789 = vshrl.u32 %v1788, 30
      %v1790 = vshll.u32 %v1789, 30
      %v1791 = vsub.s32 %v1787, %v1790
      %vm1792 = vcmp.lt.s32.totalorder %v1791, 0
      %v1793 = vsub.s32 0, %v1791
      %v1794 = vsel %vm1792, %v1793, %v1791
      %v1795 = vclz %v1794
      %v1796 = vsub.s32 %v1795, 2
      %vm1797 = vcmp.gt.s32.totalorder 0, %v1796
      %v1798 = vsel %vm1797, 0, %v1796
      %v1799 = vsub.s32 32, %v1798
      %v1800 = vshll.u32 %v1791, %v1798
      %v1801 = vshrl.u32 %v1783, %v1799
      %v1802 = vor.u32 %v1800, %v1801
      %v1803 = vsub.s32 4294967266, %v1798
      %v1804 = vadd.s32 %v1803, 127
      %v1805 = vshll.u32 %v1804, 23
      %v1806 = vor.u32 4788187, %v1805
      %v1807 = vand.u32 2147483647, %v1806
      %v1809 = vcvt.s32.f32 %v1802
      %v1810 = vmul.f32 %v1809, %v1807
      %v1811 = vxor.u32 %v1810, 2147483648
      %v1812 = vsel %vm1729, %v1811, %v1810
      %v1813 = vsub.s32 4, %v1789
      %v1814 = vsel %vm1729, %v1813, %v1789
      %v1815 = vsel %vm1728, %v283, %v1812
      %v1816 = vsel %vm1728, 0, %v1814
      %v1817 = vcosq.f32.pop %v1815
      %v1818 = vsinq.f32.pop %v1815
      %vm1819 = vweird.f32 %v283
      %v1820 = vand.u32 %v1816, 3
      %vm1821 = vcmp.lt.s32.totalorder %v1820, 2
      %vm1822 = vcmp.eq.s32.totalorder %v1820, 0
      %v1823 = vxor.u32 %v1818, 2147483648
      %v1824 = vsel %vm1822, %v1817, %v1823
      %vm1825 = vcmp.eq.s32.totalorder %v1820, 2
      %v1826 = vxor.u32 %v1817, 2147483648
      %v1827 = vsel %vm1825, %v1826, %v1818
      %v1828 = vsel %vm1821, %v1824, %v1827
      %v1829 = vsel %vm1819, nan, %v1828
      %v1830 = vand.u32 2147483647, %v284
      %vm1831 = vcmp.le.f32.partialorder %v1830, 0.7853982
      %vm1832 = vcmp.lt.s32.totalorder %v284, 0
      %v1833 = vand.u32 %v284, 2139095040
      %v1834 = vshrl.u32 %v1833, 23
      %v1835 = vsub.s32 %v1834, 127
      %v1836 = vand.u32 2147483647, %v284
      %v1837 = vand.u32 %v1836, 8388607
      %v1838 = vor.u32 %v1837, 8388608
      %v1839 = vsub.s32 0, %v1838
      %v1840 = vadd.s32 %v1835, 1
      %vm1841 = vcmp.gt.s32.totalorder %v1840, 0
      %v1842 = vsel %vm1841, %v1840, 0
      %v1843 = vshrl.u32 %v1842, 5
      %v1844 = vand.u32 %v1842, 31
      %v1845 = vsub.s32 32, %v1844
      %v1846 = vshrl.u32 683565275, %v1845
      %v1847 = vshll.u32 683565275, %v1844
      %v1848 = vshrl.u32 2475754826, %v1845
      %v1849 = vor.u32 %v1847, %v1848
      %v1850 = vshll.u32 2475754826, %v1844
      %v1851 = vshrl.u32 2131351028, %v1845
      %v1852 = vor.u32 %v1850, %v1851
      %v1853 = vshll.u32 2131351028, %v1844
      %v1854 = vshrl.u32 2102212464, %v1845
      %v1855 = vor.u32 %v1853, %v1854
      %v1856 = vshll.u32 2102212464, %v1844
      %v1857 = vshrl.u32 920167782, %v1845
      %v1858 = vor.u32 %v1856, %v1857
      %v1859 = vshll.u32 920167782, %v1844
      %v1860 = vshrl.u32 1326507024, %v1845
      %v1861 = vor.u32 %v1859, %v1860
      %vm1862 = vcmp.lt.s32.totalorder %v1843, 1
      %vm1863 = vcmp.lt.s32.totalorder %v1843, 2
      %vm1864 = vcmp.lt.s32.totalorder %v1843, 3
      %vm1865 = vcmp.lt.s32.totalorder %v1843, 4
      %v1866 = vsel %vm1862, %v1846, %v1849
      %v1867 = vsel %vm1865, %v1855, 2102212464
      %v1868 = vsel %vm1864, %v1852, %v1867
      %v1869 = vsel %vm1863, %v1866, %v1868
      %v1870 = vsel %vm1862, %v1849, %v1852
      %v1871 = vsel %vm1865, %v1858, 920167782
      %v1872 = vsel %vm1864, %v1855, %v1871
      %v1873 = vsel %vm1863, %v1870, %v1872
      %v1874 = vsel %vm1862, %v1852, %v1855
      %v1875 = vsel %vm1865, %v1861, 1326507024
      %v1876 = vsel %vm1864, %v1858, %v1875
      %v1877 = vsel %vm1863, %v1874, %v1876
      %v1878 = vshll.u32 %v1838, 8
      %v1879 = vmul.u32.u64.compose %v1878, %v1877
      %v1880 = vextract.low.u32 %v1879
      %v1881 = vextract.high.u32 %v1879
      %v1882 = vmul.u32.u64.compose %v1878, %v1873
      %v1883 = vextract.low.u32 %v1882
      %v1884 = vextract.high.u32 %v1882
      %v1885 = vmul.u32 %v1878, %v1869
      %v1886 = vadd.s32 %v1881, %v1883
      %vm1887 = vc.u32 %v1881, %v1883
      %v1888 = vadd.s32 %v1884, 1
      %v1889 = vsel %vm1887, %v1888, %v1884
      %v1890 = vadd.s32 %v1885, %v1889
      %v1891 = vadd.s32 %v1890, 536870912
      %v1892 = vshrl.u32 %v1891, 30
      %v1893 = vshll.u32 %v1892, 30
      %v1894 = vsub.s32 %v1890, %v1893
      %vm1895 = vcmp.lt.s32.totalorder %v1894, 0
      %v1896 = vsub.s32 0, %v1894
      %v1897 = vsel %vm1895, %v1896, %v1894
      %v1898 = vclz %v1897
      %v1899 = vsub.s32 %v1898, 2
      %vm1900 = vcmp.gt.s32.totalorder 0, %v1899
      %v1901 = vsel %vm1900, 0, %v1899
      %v1902 = vsub.s32 32, %v1901
      %v1903 = vshll.u32 %v1894, %v1901
      %v1904 = vshrl.u32 %v1886, %v1902
      %v1905 = vor.u32 %v1903, %v1904
      %v1906 = vsub.s32 4294967266, %v1901
      %v1907 = vadd.s32 %v1906, 127
      %v1908 = vshll.u32 %v1907, 23
      %v1909 = vor.u32 4788187, %v1908
      %v1910 = vand.u32 2147483647, %v1909
      %v1912 = vcvt.s32.f32 %v1905
      %v1913 = vmul.f32 %v1912, %v1910
      %v1914 = vxor.u32 %v1913, 2147483648
      %v1915 = vsel %vm1832, %v1914, %v1913
      %v1916 = vsub.s32 4, %v1892
      %v1917 = vsel %vm1832, %v1916, %v1892
      %v1918 = vsel %vm1831, %v284, %v1915
      %v1919 = vsel %vm1831, 0, %v1917
      %v1920 = vcosq.f32.pop %v1918
      %v1921 = vsinq.f32.pop %v1918
      %vm1922 = vweird.f32 %v284
      %v1923 = vand.u32 %v1919, 3
      %vm1924 = vcmp.lt.s32.totalorder %v1923, 2
      %vm1925 = vcmp.eq.s32.totalorder %v1923, 0
      %v1926 = vxor.u32 %v1921, 2147483648
      %v1927 = vsel %vm1925, %v1920, %v1926
      %vm1928 = vcmp.eq.s32.totalorder %v1923, 2
      %v1929 = vxor.u32 %v1920, 2147483648
      %v1930 = vsel %vm1928, %v1929, %v1921
      %v1931 = vsel %vm1924, %v1927, %v1930
      %v1932 = vsel %vm1922, nan, %v1931
      %v1933 = vadd.f32 %v387, 1.0
      %v1934 = vadd.f32 %v490, 1.0
      %v1935 = vadd.f32 %v593, 1.0
      %v1936 = vadd.f32 %v696, 1.0
      %v1937 = vadd.f32 %v799, 1.0
      %v1938 = vadd.f32 %v902, 1.0
      %v1939 = vadd.f32 %v1005, 1.0
      %v1940 = vadd.f32 %v1108, 1.0
      %v1941 = vadd.f32 %v1211, 1.0
      %v1942 = vadd.f32 %v1314, 1.0
      %v1943 = vadd.f32 %v1417, 1.0
      %v1944 = vadd.f32 %v1520, 1.0
      %v1945 = vadd.f32 %v1623, 1.0
      %v1946 = vadd.f32 %v1726, 1.0
      %v1947 = vadd.f32 %v1829, 1.0
      %v1948 = vadd.f32 %v1932, 1.0
      %vm1949 = vcmask 7168
      %1950 = vst.msk [vmem:[%s229] sm:$0xff] %vm1949, %v1933
      %1951 = vst.msk [vmem:[%s229 + $0x8] sm:$0xff] %vm1949, %v1934
      %1952 = vst.msk [vmem:[%s229 + $0x10] sm:$0xff] %vm1949, %v1935
      %1953 = vst.msk [vmem:[%s229 + $0x18] sm:$0xff] %vm1949, %v1936
      %1954 = vst.msk [vmem:[%s229 + $0x20] sm:$0xff] %vm1949, %v1937
      %1955 = vst.msk [vmem:[%s229 + $0x28] sm:$0xff] %vm1949, %v1938
      %1956 = vst.msk [vmem:[%s229 + $0x30] sm:$0xff] %vm1949, %v1939
      %1957 = vst.msk [vmem:[%s229 + $0x38] sm:$0xff] %vm1949, %v1940
      %1958 = vst.msk [vmem:[%s229 + $0x40] sm:$0xff] %vm1949, %v1941
      %1959 = vst.msk [vmem:[%s229 + $0x48] sm:$0xff] %vm1949, %v1942
      %1960 = vst.msk [vmem:[%s229 + $0x50] sm:$0xff] %vm1949, %v1943
      %1961 = vst.msk [vmem:[%s229 + $0x58] sm:$0xff] %vm1949, %v1944
      %1962 = vst.msk [vmem:[%s229 + $0x60] sm:$0xff] %vm1949, %v1945
      %1963 = vst.msk [vmem:[%s229 + $0x68] sm:$0xff] %vm1949, %v1946
      %1964 = vst.msk [vmem:[%s229 + $0x70] sm:$0xff] %vm1949, %v1947
      %1965 = vst.msk [vmem:[%s229 + $0x78] sm:$0xff] %vm1949, %v1948
      %v1966 = vld [vmem:[%s2] sm:$0x1]
      %1968 = vset.pattern.permute.xlu0 0
      %1969 = vperm.xlu0 %1968, %v237
      %v1970 = vpop.permute.xlu0 %1969
      %1973 = vset.pattern.permute.xlu0 0
      %1974 = vperm.xlu0 %1973, %v238
      %v1975 = vpop.permute.xlu0 %1974
      %1978 = vset.pattern.permute.xlu0 0
      %1979 = vperm.xlu0 %1978, %v239
      %v1980 = vpop.permute.xlu0 %1979
      %1983 = vset.pattern.permute.xlu0 0
      %1984 = vperm.xlu0 %1983, %v240
      %v1985 = vpop.permute.xlu0 %1984
      %1988 = vset.pattern.permute.xlu0 0
      %1989 = vperm.xlu0 %1988, %v241
      %v1990 = vpop.permute.xlu0 %1989
      %1993 = vset.pattern.permute.xlu0 0
      %1994 = vperm.xlu0 %1993, %v242
      %v1995 = vpop.permute.xlu0 %1994
      %1998 = vset.pattern.permute.xlu0 0
      %1999 = vperm.xlu0 %1998, %v243
      %v2000 = vpop.permute.xlu0 %1999
      %2003 = vset.pattern.permute.xlu0 0
      %2004 = vperm.xlu0 %2003, %v244
      %v2005 = vpop.permute.xlu0 %2004
      %2008 = vset.pattern.permute.xlu0 0
      %2009 = vperm.xlu0 %2008, %v245
      %v2010 = vpop.permute.xlu0 %2009
      %2013 = vset.pattern.permute.xlu0 0
      %2014 = vperm.xlu0 %2013, %v246
      %v2015 = vpop.permute.xlu0 %2014
      %2018 = vset.pattern.permute.xlu0 0
      %2019 = vperm.xlu0 %2018, %v247
      %v2020 = vpop.permute.xlu0 %2019
      %2023 = vset.pattern.permute.xlu0 0
      %2024 = vperm.xlu0 %2023, %v248
      %v2025 = vpop.permute.xlu0 %2024
      %2028 = vset.pattern.permute.xlu0 0
      %2029 = vperm.xlu0 %2028, %v249
      %v2030 = vpop.permute.xlu0 %2029
      %2033 = vset.pattern.permute.xlu0 0
      %2034 = vperm.xlu0 %2033, %v250
      %v2035 = vpop.permute.xlu0 %2034
      %2038 = vset.pattern.permute.xlu0 0
      %2039 = vperm.xlu0 %2038, %v251
      %v2040 = vpop.permute.xlu0 %2039
      %2043 = vset.pattern.permute.xlu0 0
      %2044 = vperm.xlu0 %2043, %v252
      %v2045 = vpop.permute.xlu0 %2044
      %v2048 = vlaneseq
      %v2049 = vshrl.u32 %v2048, 7
      %v2050 = vsub.s32 0, %v2049
      %v2051 = vrot.slane %v1966, %v2050
      %v2053 = vsub.f32 %v1970, %v2051
      %v2054 = vsub.f32 %v1975, %v2051
      %v2055 = vsub.f32 %v1980, %v2051
      %v2056 = vsub.f32 %v1985, %v2051
      %v2057 = vsub.f32 %v1990, %v2051
      %v2058 = vsub.f32 %v1995, %v2051
      %v2059 = vsub.f32 %v2000, %v2051
      %v2060 = vsub.f32 %v2005, %v2051
      %v2061 = vsub.f32 %v2010, %v2051
      %v2062 = vsub.f32 %v2015, %v2051
      %v2063 = vsub.f32 %v2020, %v2051
      %v2064 = vsub.f32 %v2025, %v2051
      %v2065 = vsub.f32 %v2030, %v2051
      %v2066 = vsub.f32 %v2035, %v2051
      %v2067 = vsub.f32 %v2040, %v2051
      %v2068 = vsub.f32 %v2045, %v2051
      %v2069 = vmul.f32 %v2053, -13.347223
      %v2070 = vmul.f32 %v2054, -13.347223
      %v2071 = vmul.f32 %v2055, -13.347223
      %v2072 = vmul.f32 %v2056, -13.347223
      %v2073 = vmul.f32 %v2057, -13.347223
      %v2074 = vmul.f32 %v2058, -13.347223
      %v2075 = vmul.f32 %v2059, -13.347223
      %v2076 = vmul.f32 %v2060, -13.347223
      %v2077 = vmul.f32 %v2061, -13.347223
      %v2078 = vmul.f32 %v2062, -13.347223
      %v2079 = vmul.f32 %v2063, -13.347223
      %v2080 = vmul.f32 %v2064, -13.347223
      %v2081 = vmul.f32 %v2065, -13.347223
      %v2082 = vmul.f32 %v2066, -13.347223
      %v2083 = vmul.f32 %v2067, -13.347223
      %v2084 = vmul.f32 %v2068, -13.347223
      %v2085 = vmul.f32 %v2069, %v2053
      %v2086 = vmul.f32 %v2070, %v2054
      %v2087 = vmul.f32 %v2071, %v2055
      %v2088 = vmul.f32 %v2072, %v2056
      %v2089 = vmul.f32 %v2073, %v2057
      %v2090 = vmul.f32 %v2074, %v2058
      %v2091 = vmul.f32 %v2075, %v2059
      %v2092 = vmul.f32 %v2076, %v2060
      %v2093 = vmul.f32 %v2077, %v2061
      %v2094 = vmul.f32 %v2078, %v2062
      %v2095 = vmul.f32 %v2079, %v2063
      %v2096 = vmul.f32 %v2080, %v2064
      %v2097 = vmul.f32 %v2081, %v2065
      %v2098 = vmul.f32 %v2082, %v2066
      %v2099 = vmul.f32 %v2083, %v2067
      %v2100 = vmul.f32 %v2084, %v2068
      %v2101 = vmul.f32 %v2085, 1.442695
      %v2102 = vpow.pop %v2101
      %v2103 = vmul.f32 %v2086, 1.442695
      %v2104 = vpow.pop %v2103
      %v2105 = vmul.f32 %v2087, 1.442695
      %v2106 = vpow.pop %v2105
      %v2107 = vmul.f32 %v2088, 1.442695
      %v2108 = vpow.pop %v2107
      %v2109 = vmul.f32 %v2089, 1.442695
      %v2110 = vpow.pop %v2109
      %v2111 = vmul.f32 %v2090, 1.442695
      %v2112 = vpow.pop %v2111
      %v2113 = vmul.f32 %v2091, 1.442695
      %v2114 = vpow.pop %v2113
      %v2115 = vmul.f32 %v2092, 1.442695
      %v2116 = vpow.pop %v2115
      %v2117 = vmul.f32 %v2093, 1.442695
      %v2118 = vpow.pop %v2117
      %v2119 = vmul.f32 %v2094, 1.442695
      %v2120 = vpow.pop %v2119
      %v2121 = vmul.f32 %v2095, 1.442695
      %v2122 = vpow.pop %v2121
      %v2123 = vmul.f32 %v2096, 1.442695
      %v2124 = vpow.pop %v2123
      %v2125 = vmul.f32 %v2097, 1.442695
      %v2126 = vpow.pop %v2125
      %v2127 = vmul.f32 %v2098, 1.442695
      %v2128 = vpow.pop %v2127
      %v2129 = vmul.f32 %v2099, 1.442695
      %v2130 = vpow.pop %v2129
      %v2131 = vmul.f32 %v2100, 1.442695
      %v2132 = vpow.pop %v2131
      %2133 = vst [vmem:[%s235] sm:$0xff] %v2102
      %2134 = vst [vmem:[%s235 + $0x8] sm:$0xff] %v2104
      %2135 = vst [vmem:[%s235 + $0x10] sm:$0xff] %v2106
      %2136 = vst [vmem:[%s235 + $0x18] sm:$0xff] %v2108
      %2137 = vst [vmem:[%s235 + $0x20] sm:$0xff] %v2110
      %2138 = vst [vmem:[%s235 + $0x28] sm:$0xff] %v2112
      %2139 = vst [vmem:[%s235 + $0x30] sm:$0xff] %v2114
      %2140 = vst [vmem:[%s235 + $0x38] sm:$0xff] %v2116
      %2141 = vst [vmem:[%s235 + $0x40] sm:$0xff] %v2118
      %2142 = vst [vmem:[%s235 + $0x48] sm:$0xff] %v2120
      %2143 = vst [vmem:[%s235 + $0x50] sm:$0xff] %v2122
      %2144 = vst [vmem:[%s235 + $0x58] sm:$0xff] %v2124
      %2145 = vst [vmem:[%s235 + $0x60] sm:$0xff] %v2126
      %2146 = vst [vmem:[%s235 + $0x68] sm:$0xff] %v2128
      %2147 = vst [vmem:[%s235 + $0x70] sm:$0xff] %v2130
      %2148 = vst [vmem:[%s235 + $0x78] sm:$0xff] %v2132
      %s2149 = smul.u32 16, %s16
      %p2150 = scmp.lt.s32.totalorder %s2149, 31
      %s2151 = scalar_select %p2150, %s2149, 31
      %s2152 = smul.addr %s2151, 8
      %s2153 = scalar_lea.vmem %s3, %s2152
      %s2154 = smul.u32 16, %s16
      %p2155 = scmp.lt.s32.totalorder %s2154, 31
      %s2156 = scalar_select %p2155, %s2154, 31
      %s2157 = smul.addr %s2156, 8
      %s2158 = scalar_lea.vmem %s4, %s2157
      // Predicated region
      $region33: #{continuous_energy_forward.8} parent=31 // pred_check
        %p2159 = pneg %p107
      $region34: #{continuous_energy_forward.8} parent=31 // pred_check_branch
        %2161 = sbr.rel (%p2159) target = $region36
      $region35: #{continuous_energy_forward.8} parent=31 // pred_region
        %s2162 = smul.u32 16, %s16
      $region36: #{continuous_energy_forward.8} parent=31 // pred_fallthru
        _
      // Predicated region
      $region37: #{continuous_energy_forward.8} parent=31 // pred_check
        %p2163 = pneg %p133
      $region38: #{continuous_energy_forward.8} parent=31 // pred_check_branch
        %2165 = sbr.rel (%p2163) target = $region40
      $region39: #{continuous_energy_forward.8} parent=31 // pred_region
        %s2166 = smul.u32 16, %s16
      $region40: #{continuous_energy_forward.8} parent=31 // pred_fallthru
        _
    $region32: #{continuous_energy_forward.8} parent=5 // pred_fallthru
      _
    %p2167 = scmp.le.s32.totalorder 2, %s11
    // Predicated region
    $region41: #{continuous_energy_forward.8} parent=5 // pred_check
      %p2168 = pneg %p2167
    $region42: #{continuous_energy_forward.8} parent=5 // pred_check_branch
      %2170 = sbr.rel (%p2168) target = $region44
    $region43: #{continuous_energy_forward.8} parent=5 // pred_region
      %s2171 = ssub.s32 %s11, 2
      // Predicated region
      $region45: #{continuous_energy_forward.8} parent=43 // pred_check
        %p2172 = pneg %p113
      $region46: #{continuous_energy_forward.8} parent=43 // pred_check_branch
        %2174 = sbr.rel (%p2172) target = $region48
      $region47: #{continuous_energy_forward.8} parent=43 // pred_region
        %s2175 = smul.u32 16, %s17
        %p2176 = scmp.lt.s32.totalorder %s2175, 31
        %s2177 = scalar_select %p2176, %s2175, 31
        %s2178 = smul.addr %s2177, 8
        %s2179 = scalar_lea.vmem %s3, %s2178
      $region48: #{continuous_energy_forward.8} parent=43 // pred_fallthru
        _
      // Predicated region
      $region49: #{continuous_energy_forward.8} parent=43 // pred_check
        %p2180 = pneg %p139
      $region50: #{continuous_energy_forward.8} parent=43 // pred_check_branch
        %2182 = sbr.rel (%p2180) target = $region52
      $region51: #{continuous_energy_forward.8} parent=43 // pred_region
        %s2183 = smul.u32 16, %s17
        %p2184 = scmp.lt.s32.totalorder %s2183, 31
        %s2185 = scalar_select %p2184, %s2183, 31
        %s2186 = smul.addr %s2185, 8
        %s2187 = scalar_lea.vmem %s4, %s2186
      $region52: #{continuous_energy_forward.8} parent=43 // pred_fallthru
        _
    $region44: #{continuous_energy_forward.8} parent=5 // pred_fallthru
      _
  $region6: #{continuous_energy_forward.8} parent=0 // loop_footer
    %s15 = sadd.s32 1, %s11
  $region7: #{continuous_energy_forward.8} parent=0 // loop_footer_branch
    %10 = sbr.rel target = $region3
  $region8: #{continuous_energy_forward.8} parent=0 // loop_exit
    _

// kernel: continuous_energy_forward.9
$region0: #{continuous_energy_forward.9}
  #allocation0 [shape = 'u32[]', space=smem, size = 0x4, offset = 0x4, fixed_abs, tag = 'smem constant byte address 0x4 - core index']
  #allocation1 [shape = 'u32[144,128]{1,0:T(1,128)}', space=vmem, size = 0x12000, scoped, tag = 'internal scratch']
  %s0 = inlined_call_operand.vmem [shape: f32[32,128], index: 0, kind: input, shape index: {}]
  %s1 = inlined_call_operand.vmem [shape: f32[256,1], index: 1, kind: input, shape index: {}]
  %s2 = inlined_call_operand.vmem [shape: f32[256,128], index: 2, kind: input, shape index: {}]
  %s3 = inlined_call_operand.vmem [shape: bf16[256,32], index: 3, kind: input, shape index: {}]
  %s4 = inlined_call_operand.vmem [shape: f32[128,128], index: 4, kind: input, shape index: {}]
  %s5 = inlined_call_operand.vmem [shape: f32[1,128], index: 5, kind: input, shape index: {}]
  %s6 = inlined_call_operand.vmem [shape: bf16[256,128], index: 6, kind: output, shape index: {}]
  %s7 = sld [smem:[#allocation0]]
  $region57: #{continuous_energy_forward.9} parent=0
    _
  %s9 = ssub.s32 1, %s7
  %s10 = scalar_select 0, %s9, %s7
  loop: start=0, step=1, limit=4
  $region2: #{continuous_energy_forward.9} parent=0 // loop_pre_header
    _
  $region3: #{continuous_energy_forward.9} parent=0 // loop_header
    %s12 = sphi 0, %s16
    %p13 = scmp.ge.s32.totalorder %s12, 4
    %s20 = sphi 0, %s20
    %s22 = sphi 0, %s20
    %s23 = sphi 0, %s22
    %s37 = sphi 0, %s23
    %s43 = sphi 0, %s45
    %s46 = sphi 0, %s43
    %s47 = sphi 0, %s46
    %s63 = sphi 0, %s47
    %s69 = sphi 0, %s71
    %s72 = sphi 0, %s69
    %s73 = sphi 0, %s72
    %s89 = sphi 0, %s73
    %s95 = sphi 0, %s97
    %s98 = sphi 0, %s95
    %s99 = sphi 0, %s98
    %s115 = sphi 0, %s99
    %s119 = sphi 0, %s119
    %s121 = sphi 0, %s119
    %s122 = sphi 0, %s121
    %s136 = sphi 0, %s122
    %s140 = sphi 0, %s140
    %s142 = sphi 0, %s140
    %s143 = sphi 0, %s142
    %s157 = sphi 0, %s143
    %s163 = sphi 0, %s165
    %s166 = sphi 0, %s163
    %s167 = sphi 0, %s166
    %s183 = sphi 0, %s167
  $region4: #{continuous_energy_forward.9} parent=0 // loop_header_branch
    %15 = sbr.rel (%p13) target = $region8
  $region5: #{continuous_energy_forward.9} parent=0 // loop_body
    %s17 = ssub.s32 %s12, 1
    %s18 = ssub.s32 %s12, 2
    %s19 = sadd.s32 %s12, 1
    %s21 = sadd.s32 %s20, 1
    %p24 = scmp.eq.s32.totalorder %s12, 1
    %p25 = scmp.ne.s32.totalorder %s20, %s22
    %p26 = scmp.eq.s32.totalorder %s12, 0
    %p27 = por %p25, %p26
    %p28 = scmp.ne.s32.totalorder %s20, %s22
    %p29 = scmp.eq.s32.totalorder %s17, 1
    %p30 = por %p28, %p29
    %p31 = scmp.ne.s32.totalorder %s22, %s23
    %p32 = scmp.eq.s32.totalorder %s17, 0
    %p33 = por %p31, %p32
    %p34 = scmp.ne.s32.totalorder %s22, %s23
    %p35 = scmp.eq.s32.totalorder %s18, 1
    %p36 = por %p34, %p35
    %p38 = scmp.ne.s32.totalorder %s23, %s37
    %p39 = scmp.eq.s32.totalorder %s18, 0
    %p40 = por %p38, %p39
    %s41 = ssub.s32 %s12, %s19
    %p42 = scmp.eq.s32.totalorder %s41, 0
    %s44 = sadd.s32 %s43, 1
    %s45 = scalar_select %p42, %s43, %s44
    %p48 = pneg %p42
    %p49 = scmp.eq.s32.totalorder %s12, 1
    %p50 = por %p48, %p49
    %p51 = scmp.ne.s32.totalorder %s43, %s46
    %p52 = scmp.eq.s32.totalorder %s12, 0
    %p53 = por %p51, %p52
    %p54 = scmp.ne.s32.totalorder %s43, %s46
    %p55 = scmp.eq.s32.totalorder %s17, 1
    %p56 = por %p54, %p55
    %p57 = scmp.ne.s32.totalorder %s46, %s47
    %p58 = scmp.eq.s32.totalorder %s17, 0
    %p59 = por %p57, %p58
    %p60 = scmp.ne.s32.totalorder %s46, %s47
    %p61 = scmp.eq.s32.totalorder %s18, 1
    %p62 = por %p60, %p61
    %p64 = scmp.ne.s32.totalorder %s47, %s63
    %p65 = scmp.eq.s32.totalorder %s18, 0
    %p66 = por %p64, %p65
    %s67 = ssub.s32 %s12, %s19
    %p68 = scmp.eq.s32.totalorder %s67, 0
    %s70 = sadd.s32 %s69, 1
    %s71 = scalar_select %p68, %s69, %s70
    %p74 = pneg %p68
    %p75 = scmp.eq.s32.totalorder %s12, 1
    %p76 = por %p74, %p75
    %p77 = scmp.ne.s32.totalorder %s69, %s72
    %p78 = scmp.eq.s32.totalorder %s12, 0
    %p79 = por %p77, %p78
    %p80 = scmp.ne.s32.totalorder %s69, %s72
    %p81 = scmp.eq.s32.totalorder %s17, 1
    %p82 = por %p80, %p81
    %p83 = scmp.ne.s32.totalorder %s72, %s73
    %p84 = scmp.eq.s32.totalorder %s17, 0
    %p85 = por %p83, %p84
    %p86 = scmp.ne.s32.totalorder %s72, %s73
    %p87 = scmp.eq.s32.totalorder %s18, 1
    %p88 = por %p86, %p87
    %p90 = scmp.ne.s32.totalorder %s73, %s89
    %p91 = scmp.eq.s32.totalorder %s18, 0
    %p92 = por %p90, %p91
    %s93 = ssub.s32 %s12, %s19
    %p94 = scmp.eq.s32.totalorder %s93, 0
    %s96 = sadd.s32 %s95, 1
    %s97 = scalar_select %p94, %s95, %s96
    %p100 = pneg %p94
    %p101 = scmp.eq.s32.totalorder %s12, 1
    %p102 = por %p100, %p101
    %p103 = scmp.ne.s32.totalorder %s95, %s98
    %p104 = scmp.eq.s32.totalorder %s12, 0
    %p105 = por %p103, %p104
    %p106 = scmp.ne.s32.totalorder %s95, %s98
    %p107 = scmp.eq.s32.totalorder %s17, 1
    %p108 = por %p106, %p107
    %p109 = scmp.ne.s32.totalorder %s98, %s99
    %p110 = scmp.eq.s32.totalorder %s17, 0
    %p111 = por %p109, %p110
    %p112 = scmp.ne.s32.totalorder %s98, %s99
    %p113 = scmp.eq.s32.totalorder %s18, 1
    %p114 = por %p112, %p113
    %p116 = scmp.ne.s32.totalorder %s99, %s115
    %p117 = scmp.eq.s32.totalorder %s18, 0
    %p118 = por %p116, %p117
    %s120 = sadd.s32 %s119, 1
    %p123 = scmp.eq.s32.totalorder %s12, 1
    %p124 = scmp.ne.s32.totalorder %s119, %s121
    %p125 = scmp.eq.s32.totalorder %s12, 0
    %p126 = por %p124, %p125
    %p127 = scmp.ne.s32.totalorder %s119, %s121
    %p128 = scmp.eq.s32.totalorder %s17, 1
    %p129 = por %p127, %p128
    %p130 = scmp.ne.s32.totalorder %s121, %s122
    %p131 = scmp.eq.s32.totalorder %s17, 0
    %p132 = por %p130, %p131
    %p133 = scmp.ne.s32.totalorder %s121, %s122
    %p134 = scmp.eq.s32.totalorder %s18, 1
    %p135 = por %p133, %p134
    %p137 = scmp.ne.s32.totalorder %s122, %s136
    %p138 = scmp.eq.s32.totalorder %s18, 0
    %p139 = por %p137, %p138
    %s141 = sadd.s32 %s140, 1
    %p144 = scmp.eq.s32.totalorder %s12, 1
    %p145 = scmp.ne.s32.totalorder %s140, %s142
    %p146 = scmp.eq.s32.totalorder %s12, 0
    %p147 = por %p145, %p146
    %p148 = scmp.ne.s32.totalorder %s140, %s142
    %p149 = scmp.eq.s32.totalorder %s17, 1
    %p150 = por %p148, %p149
    %p151 = scmp.ne.s32.totalorder %s142, %s143
    %p152 = scmp.eq.s32.totalorder %s17, 0
    %p153 = por %p151, %p152
    %p154 = scmp.ne.s32.totalorder %s142, %s143
    %p155 = scmp.eq.s32.totalorder %s18, 1
    %p156 = por %p154, %p155
    %p158 = scmp.ne.s32.totalorder %s143, %s157
    %p159 = scmp.eq.s32.totalorder %s18, 0
    %p160 = por %p158, %p159
    %s161 = ssub.s32 %s12, %s19
    %p162 = scmp.eq.s32.totalorder %s161, 0
    %s164 = sadd.s32 %s163, 1
    %s165 = scalar_select %p162, %s163, %s164
    %p168 = pneg %p162
    %p169 = scmp.eq.s32.totalorder %s12, 1
    %p170 = por %p168, %p169
    %p171 = scmp.ne.s32.totalorder %s163, %s166
    %p172 = scmp.eq.s32.totalorder %s12, 0
    %p173 = por %p171, %p172
    %p174 = scmp.ne.s32.totalorder %s163, %s166
    %p175 = scmp.eq.s32.totalorder %s17, 1
    %p176 = por %p174, %p175
    %p177 = scmp.ne.s32.totalorder %s166, %s167
    %p178 = scmp.eq.s32.totalorder %s17, 0
    %p179 = por %p177, %p178
    %p180 = scmp.ne.s32.totalorder %s166, %s167
    %p181 = scmp.eq.s32.totalorder %s18, 1
    %p182 = por %p180, %p181
    %p184 = scmp.ne.s32.totalorder %s167, %s183
    %p185 = scmp.eq.s32.totalorder %s18, 0
    %p186 = por %p184, %p185
    %p187 = scmp.le.s32.totalorder 1, %s12
    %p188 = scmp.lt.s32.totalorder %s12, 3
    %p189 = pnand %p187, %p188
    %p190 = pneg %p189
    // Predicated region
    $region9: #{continuous_energy_forward.9} parent=5 // pred_check
      _
    $region10: #{continuous_energy_forward.9} parent=5 // pred_check_branch
      %192 = sbr.rel (%p189) target = $region12
    $region11: #{continuous_energy_forward.9} parent=5 // pred_region
      %s193 = ssub.s32 %s12, 1
      // Predicated region
      $region13: #{continuous_energy_forward.9} parent=11 // pred_check
        %p194 = pneg %p33
      $region14: #{continuous_energy_forward.9} parent=11 // pred_check_branch
        %196 = sbr.rel (%p194) target = $region16
      $region15: #{continuous_energy_forward.9} parent=11 // pred_region
        _
      $region16: #{continuous_energy_forward.9} parent=11 // pred_fallthru
        _
      // Predicated region
      $region17: #{continuous_energy_forward.9} parent=11 // pred_check
        %p197 = pneg %p132
      $region18: #{continuous_energy_forward.9} parent=11 // pred_check_branch
        %199 = sbr.rel (%p197) target = $region20
      $region19: #{continuous_energy_forward.9} parent=11 // pred_region
        _
      $region20: #{continuous_energy_forward.9} parent=11 // pred_fallthru
        _
      // Predicated region
      $region21: #{continuous_energy_forward.9} parent=11 // pred_check
        %p200 = pneg %p153
      $region22: #{continuous_energy_forward.9} parent=11 // pred_check_branch
        %202 = sbr.rel (%p200) target = $region24
      $region23: #{continuous_energy_forward.9} parent=11 // pred_region
        _
      $region24: #{continuous_energy_forward.9} parent=11 // pred_fallthru
        _
    $region12: #{continuous_energy_forward.9} parent=5 // pred_fallthru
      _
    %p203 = scmp.lt.s32.totalorder %s12, 2
    // Predicated region
    $region25: #{continuous_energy_forward.9} parent=5 // pred_check
      %p204 = pneg %p203
    $region26: #{continuous_energy_forward.9} parent=5 // pred_check_branch
      %206 = sbr.rel (%p204) target = $region28
    $region27: #{continuous_energy_forward.9} parent=5 // pred_region
      // Predicated region
      $region29: #{continuous_energy_forward.9} parent=27 // pred_check
        %p207 = pneg %p53
      $region30: #{continuous_energy_forward.9} parent=27 // pred_check_branch
        %209 = sbr.rel (%p207) target = $region32
      $region31: #{continuous_energy_forward.9} parent=27 // pred_region
        %s210 = smul.u32 16, %s12
        %p211 = scmp.lt.s32.totalorder %s210, 31
        %s212 = scalar_select %p211, %s210, 31
        %s213 = smul.addr %s212, 8
        %s214 = scalar_lea.vmem %s1, %s213
        %s215 = smul.u32 16, %s12
      $region32: #{continuous_energy_forward.9} parent=27 // pred_fallthru
        _
      // Predicated region
      $region33: #{continuous_energy_forward.9} parent=27 // pred_check
        %p216 = pneg %p79
      $region34: #{continuous_energy_forward.9} parent=27 // pred_check_branch
        %218 = sbr.rel (%p216) target = $region36
      $region35: #{continuous_energy_forward.9} parent=27 // pred_region
        %s219 = smul.u32 16, %s12
        %p220 = scmp.lt.s32.totalorder %s219, 31
        %s221 = scalar_select %p220, %s219, 31
        %s222 = smul.addr %s221, 8
        %s223 = scalar_lea.vmem %s2, %s222
        %s224 = smul.u32 16, %s12
      $region36: #{continuous_energy_forward.9} parent=27 // pred_fallthru
        _
      // Predicated region
      $region37: #{continuous_energy_forward.9} parent=27 // pred_check
        %p225 = pneg %p105
      $region38: #{continuous_energy_forward.9} parent=27 // pred_check_branch
        %227 = sbr.rel (%p225) target = $region40
      $region39: #{continuous_energy_forward.9} parent=27 // pred_region
        %s228 = smul.u32 16, %s12
        %p229 = scmp.lt.s32.totalorder %s228, 31
        %s230 = scalar_select %p229, %s228, 31
        %s231 = smul.addr %s230, 4
        %s232 = scalar_lea.vmem %s3, %s231
        %s233 = smul.u32 16, %s12
      $region40: #{continuous_energy_forward.9} parent=27 // pred_fallthru
        _
    $region28: #{continuous_energy_forward.9} parent=5 // pred_fallthru
      _
    %p234 = scmp.le.s32.totalorder 1, %s12
    %p235 = scmp.lt.s32.totalorder %s12, 3
    %p236 = pnand %p234, %p235
    %p237 = pneg %p236
    // Predicated region
    $region41: #{continuous_energy_forward.9} parent=5 // pred_check
      _
    $region42: #{continuous_energy_forward.9} parent=5 // pred_check_branch
      %239 = sbr.rel (%p236) target = $region44
    $region43: #{continuous_energy_forward.9} parent=5 // pred_region
      %s240 = ssub.s32 %s12, 1
      %p241 = pneg %p33
      %p242 = pneg %p30
      %s243 = smul.u32 16, %s17
      %p244 = scmp.lt.s32.totalorder %s243, 31
      %s245 = scalar_select %p244, %s243, 31
      %s246 = smul.addr %s245, 8
      %s247 = scalar_lea.vmem %s1, %s246
      %p248 = pneg %p59
      %p249 = pneg %p56
      %s250 = smul.u32 16, %s17
      %p251 = scmp.lt.s32.totalorder %s250, 31
      %s252 = scalar_select %p251, %s250, 31
      %s253 = smul.addr %s252, 8
      %s254 = scalar_lea.vmem %s2, %s253
      %p255 = pneg %p85
      %p256 = pneg %p82
      %s257 = smul.u32 16, %s17
      %p258 = scmp.lt.s32.totalorder %s257, 31
      %s259 = scalar_select %p258, %s257, 31
      %s260 = smul.addr %s259, 4
      %s261 = scalar_lea.vmem %s3, %s260
      %p262 = pneg %p111
      %p263 = pneg %p108
      %p264 = pneg %p132
      %p265 = pneg %p129
      %p266 = pneg %p153
      %p267 = pneg %p150
      %p268 = pneg %p179
      %p269 = pneg %p176
      %s270 = smul.u32 16, %s17
      %p271 = scmp.lt.s32.totalorder %s270, 31
      %s272 = scalar_select %p271, %s270, 31
      %s273 = smul.addr %s272, 4
      %s274 = scalar_lea.vmem %s6, %s273
      %s275 = smul.u32 16, %s17
      %p276 = scmp.lt.s32.totalorder %s275, 31
      %s277 = scalar_select %p276, %s275, 31
      %s278 = smul.addr %s277, 8
      %s279 = scalar_lea.vmem %s1, %s278
      %s280 = smul.u32 16, %s17
      %s281 = smul.u32 16, %s17
      %p282 = scmp.lt.s32.totalorder %s281, 31
      %s283 = scalar_select %p282, %s281, 31
      %s284 = smul.addr %s283, 8
      %s285 = scalar_lea.vmem %s2, %s284
      %s286 = smul.u32 16, %s17
      %s287 = smul.u32 16, %s17
      %p288 = scmp.lt.s32.totalorder %s287, 31
      %s289 = scalar_select %p288, %s287, 31
      %s290 = smul.addr %s289, 4
      %s291 = scalar_lea.vmem %s3, %s290
      %s292 = smul.u32 16, %s17
      %s293 = smul.u32 16, %s17
      %p294 = scmp.lt.s32.totalorder %s293, 31
      %s295 = scalar_select %p294, %s293, 31
      %s296 = smul.addr %s295, 4
      %s297 = scalar_lea.vmem %s6, %s296
      %s298 = smul.u32 16, %s17
      %v300 = vld [vmem:[%s285] sm:$0xff]
      %v301 = vld [vmem:[%s285 + $0x8] sm:$0xff]
      %v302 = vld [vmem:[%s285 + $0x10] sm:$0xff]
      %v303 = vld [vmem:[%s285 + $0x18] sm:$0xff]
      %v304 = vld [vmem:[%s285 + $0x20] sm:$0xff]
      %v305 = vld [vmem:[%s285 + $0x28] sm:$0xff]
      %v306 = vld [vmem:[%s285 + $0x30] sm:$0xff]
      %v307 = vld [vmem:[%s285 + $0x38] sm:$0xff]
      %v308 = vld [vmem:[%s285 + $0x40] sm:$0xff]
      %v309 = vld [vmem:[%s285 + $0x48] sm:$0xff]
      %v310 = vld [vmem:[%s285 + $0x50] sm:$0xff]
      %v311 = vld [vmem:[%s285 + $0x58] sm:$0xff]
      %v312 = vld [vmem:[%s285 + $0x60] sm:$0xff]
      %v313 = vld [vmem:[%s285 + $0x68] sm:$0xff]
      %v314 = vld [vmem:[%s285 + $0x70] sm:$0xff]
      %v315 = vld [vmem:[%s285 + $0x78] sm:$0xff]
      %v316 = vld [vmem:[%s4] sm:$0xff]
      %v317 = vld [vmem:[%s4 + $0x8] sm:$0xff]
      %v318 = vld [vmem:[%s4 + $0x10] sm:$0xff]
      %v319 = vld [vmem:[%s4 + $0x18] sm:$0xff]
      %v320 = vld [vmem:[%s4 + $0x20] sm:$0xff]
      %v321 = vld [vmem:[%s4 + $0x28] sm:$0xff]
      %v322 = vld [vmem:[%s4 + $0x30] sm:$0xff]
      %v323 = vld [vmem:[%s4 + $0x38] sm:$0xff]
      %v324 = vld [vmem:[%s4 + $0x40] sm:$0xff]
      %v325 = vld [vmem:[%s4 + $0x48] sm:$0xff]
      %v326 = vld [vmem:[%s4 + $0x50] sm:$0xff]
      %v327 = vld [vmem:[%s4 + $0x58] sm:$0xff]
      %v328 = vld [vmem:[%s4 + $0x60] sm:$0xff]
      %v329 = vld [vmem:[%s4 + $0x68] sm:$0xff]
      %v330 = vld [vmem:[%s4 + $0x70] sm:$0xff]
      %v331 = vld [vmem:[%s4 + $0x78] sm:$0xff]
      %v332 = vld [vmem:[%s5] sm:$0x1]
      %v334 = vlaneseq
      %v335 = vshrl.u32 %v334, 7
      %v336 = vsub.s32 0, %v335
      %v337 = vrot.slane %v332, %v336
      %339 = vmatprep.subr.mxu0 0.0
      %340 = vmatpush1.msra.mxu0 %v316
      %341 = vmatprep.subr.mxu0 0.0
      %342 = vmatpush1.msra.mxu0 %v317
      %343 = vmatprep.subr.mxu0 0.0
      %344 = vmatpush1.msra.mxu0 %v318
      %345 = vmatprep.subr.mxu0 0.0
      %346 = vmatpush1.msra.mxu0 %v319
      %347 = vmatprep.subr.mxu0 0.0
      %348 = vmatpush1.msra.mxu0 %v320
      %349 = vmatprep.subr.mxu0 0.0
      %350 = vmatpush1.msra.mxu0 %v321
      %351 = vmatprep.subr.mxu0 0.0
      %352 = vmatpush1.msra.mxu0 %v322
      %353 = vmatprep.subr.mxu0 0.0
      %354 = vmatpush1.msra.mxu0 %v323
      %355 = vmatprep.subr.mxu0 0.0
      %356 = vmatpush1.msra.mxu0 %v324
      %357 = vmatprep.subr.mxu0 0.0
      %358 = vmatpush1.msra.mxu0 %v325
      %359 = vmatprep.subr.mxu0 0.0
      %360 = vmatpush1.msra.mxu0 %v326
      %361 = vmatprep.subr.mxu0 0.0
      %362 = vmatpush1.msra.mxu0 %v327
      %363 = vmatprep.subr.mxu0 0.0
      %364 = vmatpush1.msra.mxu0 %v328
      %365 = vmatprep.subr.mxu0 0.0
      %366 = vmatpush1.msra.mxu0 %v329
      %367 = vmatprep.subr.mxu0 0.0
      %368 = vmatpush1.msra.mxu0 %v330
      %369 = vmatprep.subr.mxu0 0.0
      %370 = vmatpush1.msra.mxu0 %v331
      %371 = vmatprep.subr.mxu0 0.0
      %372 = vmatpush1.msra.mxu0 0.0
      %373 = vmatprep.subr.mxu0 0.0
      %374 = vmatpush1.msra.mxu0 0.0
      %375 = vmatprep.subr.mxu0 0.0
      %376 = vmatpush1.msra.mxu0 0.0
      %377 = vmatprep.subr.mxu0 0.0
      %378 = vmatpush1.msra.mxu0 0.0
      %379 = vmatprep.subr.mxu0 0.0
      %380 = vmatpush1.msra.mxu0 0.0
      %381 = vmatprep.subr.mxu0 0.0
      %382 = vmatpush1.msra.mxu0 0.0
      %383 = vmatprep.subr.mxu0 0.0
      %384 = vmatpush1.msra.mxu0 0.0
      %385 = vmatprep.subr.mxu0 0.0
      %386 = vmatpush1.msra.mxu0 0.0
      %387 = vmatprep.subr.mxu0 0.0
      %388 = vmatpush1.msra.mxu0 0.0
      %389 = vmatprep.subr.mxu0 0.0
      %390 = vmatpush1.msra.mxu0 0.0
      %391 = vmatprep.subr.mxu0 0.0
      %392 = vmatpush1.msra.mxu0 0.0
      %393 = vmatprep.subr.mxu0 0.0
      %394 = vmatpush1.msra.mxu0 0.0
      %395 = vmatprep.subr.mxu0 0.0
      %396 = vmatpush1.msra.mxu0 0.0
      %397 = vmatprep.subr.mxu0 0.0
      %398 = vmatpush1.msra.mxu0 0.0
      %399 = vmatprep.subr.mxu0 0.0
      %400 = vmatpush1.msra.mxu0 0.0
      %401 = vmatprep.subr.mxu0 0.0
      %402 = vmatpush1.msra.mxu0 0.0
      %403 = vmatprep.mubr.f32.mxu0 0.0
      %404 = vmatmul.mubr.f32.gmra.mrb[0].mxu0 %v300
      %v405 = vpop.f32.mrb[0].mxu0
      %v406 = vadd.f32 %v337, %v405
      %v407 = vpop.f32.mrb[0].mxu0
      %408 = vmatprep.mubr.f32.mxu0 0.0
      %409 = vmatmul.mubr.f32.gmra.mrb[0].mxu0 %v301
      %v410 = vpop.f32.mrb[0].mxu0
      %v411 = vadd.f32 %v337, %v410
      %v412 = vpop.f32.mrb[0].mxu0
      %413 = vmatprep.mubr.f32.mxu0 0.0
      %414 = vmatmul.mubr.f32.gmra.mrb[0].mxu0 %v302
      %v415 = vpop.f32.mrb[0].mxu0
      %v416 = vadd.f32 %v337, %v415
      %v417 = vpop.f32.mrb[0].mxu0
      %418 = vmatprep.mubr.f32.mxu0 0.0
      %419 = vmatmul.mubr.f32.gmra.mrb[0].mxu0 %v303
      %v420 = vpop.f32.mrb[0].mxu0
      %v421 = vadd.f32 %v337, %v420
      %v422 = vpop.f32.mrb[0].mxu0
      %423 = vmatprep.mubr.f32.mxu0 0.0
      %424 = vmatmul.mubr.f32.gmra.mrb[0].mxu0 %v304
      %v425 = vpop.f32.mrb[0].mxu0
      %v426 = vadd.f32 %v337, %v425
      %v427 = vpop.f32.mrb[0].mxu0
      %428 = vmatprep.mubr.f32.mxu0 0.0
      %429 = vmatmul.mubr.f32.gmra.mrb[0].mxu0 %v305
      %v430 = vpop.f32.mrb[0].mxu0
      %v431 = vadd.f32 %v337, %v430
      %v432 = vpop.f32.mrb[0].mxu0
      %433 = vmatprep.mubr.f32.mxu0 0.0
      %434 = vmatmul.mubr.f32.gmra.mrb[0].mxu0 %v306
      %v435 = vpop.f32.mrb[0].mxu0
      %v436 = vadd.f32 %v337, %v435
      %v437 = vpop.f32.mrb[0].mxu0
      %438 = vmatprep.mubr.f32.mxu0 0.0
      %439 = vmatmul.mubr.f32.gmra.mrb[0].mxu0 %v307
      %v440 = vpop.f32.mrb[0].mxu0
      %v441 = vadd.f32 %v337, %v440
      %v442 = vpop.f32.mrb[0].mxu0
      %443 = vmatprep.mubr.f32.mxu0 0.0
      %444 = vmatmul.mubr.f32.gmra.mrb[0].mxu0 %v308
      %v445 = vpop.f32.mrb[0].mxu0
      %v446 = vadd.f32 %v337, %v445
      %v447 = vpop.f32.mrb[0].mxu0
      %448 = vmatprep.mubr.f32.mxu0 0.0
      %449 = vmatmul.mubr.f32.gmra.mrb[0].mxu0 %v309
      %v450 = vpop.f32.mrb[0].mxu0
      %v451 = vadd.f32 %v337, %v450
      %v452 = vpop.f32.mrb[0].mxu0
      %453 = vmatprep.mubr.f32.mxu0 0.0
      %454 = vmatmul.mubr.f32.gmra.mrb[0].mxu0 %v310
      %v455 = vpop.f32.mrb[0].mxu0
      %v456 = vadd.f32 %v337, %v455
      %v457 = vpop.f32.mrb[0].mxu0
      %458 = vmatprep.mubr.f32.mxu0 0.0
      %459 = vmatmul.mubr.f32.gmra.mrb[0].mxu0 %v311
      %v460 = vpop.f32.mrb[0].mxu0
      %v461 = vadd.f32 %v337, %v460
      %v462 = vpop.f32.mrb[0].mxu0
      %463 = vmatprep.mubr.f32.mxu0 0.0
      %464 = vmatmul.mubr.f32.gmra.mrb[0].mxu0 %v312
      %v465 = vpop.f32.mrb[0].mxu0
      %v466 = vadd.f32 %v337, %v465
      %v467 = vpop.f32.mrb[0].mxu0
      %468 = vmatprep.mubr.f32.mxu0 0.0
      %469 = vmatmul.mubr.f32.gmra.mrb[0].mxu0 %v313
      %v470 = vpop.f32.mrb[0].mxu0
      %v471 = vadd.f32 %v337, %v470
      %v472 = vpop.f32.mrb[0].mxu0
      %473 = vmatprep.mubr.f32.mxu0 0.0
      %474 = vmatmul.mubr.f32.gmra.mrb[0].mxu0 %v314
      %v475 = vpop.f32.mrb[0].mxu0
      %v476 = vadd.f32 %v337, %v475
      %v477 = vpop.f32.mrb[0].mxu0
      %478 = vmatprep.mubr.f32.mxu0 0.0
      %479 = vmatmul.mubr.f32.gmra.mrb[0].mxu0 %v315
      %v480 = vpop.f32.mrb[0].mxu0
      %v481 = vadd.f32 %v337, %v480
      %v482 = vpop.f32.mrb[0].mxu0
      %483 = vdwg.mxu0
      %v484 = vmax.f32 %v406, 0.0
      %v485 = vmax.f32 %v411, 0.0
      %v486 = vmax.f32 %v416, 0.0
      %v487 = vmax.f32 %v421, 0.0
      %v488 = vmax.f32 %v426, 0.0
      %v489 = vmax.f32 %v431, 0.0
      %v490 = vmax.f32 %v436, 0.0
      %v491 = vmax.f32 %v441, 0.0
      %v492 = vmax.f32 %v446, 0.0
      %v493 = vmax.f32 %v451, 0.0
      %v494 = vmax.f32 %v456, 0.0
      %v495 = vmax.f32 %v461, 0.0
      %v496 = vmax.f32 %v466, 0.0
      %v497 = vmax.f32 %v471, 0.0
      %v498 = vmax.f32 %v476, 0.0
      %v499 = vmax.f32 %v481, 0.0
      %v500 = vand.u32 2147483647, %v406
      %v501 = vand.u32 2147483647, %v411
      %v502 = vand.u32 2147483647, %v416
      %v503 = vand.u32 2147483647, %v421
      %v504 = vand.u32 2147483647, %v426
      %v505 = vand.u32 2147483647, %v431
      %v506 = vand.u32 2147483647, %v436
      %v507 = vand.u32 2147483647, %v441
      %v508 = vand.u32 2147483647, %v446
      %v509 = vand.u32 2147483647, %v451
      %v510 = vand.u32 2147483647, %v456
      %v511 = vand.u32 2147483647, %v461
      %v512 = vand.u32 2147483647, %v466
      %v513 = vand.u32 2147483647, %v471
      %v514 = vand.u32 2147483647, %v476
      %v515 = vand.u32 2147483647, %v481
      %v516 = vsub.f32 0.0, %v500
      %v517 = vsub.f32 0.0, %v501
      %v518 = vsub.f32 0.0, %v502
      %v519 = vsub.f32 0.0, %v503
      %v520 = vsub.f32 0.0, %v504
      %v521 = vsub.f32 0.0, %v505
      %v522 = vsub.f32 0.0, %v506
      %v523 = vsub.f32 0.0, %v507
      %v524 = vsub.f32 0.0, %v508
      %v525 = vsub.f32 0.0, %v509
      %v526 = vsub.f32 0.0, %v510
      %v527 = vsub.f32 0.0, %v511
      %v528 = vsub.f32 0.0, %v512
      %v529 = vsub.f32 0.0, %v513
      %v530 = vsub.f32 0.0, %v514
      %v531 = vsub.f32 0.0, %v515
      %v532 = vmul.f32 %v516, 1.442695
      %v533 = vpow.pop %v532
      %v534 = vmul.f32 %v517, 1.442695
      %v535 = vpow.pop %v534
      %v536 = vmul.f32 %v518, 1.442695
      %v537 = vpow.pop %v536
      %v538 = vmul.f32 %v519, 1.442695
      %v539 = vpow.pop %v538
      %v540 = vmul.f32 %v520, 1.442695
      %v541 = vpow.pop %v540
      %v542 = vmul.f32 %v521, 1.442695
      %v543 = vpow.pop %v542
      %v544 = vmul.f32 %v522, 1.442695
      %v545 = vpow.pop %v544
      %v546 = vmul.f32 %v523, 1.442695
      %v547 = vpow.pop %v546
      %v548 = vmul.f32 %v524, 1.442695
      %v549 = vpow.pop %v548
      %v550 = vmul.f32 %v525, 1.442695
      %v551 = vpow.pop %v550
      %v552 = vmul.f32 %v526, 1.442695
      %v553 = vpow.pop %v552
      %v554 = vmul.f32 %v527, 1.442695
      %v555 = vpow.pop %v554
      %v556 = vmul.f32 %v528, 1.442695
      %v557 = vpow.pop %v556
      %v558 = vmul.f32 %v529, 1.442695
      %v559 = vpow.pop %v558
      %v560 = vmul.f32 %v530, 1.442695
      %v561 = vpow.pop %v560
      %v562 = vmul.f32 %v531, 1.442695
      %v563 = vpow.pop %v562
      %v564 = vadd.f32 %v533, 1.0
      %v565 = vadd.f32 %v535, 1.0
      %v566 = vadd.f32 %v537, 1.0
      %v567 = vadd.f32 %v539, 1.0
      %v568 = vadd.f32 %v541, 1.0
      %v569 = vadd.f32 %v543, 1.0
      %v570 = vadd.f32 %v545, 1.0
      %v571 = vadd.f32 %v547, 1.0
      %v572 = vadd.f32 %v549, 1.0
      %v573 = vadd.f32 %v551, 1.0
      %v574 = vadd.f32 %v553, 1.0
      %v575 = vadd.f32 %v555, 1.0
      %v576 = vadd.f32 %v557, 1.0
      %v577 = vadd.f32 %v559, 1.0
      %v578 = vadd.f32 %v561, 1.0
      %v579 = vadd.f32 %v563, 1.0
      %v580 = vlog2.pop %v564
      %v581 = vmul.f32 %v580, 0.6931472
      %v582 = vlog2.pop %v565
      %v583 = vmul.f32 %v582, 0.6931472
      %v584 = vlog2.pop %v566
      %v585 = vmul.f32 %v584, 0.6931472
      %v586 = vlog2.pop %v567
      %v587 = vmul.f32 %v586, 0.6931472
      %v588 = vlog2.pop %v568
      %v589 = vmul.f32 %v588, 0.6931472
      %v590 = vlog2.pop %v569
      %v591 = vmul.f32 %v590, 0.6931472
      %v592 = vlog2.pop %v570
      %v593 = vmul.f32 %v592, 0.6931472
      %v594 = vlog2.pop %v571
      %v595 = vmul.f32 %v594, 0.6931472
      %v596 = vlog2.pop %v572
      %v597 = vmul.f32 %v596, 0.6931472
      %v598 = vlog2.pop %v573
      %v599 = vmul.f32 %v598, 0.6931472
      %v600 = vlog2.pop %v574
      %v601 = vmul.f32 %v600, 0.6931472
      %v602 = vlog2.pop %v575
      %v603 = vmul.f32 %v602, 0.6931472
      %v604 = vlog2.pop %v576
      %v605 = vmul.f32 %v604, 0.6931472
      %v606 = vlog2.pop %v577
      %v607 = vmul.f32 %v606, 0.6931472
      %v608 = vlog2.pop %v578
      %v609 = vmul.f32 %v608, 0.6931472
      %v610 = vlog2.pop %v579
      %v611 = vmul.f32 %v610, 0.6931472
      %v612 = vadd.f32 %v484, %v581
      %v613 = vadd.f32 %v485, %v583
      %v614 = vadd.f32 %v486, %v585
      %v615 = vadd.f32 %v487, %v587
      %v616 = vadd.f32 %v488, %v589
      %v617 = vadd.f32 %v489, %v591
      %v618 = vadd.f32 %v490, %v593
      %v619 = vadd.f32 %v491, %v595
      %v620 = vadd.f32 %v492, %v597
      %v621 = vadd.f32 %v493, %v599
      %v622 = vadd.f32 %v494, %v601
      %v623 = vadd.f32 %v495, %v603
      %v624 = vadd.f32 %v496, %v605
      %v625 = vadd.f32 %v497, %v607
      %v626 = vadd.f32 %v498, %v609
      %v627 = vadd.f32 %v499, %v611
      %v628 = vld [vmem:[%s0] sm:$0xff]
      %v629 = vld [vmem:[%s0 + $0x8] sm:$0xff]
      %v630 = vld [vmem:[%s0 + $0x10] sm:$0xff]
      %v631 = vld [vmem:[%s0 + $0x18] sm:$0xff]
      %v632 = vpack.c.bf16 %v629, %v628
      %v633 = vpack.c.bf16 %v631, %v630
      %v634 = vld [vmem:[%s291] sm:$0xf]
      %v635 = vld [vmem:[%s291 + $0x4] sm:$0xf]
      %v636 = vld [vmem:[%s291 + $0x8] sm:$0xf]
      %v637 = vld [vmem:[%s291 + $0xc] sm:$0xf]
      %v638 = vld [vmem:[%s291 + $0x10] sm:$0xf]
      %v639 = vld [vmem:[%s291 + $0x14] sm:$0xf]
      %v640 = vld [vmem:[%s291 + $0x18] sm:$0xf]
      %v641 = vld [vmem:[%s291 + $0x1c] sm:$0xf]
      %v642 = vld [vmem:[%s291 + $0x20] sm:$0xf]
      %v643 = vld [vmem:[%s291 + $0x24] sm:$0xf]
      %v644 = vld [vmem:[%s291 + $0x28] sm:$0xf]
      %v645 = vld [vmem:[%s291 + $0x2c] sm:$0xf]
      %v646 = vld [vmem:[%s291 + $0x30] sm:$0xf]
      %v647 = vld [vmem:[%s291 + $0x34] sm:$0xf]
      %v648 = vld [vmem:[%s291 + $0x38] sm:$0xf]
      %v649 = vld [vmem:[%s291 + $0x3c] sm:$0xf]
      %v666 = vunpack.c.l.b16 %v634
      %v667 = vunpack.c.l.b16 %v635
      %v668 = vunpack.c.l.b16 %v636
      %v669 = vunpack.c.l.b16 %v637
      %v670 = vunpack.c.l.b16 %v638
      %v671 = vunpack.c.l.b16 %v639
      %v672 = vunpack.c.l.b16 %v640
      %v673 = vunpack.c.l.b16 %v641
      %v674 = vunpack.c.l.b16 %v642
      %v675 = vunpack.c.l.b16 %v643
      %v676 = vunpack.c.l.b16 %v644
      %v677 = vunpack.c.l.b16 %v645
      %v678 = vunpack.c.l.b16 %v646
      %v679 = vunpack.c.l.b16 %v647
      %v680 = vunpack.c.l.b16 %v648
      %v681 = vunpack.c.l.b16 %v649
      %v682 = vpack.c.b16 %v667, %v666
      %v683 = vpack.c.b16 %v669, %v668
      %v684 = vpack.c.b16 %v671, %v670
      %v685 = vpack.c.b16 %v673, %v672
      %v686 = vpack.c.b16 %v675, %v674
      %v687 = vpack.c.b16 %v677, %v676
      %v688 = vpack.c.b16 %v679, %v678
      %v689 = vpack.c.b16 %v681, %v680
      %vm690 = vcmask 261120
      %v692 = vsel %vm690, %v682, 0
      %v695 = vsel %vm690, %v683, 0
      %v698 = vsel %vm690, %v684, 0
      %v701 = vsel %vm690, %v685, 0
      %v704 = vsel %vm690, %v686, 0
      %v707 = vsel %vm690, %v687, 0
      %v710 = vsel %vm690, %v688, 0
      %v713 = vsel %vm690, %v689, 0
      %715 = vmatprep.subr.bf16.mxu0 0
      %716 = vmatpush1.bf16.msra.mxu0 %v632
      %717 = vmatprep.subr.bf16.mxu0 0
      %718 = vmatpush1.bf16.msra.mxu0 %v633
      %719 = vmatprep.subr.bf16.mxu0 0
      %720 = vmatpush1.bf16.msra.mxu0 0
      %721 = vmatprep.subr.bf16.mxu0 0
      %722 = vmatpush1.bf16.msra.mxu0 0
      %723 = vmatprep.subr.bf16.mxu0 0
      %724 = vmatpush1.bf16.msra.mxu0 0
      %725 = vmatprep.subr.bf16.mxu0 0
      %726 = vmatpush1.bf16.msra.mxu0 0
      %727 = vmatprep.subr.bf16.mxu0 0
      %728 = vmatpush1.bf16.msra.mxu0 0
      %729 = vmatprep.subr.bf16.mxu0 0
      %730 = vmatpush1.bf16.msra.mxu0 0
      %731 = vmatprep.subr.bf16.mxu0 0
      %732 = vmatpush1.bf16.msra.mxu0 0
      %733 = vmatprep.subr.bf16.mxu0 0
      %734 = vmatpush1.bf16.msra.mxu0 0
      %735 = vmatprep.subr.bf16.mxu0 0
      %736 = vmatpush1.bf16.msra.mxu0 0
      %737 = vmatprep.subr.bf16.mxu0 0
      %738 = vmatpush1.bf16.msra.mxu0 0
      %739 = vmatprep.subr.bf16.mxu0 0
      %740 = vmatpush1.bf16.msra.mxu0 0
      %741 = vmatprep.subr.bf16.mxu0 0
      %742 = vmatpush1.bf16.msra.mxu0 0
      %743 = vmatprep.subr.bf16.mxu0 0
      %744 = vmatpush1.bf16.msra.mxu0 0
      %745 = vmatprep.subr.bf16.mxu0 0
      %746 = vmatpush1.bf16.msra.mxu0 0
      %747 = vmatprep.mubr.bf16.mxu0 0
      %748 = vmatmul.mubr.bf16.gmra.mrb[0].mxu0 %v692
      %v749 = vpop.f32.mrb[0].mxu0
      %v750 = vadd.f32 0.0, %v749
      %v751 = vpop.f32.mrb[0].mxu0
      %v752 = vpop.f32.mrb[0].mxu0
      %v753 = vadd.f32 0.0, %v752
      %v754 = vpop.f32.mrb[0].mxu0
      %755 = vmatprep.mubr.bf16.mxu0 0
      %756 = vmatmul.mubr.bf16.gmra.mrb[0].mxu0 %v695
      %v757 = vpop.f32.mrb[0].mxu0
      %v758 = vadd.f32 0.0, %v757
      %v759 = vpop.f32.mrb[0].mxu0
      %v760 = vpop.f32.mrb[0].mxu0
      %v761 = vadd.f32 0.0, %v760
      %v762 = vpop.f32.mrb[0].mxu0
      %763 = vmatprep.mubr.bf16.mxu0 0
      %764 = vmatmul.mubr.bf16.gmra.mrb[0].mxu0 %v698
      %v765 = vpop.f32.mrb[0].mxu0
      %v766 = vadd.f32 0.0, %v765
      %v767 = vpop.f32.mrb[0].mxu0
      %v768 = vpop.f32.mrb[0].mxu0
      %v769 = vadd.f32 0.0, %v768
      %v770 = vpop.f32.mrb[0].mxu0
      %771 = vmatprep.mubr.bf16.mxu0 0
      %772 = vmatmul.mubr.bf16.gmra.mrb[0].mxu0 %v701
      %v773 = vpop.f32.mrb[0].mxu0
      %v774 = vadd.f32 0.0, %v773
      %v775 = vpop.f32.mrb[0].mxu0
      %v776 = vpop.f32.mrb[0].mxu0
      %v777 = vadd.f32 0.0, %v776
      %v778 = vpop.f32.mrb[0].mxu0
      %779 = vmatprep.mubr.bf16.mxu0 0
      %780 = vmatmul.mubr.bf16.gmra.mrb[0].mxu0 %v704
      %v781 = vpop.f32.mrb[0].mxu0
      %v782 = vadd.f32 0.0, %v781
      %v783 = vpop.f32.mrb[0].mxu0
      %v784 = vpop.f32.mrb[0].mxu0
      %v785 = vadd.f32 0.0, %v784
      %v786 = vpop.f32.mrb[0].mxu0
      %787 = vmatprep.mubr.bf16.mxu0 0
      %788 = vmatmul.mubr.bf16.gmra.mrb[0].mxu0 %v707
      %v789 = vpop.f32.mrb[0].mxu0
      %v790 = vadd.f32 0.0, %v789
      %v791 = vpop.f32.mrb[0].mxu0
      %v792 = vpop.f32.mrb[0].mxu0
      %v793 = vadd.f32 0.0, %v792
      %v794 = vpop.f32.mrb[0].mxu0
      %795 = vmatprep.mubr.bf16.mxu0 0
      %796 = vmatmul.mubr.bf16.gmra.mrb[0].mxu0 %v710
      %v797 = vpop.f32.mrb[0].mxu0
      %v798 = vadd.f32 0.0, %v797
      %v799 = vpop.f32.mrb[0].mxu0
      %v800 = vpop.f32.mrb[0].mxu0
      %v801 = vadd.f32 0.0, %v800
      %v802 = vpop.f32.mrb[0].mxu0
      %803 = vmatprep.mubr.bf16.mxu0 0
      %804 = vmatmul.mubr.bf16.gmra.mrb[0].mxu0 %v713
      %v805 = vpop.f32.mrb[0].mxu0
      %v806 = vadd.f32 0.0, %v805
      %v807 = vpop.f32.mrb[0].mxu0
      %v808 = vpop.f32.mrb[0].mxu0
      %v809 = vadd.f32 0.0, %v808
      %v810 = vpop.f32.mrb[0].mxu0
      %811 = vdwg.mxu0
      %v812 = vmul.f32 %v750, %v612
      %v813 = vmul.f32 %v753, %v613
      %v814 = vmul.f32 %v758, %v614
      %v815 = vmul.f32 %v761, %v615
      %v816 = vmul.f32 %v766, %v616
      %v817 = vmul.f32 %v769, %v617
      %v818 = vmul.f32 %v774, %v618
      %v819 = vmul.f32 %v777, %v619
      %v820 = vmul.f32 %v782, %v620
      %v821 = vmul.f32 %v785, %v621
      %v822 = vmul.f32 %v790, %v622
      %v823 = vmul.f32 %v793, %v623
      %v824 = vmul.f32 %v798, %v624
      %v825 = vmul.f32 %v801, %v625
      %v826 = vmul.f32 %v806, %v626
      %v827 = vmul.f32 %v809, %v627
      %v828 = vld [vmem:[%s279] sm:$0xff]
      %v829 = vld [vmem:[%s279 + $0x8] sm:$0xff]
      %v830 = vld [vmem:[%s279 + $0x10] sm:$0xff]
      %v831 = vld [vmem:[%s279 + $0x18] sm:$0xff]
      %v832 = vld [vmem:[%s279 + $0x20] sm:$0xff]
      %v833 = vld [vmem:[%s279 + $0x28] sm:$0xff]
      %v834 = vld [vmem:[%s279 + $0x30] sm:$0xff]
      %v835 = vld [vmem:[%s279 + $0x38] sm:$0xff]
      %v836 = vld [vmem:[%s279 + $0x40] sm:$0xff]
      %v837 = vld [vmem:[%s279 + $0x48] sm:$0xff]
      %v838 = vld [vmem:[%s279 + $0x50] sm:$0xff]
      %v839 = vld [vmem:[%s279 + $0x58] sm:$0xff]
      %v840 = vld [vmem:[%s279 + $0x60] sm:$0xff]
      %v841 = vld [vmem:[%s279 + $0x68] sm:$0xff]
      %v842 = vld [vmem:[%s279 + $0x70] sm:$0xff]
      %v843 = vld [vmem:[%s279 + $0x78] sm:$0xff]
      %845 = vset.pattern.permute.xlu0 0
      %846 = vperm.xlu0 %845, %v828
      %v847 = vpop.permute.xlu0 %846
      %850 = vset.pattern.permute.xlu0 0
      %851 = vperm.xlu0 %850, %v829
      %v852 = vpop.permute.xlu0 %851
      %855 = vset.pattern.permute.xlu0 0
      %856 = vperm.xlu0 %855, %v830
      %v857 = vpop.permute.xlu0 %856
      %860 = vset.pattern.permute.xlu0 0
      %861 = vperm.xlu0 %860, %v831
      %v862 = vpop.permute.xlu0 %861
      %865 = vset.pattern.permute.xlu0 0
      %866 = vperm.xlu0 %865, %v832
      %v867 = vpop.permute.xlu0 %866
      %870 = vset.pattern.permute.xlu0 0
      %871 = vperm.xlu0 %870, %v833
      %v872 = vpop.permute.xlu0 %871
      %875 = vset.pattern.permute.xlu0 0
      %876 = vperm.xlu0 %875, %v834
      %v877 = vpop.permute.xlu0 %876
      %880 = vset.pattern.permute.xlu0 0
      %881 = vperm.xlu0 %880, %v835
      %v882 = vpop.permute.xlu0 %881
      %885 = vset.pattern.permute.xlu0 0
      %886 = vperm.xlu0 %885, %v836
      %v887 = vpop.permute.xlu0 %886
      %890 = vset.pattern.permute.xlu0 0
      %891 = vperm.xlu0 %890, %v837
      %v892 = vpop.permute.xlu0 %891
      %895 = vset.pattern.permute.xlu0 0
      %896 = vperm.xlu0 %895, %v838
      %v897 = vpop.permute.xlu0 %896
      %900 = vset.pattern.permute.xlu0 0
      %901 = vperm.xlu0 %900, %v839
      %v902 = vpop.permute.xlu0 %901
      %905 = vset.pattern.permute.xlu0 0
      %906 = vperm.xlu0 %905, %v840
      %v907 = vpop.permute.xlu0 %906
      %910 = vset.pattern.permute.xlu0 0
      %911 = vperm.xlu0 %910, %v841
      %v912 = vpop.permute.xlu0 %911
      %915 = vset.pattern.permute.xlu0 0
      %916 = vperm.xlu0 %915, %v842
      %v917 = vpop.permute.xlu0 %916
      %920 = vset.pattern.permute.xlu0 0
      %921 = vperm.xlu0 %920, %v843
      %v922 = vpop.permute.xlu0 %921
      %v924 = vmul.f32 %v812, %v847
      %v925 = vmul.f32 %v813, %v852
      %v926 = vmul.f32 %v814, %v857
      %v927 = vmul.f32 %v815, %v862
      %v928 = vmul.f32 %v816, %v867
      %v929 = vmul.f32 %v817, %v872
      %v930 = vmul.f32 %v818, %v877
      %v931 = vmul.f32 %v819, %v882
      %v932 = vmul.f32 %v820, %v887
      %v933 = vmul.f32 %v821, %v892
      %v934 = vmul.f32 %v822, %v897
      %v935 = vmul.f32 %v823, %v902
      %v936 = vmul.f32 %v824, %v907
      %v937 = vmul.f32 %v825, %v912
      %v938 = vmul.f32 %v826, %v917
      %v939 = vmul.f32 %v827, %v922
      %v940 = vpack.c.bf16 %v925, %v924
      %v941 = vpack.c.bf16 %v927, %v926
      %v942 = vpack.c.bf16 %v929, %v928
      %v943 = vpack.c.bf16 %v931, %v930
      %v944 = vpack.c.bf16 %v933, %v932
      %v945 = vpack.c.bf16 %v935, %v934
      %v946 = vpack.c.bf16 %v937, %v936
      %v947 = vpack.c.bf16 %v939, %v938
      %v956 = vunpack.c.l.b16 %v940
      %v957 = vunpack.c.h.b16 %v940
      %v958 = vunpack.c.l.b16 %v941
      %v959 = vunpack.c.h.b16 %v941
      %v960 = vunpack.c.l.b16 %v942
      %v961 = vunpack.c.h.b16 %v942
      %v962 = vunpack.c.l.b16 %v943
      %v963 = vunpack.c.h.b16 %v943
      %v964 = vunpack.c.l.b16 %v944
      %v965 = vunpack.c.h.b16 %v944
      %v966 = vunpack.c.l.b16 %v945
      %v967 = vunpack.c.h.b16 %v945
      %v968 = vunpack.c.l.b16 %v946
      %v969 = vunpack.c.h.b16 %v946
      %v970 = vunpack.c.l.b16 %v947
      %v971 = vunpack.c.h.b16 %v947
      %v972 = vpack.c.b16 %v956, %v956
      %v973 = vpack.c.b16 %v957, %v957
      %v974 = vpack.c.b16 %v958, %v958
      %v975 = vpack.c.b16 %v959, %v959
      %v976 = vpack.c.b16 %v960, %v960
      %v977 = vpack.c.b16 %v961, %v961
      %v978 = vpack.c.b16 %v962, %v962
      %v979 = vpack.c.b16 %v963, %v963
      %v980 = vpack.c.b16 %v964, %v964
      %v981 = vpack.c.b16 %v965, %v965
      %v982 = vpack.c.b16 %v966, %v966
      %v983 = vpack.c.b16 %v967, %v967
      %v984 = vpack.c.b16 %v968, %v968
      %v985 = vpack.c.b16 %v969, %v969
      %v986 = vpack.c.b16 %v970, %v970
      %v987 = vpack.c.b16 %v971, %v971
      %1004 = vst [vmem:[%s297] sm:$0xf] %v972
      %1005 = vst [vmem:[%s297 + $0x4] sm:$0xf] %v973
      %1006 = vst [vmem:[%s297 + $0x8] sm:$0xf] %v974
      %1007 = vst [vmem:[%s297 + $0xc] sm:$0xf] %v975
      %1008 = vst [vmem:[%s297 + $0x10] sm:$0xf] %v976
      %1009 = vst [vmem:[%s297 + $0x14] sm:$0xf] %v977
      %1010 = vst [vmem:[%s297 + $0x18] sm:$0xf] %v978
      %1011 = vst [vmem:[%s297 + $0x1c] sm:$0xf] %v979
      %1012 = vst [vmem:[%s297 + $0x20] sm:$0xf] %v980
      %1013 = vst [vmem:[%s297 + $0x24] sm:$0xf] %v981
      %1014 = vst [vmem:[%s297 + $0x28] sm:$0xf] %v982
      %1015 = vst [vmem:[%s297 + $0x2c] sm:$0xf] %v983
      %1016 = vst [vmem:[%s297 + $0x30] sm:$0xf] %v984
      %1017 = vst [vmem:[%s297 + $0x34] sm:$0xf] %v985
      %1018 = vst [vmem:[%s297 + $0x38] sm:$0xf] %v986
      %1019 = vst [vmem:[%s297 + $0x3c] sm:$0xf] %v987
      %s1020 = smul.u32 16, %s17
      %p1021 = scmp.lt.s32.totalorder %s1020, 31
      %s1022 = scalar_select %p1021, %s1020, 31
      %s1023 = smul.addr %s1022, 4
      %s1024 = scalar_lea.vmem %s6, %s1023
      // Predicated region
      $region45: #{continuous_energy_forward.9} parent=43 // pred_check
        %p1025 = pneg %p176
      $region46: #{continuous_energy_forward.9} parent=43 // pred_check_branch
        %1027 = sbr.rel (%p1025) target = $region48
      $region47: #{continuous_energy_forward.9} parent=43 // pred_region
        %s1028 = smul.u32 16, %s17
      $region48: #{continuous_energy_forward.9} parent=43 // pred_fallthru
        _
    $region44: #{continuous_energy_forward.9} parent=5 // pred_fallthru
      _
    %p1029 = scmp.le.s32.totalorder 2, %s12
    // Predicated region
    $region49: #{continuous_energy_forward.9} parent=5 // pred_check
      %p1030 = pneg %p1029
    $region50: #{continuous_energy_forward.9} parent=5 // pred_check_branch
      %1032 = sbr.rel (%p1030) target = $region52
    $region51: #{continuous_energy_forward.9} parent=5 // pred_region
      %s1033 = ssub.s32 %s12, 2
      // Predicated region
      $region53: #{continuous_energy_forward.9} parent=51 // pred_check
        %p1034 = pneg %p182
      $region54: #{continuous_energy_forward.9} parent=51 // pred_check_branch
        %1036 = sbr.rel (%p1034) target = $region56
      $region55: #{continuous_energy_forward.9} parent=51 // pred_region
        %s1037 = smul.u32 16, %s18
        %p1038 = scmp.lt.s32.totalorder %s1037, 31
        %s1039 = scalar_select %p1038, %s1037, 31
        %s1040 = smul.addr %s1039, 4
        %s1041 = scalar_lea.vmem %s6, %s1040
      $region56: #{continuous_energy_forward.9} parent=51 // pred_fallthru
        _
    $region52: #{continuous_energy_forward.9} parent=5 // pred_fallthru
      _
  $region6: #{continuous_energy_forward.9} parent=0 // loop_footer
    %s16 = sadd.s32 1, %s12
  $region7: #{continuous_energy_forward.9} parent=0 // loop_footer_branch
    %11 = sbr.rel target = $region3
  $region8: #{continuous_energy_forward.9} parent=0 // loop_exit
    _

// kernel: continuous_energy_forward.10
$region0: #{continuous_energy_forward.10}
  #allocation0 [shape = 'u32[]', space=smem, size = 0x4, offset = 0x4, fixed_abs, tag = 'smem constant byte address 0x4 - core index']
  #allocation1 [shape = 'u32[144,128]{1,0:T(1,128)}', space=vmem, size = 0x12000, scoped, tag = 'internal scratch']
  #allocation2 [shape = 'f32[16,128]{1,0:T(8,128)}', space=vmem, size = 0x2000, scoped, tag = 'scratch operand']
  %s0 = inlined_call_operand.vmem [shape: f32[32,128], index: 0, kind: input, shape index: {}]
  %s1 = inlined_call_operand.vmem [shape: bf16[256,128], index: 1, kind: input, shape index: {}]
  %s2 = inlined_call_operand.vmem [shape: bf16[32,256], index: 2, kind: input, shape index: {}]
  %s3 = inlined_call_operand.vmem [shape: f32[128,128], index: 3, kind: input, shape index: {}]
  %s4 = inlined_call_operand.vmem [shape: f32[1,128], index: 4, kind: input, shape index: {}]
  %s5 = inlined_call_operand.vmem [shape: f32[128,128], index: 5, kind: input, shape index: {}]
  %s6 = inlined_call_operand.vmem [shape: f32[1,128], index: 6, kind: input, shape index: {}]
  %s7 = inlined_call_operand.vmem [shape: f32[32,128], index: 7, kind: output, shape index: {}]
  %s8 = sld [smem:[#allocation0]]
  $region110: #{continuous_energy_forward.10} parent=0
    _
  %s10 = ssub.s32 1, %s8
  %s11 = scalar_select 0, %s10, %s8
  $region1: #{continuous_energy_forward.10} parent=0
    #allocation3 [shape = 'u8[8192]{0}', space=vmem, size = 0x2000, scoped, tag = 'input window, operand 2']
    loop: start=0, step=1, limit=6
    $region2: #{continuous_energy_forward.10} parent=1 // loop_pre_header
      _
    $region3: #{continuous_energy_forward.10} parent=1 // loop_header
      %s13 = sphi 0, %s17
      %p14 = scmp.ge.s32.totalorder %s13, 6
      %s20 = sphi 0, %s32
      %s21 = sphi 0, %s28
      %s22 = sphi 0, %s20
      %s23 = sphi 0, %s21
      %s24 = sphi 0, %s22
      %s25 = sphi 0, %s23
      %s35 = sphi 0, %s37
      %s38 = sphi 0, %s35
      %s39 = sphi 0, %s38
      %s55 = sphi 0, %s39
      %s61 = sphi 0, %s63
      %s64 = sphi 0, %s61
      %s65 = sphi 0, %s64
      %s81 = sphi 0, %s65
      %s89 = sphi 0, %s91
      %s92 = sphi 0, %s89
      %s93 = sphi 0, %s92
      %s109 = sphi 0, %s93
      %s113 = sphi 0, %s113
      %s115 = sphi 0, %s113
      %s116 = sphi 0, %s115
      %s130 = sphi 0, %s116
      %s134 = sphi 0, %s134
      %s136 = sphi 0, %s134
      %s137 = sphi 0, %s136
      %s151 = sphi 0, %s137
      %s155 = sphi 0, %s155
      %s157 = sphi 0, %s155
      %s158 = sphi 0, %s157
      %s172 = sphi 0, %s158
      %s176 = sphi 0, %s176
      %s178 = sphi 0, %s176
      %s179 = sphi 0, %s178
      %s193 = sphi 0, %s179
      %s199 = sphi 0, %s201
      %s202 = sphi 0, %s199
      %s203 = sphi 0, %s202
      %s219 = sphi 0, %s203
    $region4: #{continuous_energy_forward.10} parent=1 // loop_header_branch
      %16 = sbr.rel (%p14) target = $region8
    $region5: #{continuous_energy_forward.10} parent=1 // loop_body
      %s18 = ssub.s32 %s13, 1
      %s19 = ssub.s32 %s13, 2
      %s26 = sadd.s32 1, %s21
      %p27 = scmp.ge.s32.totalorder %s26, 2
      %s28 = scalar_select %p27, 0, %s26
      %s29 = sadd.s32 1, %s20
      %s30 = scalar_select %p27, %s29, %s20
      %p31 = scmp.ge.s32.totalorder %s30, 2
      %s32 = scalar_select %p31, 0, %s30
      %s33 = ssub.s32 %s20, %s32
      %p34 = scmp.eq.s32.totalorder %s33, 0
      %s36 = sadd.s32 %s35, 1
      %s37 = scalar_select %p34, %s35, %s36
      %p40 = pneg %p34
      %p41 = scmp.eq.s32.totalorder %s13, 3
      %p42 = por %p40, %p41
      %p43 = scmp.ne.s32.totalorder %s35, %s38
      %p44 = scmp.eq.s32.totalorder %s13, 0
      %p45 = por %p43, %p44
      %p46 = scmp.ne.s32.totalorder %s35, %s38
      %p47 = scmp.eq.s32.totalorder %s18, 3
      %p48 = por %p46, %p47
      %p49 = scmp.ne.s32.totalorder %s38, %s39
      %p50 = scmp.eq.s32.totalorder %s18, 0
      %p51 = por %p49, %p50
      %p52 = scmp.ne.s32.totalorder %s38, %s39
      %p53 = scmp.eq.s32.totalorder %s19, 3
      %p54 = por %p52, %p53
      %p56 = scmp.ne.s32.totalorder %s39, %s55
      %p57 = scmp.eq.s32.totalorder %s19, 0
      %p58 = por %p56, %p57
      %s59 = ssub.s32 %s21, %s28
      %p60 = scmp.eq.s32.totalorder %s59, 0
      %s62 = sadd.s32 %s61, 1
      %s63 = scalar_select %p60, %s61, %s62
      %p66 = pneg %p60
      %p67 = scmp.eq.s32.totalorder %s13, 3
      %p68 = por %p66, %p67
      %p69 = scmp.ne.s32.totalorder %s61, %s64
      %p70 = scmp.eq.s32.totalorder %s13, 0
      %p71 = por %p69, %p70
      %p72 = scmp.ne.s32.totalorder %s61, %s64
      %p73 = scmp.eq.s32.totalorder %s18, 3
      %p74 = por %p72, %p73
      %p75 = scmp.ne.s32.totalorder %s64, %s65
      %p76 = scmp.eq.s32.totalorder %s18, 0
      %p77 = por %p75, %p76
      %p78 = scmp.ne.s32.totalorder %s64, %s65
      %p79 = scmp.eq.s32.totalorder %s19, 3
      %p80 = por %p78, %p79
      %p82 = scmp.ne.s32.totalorder %s65, %s81
      %p83 = scmp.eq.s32.totalorder %s19, 0
      %p84 = por %p82, %p83
      %s85 = ssub.s32 %s20, %s32
      %s86 = ssub.s32 %s21, %s28
      %s87 = sor.u32 %s85, %s86
      %p88 = scmp.eq.s32.totalorder %s87, 0
      %s90 = sadd.s32 %s89, 1
      %s91 = scalar_select %p88, %s89, %s90
      %p94 = pneg %p88
      %p95 = scmp.eq.s32.totalorder %s13, 3
      %p96 = por %p94, %p95
      %p97 = scmp.ne.s32.totalorder %s89, %s92
      %p98 = scmp.eq.s32.totalorder %s13, 0
      %p99 = por %p97, %p98
      %p100 = scmp.ne.s32.totalorder %s89, %s92
      %p101 = scmp.eq.s32.totalorder %s18, 3
      %p102 = por %p100, %p101
      %p103 = scmp.ne.s32.totalorder %s92, %s93
      %p104 = scmp.eq.s32.totalorder %s18, 0
      %p105 = por %p103, %p104
      %p106 = scmp.ne.s32.totalorder %s92, %s93
      %p107 = scmp.eq.s32.totalorder %s19, 3
      %p108 = por %p106, %p107
      %p110 = scmp.ne.s32.totalorder %s93, %s109
      %p111 = scmp.eq.s32.totalorder %s19, 0
      %p112 = por %p110, %p111
      %s114 = sadd.s32 %s113, 1
      %p117 = scmp.eq.s32.totalorder %s13, 3
      %p118 = scmp.ne.s32.totalorder %s113, %s115
      %p119 = scmp.eq.s32.totalorder %s13, 0
      %p120 = por %p118, %p119
      %p121 = scmp.ne.s32.totalorder %s113, %s115
      %p122 = scmp.eq.s32.totalorder %s18, 3
      %p123 = por %p121, %p122
      %p124 = scmp.ne.s32.totalorder %s115, %s116
      %p125 = scmp.eq.s32.totalorder %s18, 0
      %p126 = por %p124, %p125
      %p127 = scmp.ne.s32.totalorder %s115, %s116
      %p128 = scmp.eq.s32.totalorder %s19, 3
      %p129 = por %p127, %p128
      %p131 = scmp.ne.s32.totalorder %s116, %s130
      %p132 = scmp.eq.s32.totalorder %s19, 0
      %p133 = por %p131, %p132
      %s135 = sadd.s32 %s134, 1
      %p138 = scmp.eq.s32.totalorder %s13, 3
      %p139 = scmp.ne.s32.totalorder %s134, %s136
      %p140 = scmp.eq.s32.totalorder %s13, 0
      %p141 = por %p139, %p140
      %p142 = scmp.ne.s32.totalorder %s134, %s136
      %p143 = scmp.eq.s32.totalorder %s18, 3
      %p144 = por %p142, %p143
      %p145 = scmp.ne.s32.totalorder %s136, %s137
      %p146 = scmp.eq.s32.totalorder %s18, 0
      %p147 = por %p145, %p146
      %p148 = scmp.ne.s32.totalorder %s136, %s137
      %p149 = scmp.eq.s32.totalorder %s19, 3
      %p150 = por %p148, %p149
      %p152 = scmp.ne.s32.totalorder %s137, %s151
      %p153 = scmp.eq.s32.totalorder %s19, 0
      %p154 = por %p152, %p153
      %s156 = sadd.s32 %s155, 1
      %p159 = scmp.eq.s32.totalorder %s13, 3
      %p160 = scmp.ne.s32.totalorder %s155, %s157
      %p161 = scmp.eq.s32.totalorder %s13, 0
      %p162 = por %p160, %p161
      %p163 = scmp.ne.s32.totalorder %s155, %s157
      %p164 = scmp.eq.s32.totalorder %s18, 3
      %p165 = por %p163, %p164
      %p166 = scmp.ne.s32.totalorder %s157, %s158
      %p167 = scmp.eq.s32.totalorder %s18, 0
      %p168 = por %p166, %p167
      %p169 = scmp.ne.s32.totalorder %s157, %s158
      %p170 = scmp.eq.s32.totalorder %s19, 3
      %p171 = por %p169, %p170
      %p173 = scmp.ne.s32.totalorder %s158, %s172
      %p174 = scmp.eq.s32.totalorder %s19, 0
      %p175 = por %p173, %p174
      %s177 = sadd.s32 %s176, 1
      %p180 = scmp.eq.s32.totalorder %s13, 3
      %p181 = scmp.ne.s32.totalorder %s176, %s178
      %p182 = scmp.eq.s32.totalorder %s13, 0
      %p183 = por %p181, %p182
      %p184 = scmp.ne.s32.totalorder %s176, %s178
      %p185 = scmp.eq.s32.totalorder %s18, 3
      %p186 = por %p184, %p185
      %p187 = scmp.ne.s32.totalorder %s178, %s179
      %p188 = scmp.eq.s32.totalorder %s18, 0
      %p189 = por %p187, %p188
      %p190 = scmp.ne.s32.totalorder %s178, %s179
      %p191 = scmp.eq.s32.totalorder %s19, 3
      %p192 = por %p190, %p191
      %p194 = scmp.ne.s32.totalorder %s179, %s193
      %p195 = scmp.eq.s32.totalorder %s19, 0
      %p196 = por %p194, %p195
      %s197 = ssub.s32 %s20, %s32
      %p198 = scmp.eq.s32.totalorder %s197, 0
      %s200 = sadd.s32 %s199, 1
      %s201 = scalar_select %p198, %s199, %s200
      %p204 = pneg %p198
      %p205 = scmp.eq.s32.totalorder %s13, 3
      %p206 = por %p204, %p205
      %p207 = scmp.ne.s32.totalorder %s199, %s202
      %p208 = scmp.eq.s32.totalorder %s13, 0
      %p209 = por %p207, %p208
      %p210 = scmp.ne.s32.totalorder %s199, %s202
      %p211 = scmp.eq.s32.totalorder %s18, 3
      %p212 = por %p210, %p211
      %p213 = scmp.ne.s32.totalorder %s202, %s203
      %p214 = scmp.eq.s32.totalorder %s18, 0
      %p215 = por %p213, %p214
      %p216 = scmp.ne.s32.totalorder %s202, %s203
      %p217 = scmp.eq.s32.totalorder %s19, 3
      %p218 = por %p216, %p217
      %p220 = scmp.ne.s32.totalorder %s203, %s219
      %p221 = scmp.eq.s32.totalorder %s19, 0
      %p222 = por %p220, %p221
      %p223 = scmp.le.s32.totalorder 1, %s13
      %p224 = scmp.lt.s32.totalorder %s13, 5
      %p225 = pnand %p223, %p224
      %p226 = pneg %p225
      // Predicated region
      $region9: #{continuous_energy_forward.10} parent=5 // pred_check
        _
      $region10: #{continuous_energy_forward.10} parent=5 // pred_check_branch
        %228 = sbr.rel (%p225) target = $region12
      $region11: #{continuous_energy_forward.10} parent=5 // pred_region
        %s229 = ssub.s32 %s13, 1
        // Predicated region
        $region13: #{continuous_energy_forward.10} parent=11 // pred_check
          %p230 = pneg %p126
        $region14: #{continuous_energy_forward.10} parent=11 // pred_check_branch
          %232 = sbr.rel (%p230) target = $region16
        $region15: #{continuous_energy_forward.10} parent=11 // pred_region
          _
        $region16: #{continuous_energy_forward.10} parent=11 // pred_fallthru
          _
        // Predicated region
        $region17: #{continuous_energy_forward.10} parent=11 // pred_check
          %p233 = pneg %p147
        $region18: #{continuous_energy_forward.10} parent=11 // pred_check_branch
          %235 = sbr.rel (%p233) target = $region20
        $region19: #{continuous_energy_forward.10} parent=11 // pred_region
          _
        $region20: #{continuous_energy_forward.10} parent=11 // pred_fallthru
          _
        // Predicated region
        $region21: #{continuous_energy_forward.10} parent=11 // pred_check
          %p236 = pneg %p168
        $region22: #{continuous_energy_forward.10} parent=11 // pred_check_branch
          %238 = sbr.rel (%p236) target = $region24
        $region23: #{continuous_energy_forward.10} parent=11 // pred_region
          _
        $region24: #{continuous_energy_forward.10} parent=11 // pred_fallthru
          _
        // Predicated region
        $region25: #{continuous_energy_forward.10} parent=11 // pred_check
          %p239 = pneg %p189
        $region26: #{continuous_energy_forward.10} parent=11 // pred_check_branch
          %241 = sbr.rel (%p239) target = $region28
        $region27: #{continuous_energy_forward.10} parent=11 // pred_region
          _
        $region28: #{continuous_energy_forward.10} parent=11 // pred_fallthru
          _
      $region12: #{continuous_energy_forward.10} parent=5 // pred_fallthru
        _
      %p242 = scmp.lt.s32.totalorder %s13, 4
      // Predicated region
      $region29: #{continuous_energy_forward.10} parent=5 // pred_check
        %p243 = pneg %p242
      $region30: #{continuous_energy_forward.10} parent=5 // pred_check_branch
        %245 = sbr.rel (%p243) target = $region32
      $region31: #{continuous_energy_forward.10} parent=5 // pred_region
        // Predicated region
        $region33: #{continuous_energy_forward.10} parent=31 // pred_check
          %p246 = pneg %p45
        $region34: #{continuous_energy_forward.10} parent=31 // pred_check_branch
          %248 = sbr.rel (%p246) target = $region36
        $region35: #{continuous_energy_forward.10} parent=31 // pred_region
          %s249 = smul.u32 2, %s20
          %p250 = scmp.lt.s32.totalorder %s249, 3
          %s251 = scalar_select %p250, %s249, 3
          %s252 = smul.addr %s251, 8
          %s253 = scalar_lea.vmem %s0, %s252
          %s254 = smul.u32 2, %s20
        $region36: #{continuous_energy_forward.10} parent=31 // pred_fallthru
          _
        // Predicated region
        $region37: #{continuous_energy_forward.10} parent=31 // pred_check
          %p255 = pneg %p71
        $region38: #{continuous_energy_forward.10} parent=31 // pred_check_branch
          %257 = sbr.rel (%p255) target = $region40
        $region39: #{continuous_energy_forward.10} parent=31 // pred_region
          %s258 = smul.u32 16, %s21
          %p259 = scmp.lt.s32.totalorder %s258, 31
          %s260 = scalar_select %p259, %s258, 31
          %s261 = smul.addr %s260, 4
          %s262 = scalar_lea.vmem %s1, %s261
          %s263 = smul.u32 16, %s21
        $region40: #{continuous_energy_forward.10} parent=31 // pred_fallthru
          _
        // Predicated region
        $region41: #{continuous_energy_forward.10} parent=31 // pred_check
          %p264 = pneg %p99
        $region42: #{continuous_energy_forward.10} parent=31 // pred_check_branch
          %266 = sbr.rel (%p264) target = $region44
        $region43: #{continuous_energy_forward.10} parent=31 // pred_region
          %s267 = sand.u32 %s89, 1
          %s268 = sand.u32 %s89, 1
          %s269 = smul.addr %s268, 8
          %s270 = scalar_lea.vmem [#allocation3], %s269
          %s271 = smul.u32 2, %s20
          %s272 = smul.addr %s271, 2
          %s273 = sadd.s32 %s21, %s272
          %s274 = smul.addr %s273, 4
          %s275 = scalar_lea.vmem %s2, %s274
          // Predicated region
          $region45: #{continuous_energy_forward.10} parent=43 // pred_check
            _
          $region46: #{continuous_energy_forward.10} parent=43 // pred_check_branch
            %277 = sbr.rel (0) target = $region48
          $region47: #{continuous_energy_forward.10} parent=43 // pred_region
            // Predicated region
            $region49: #{continuous_energy_forward.10} parent=47 // pred_check
              _
            $region50: #{continuous_energy_forward.10} parent=47 // pred_check_branch
              %279 = sbr.rel target = $region52
            $region51: #{continuous_energy_forward.10} parent=47 // pred_region
              // Predicated region
              $region64: #{continuous_energy_forward.10} parent=51 // pred_check
                _
              $region65: #{continuous_energy_forward.10} parent=51 // pred_check_branch
                %296 = sbr.rel (0) target = $region67
              $region66: #{continuous_energy_forward.10} parent=51 // pred_region
                loop: start=0, step=1, limit=1
                $region68: #{continuous_energy_forward.10} parent=66 // loop_pre_header
                  _
                $region69: #{continuous_energy_forward.10} parent=66 // loop_header
                  %s298 = sphi 0, %s302
                  %p299 = scmp.ge.s32.totalorder %s298, 1
                  %s303 = sphi %s275, %s275
                  %s304 = sphi %s270, %s270
                $region70: #{continuous_energy_forward.10} parent=66 // loop_header_branch
                  %301 = sbr.rel (%p299) target = $region74
                $region71: #{continuous_energy_forward.10} parent=66 // loop_body
                  _
                $region72: #{continuous_energy_forward.10} parent=66 // loop_footer
                  %s302 = sadd.s32 1, %s298
                $region73: #{continuous_energy_forward.10} parent=66 // loop_footer_branch
                  %297 = sbr.rel target = $region69
                $region74: #{continuous_energy_forward.10} parent=66 // loop_exit
                  _
                loop: start=0, step=1, limit=1
                $region75: #{continuous_energy_forward.10} parent=66 // loop_pre_header
                  _
                $region76: #{continuous_energy_forward.10} parent=66 // loop_header
                  %s307 = sphi 0, %s311
                  %p308 = scmp.ge.s32.totalorder %s307, 1
                  %s312 = sphi %s275, %s275
                  %s313 = sphi %s270, %s270
                $region77: #{continuous_energy_forward.10} parent=66 // loop_header_branch
                  %310 = sbr.rel (%p308) target = $region81
                $region78: #{continuous_energy_forward.10} parent=66 // loop_body
                  %v314 = vld [vmem:[%s312] sm:$0xf]
                  %315 = vst [vmem:[%s313] sm:$0xf] %v314
                  %v316 = vld [vmem:[%s312 + $0x8] sm:$0xf]
                  %317 = vst [vmem:[%s313 + $0x4] sm:$0xf] %v316
                $region79: #{continuous_energy_forward.10} parent=66 // loop_footer
                  %s311 = sadd.s32 1, %s307
                $region80: #{continuous_energy_forward.10} parent=66 // loop_footer_branch
                  %306 = sbr.rel target = $region76
                $region81: #{continuous_energy_forward.10} parent=66 // loop_exit
                  _
              $region67: #{continuous_energy_forward.10} parent=51 // pred_fallthru
                _
            $region52: #{continuous_energy_forward.10} parent=47 // pred_fallthru
              _
            // Predicated region
            $region53: #{continuous_energy_forward.10} parent=47 // pred_check
              _
            $region54: #{continuous_energy_forward.10} parent=47 // pred_check_branch
              %281 = sbr.rel (0) target = $region56
            $region55: #{continuous_energy_forward.10} parent=47 // pred_region
              loop: start=0, step=1, limit=1
              $region57: #{continuous_energy_forward.10} parent=55 // loop_pre_header
                _
              $region58: #{continuous_energy_forward.10} parent=55 // loop_header
                %s284 = sphi 0, %s288
                %p285 = scmp.ge.s32.totalorder %s284, 1
                %s289 = sphi %s275, %s275
                %s290 = sphi %s270, %s270
              $region59: #{continuous_energy_forward.10} parent=55 // loop_header_branch
                %287 = sbr.rel (%p285) target = $region63
              $region60: #{continuous_energy_forward.10} parent=55 // loop_body
                %v291 = vld [vmem:[%s289] sm:$0xf]
                %292 = vst [vmem:[%s290] sm:$0xf] %v291
                %v293 = vld [vmem:[%s289 + $0x8] sm:$0xf]
                %294 = vst [vmem:[%s290 + $0x4] sm:$0xf] %v293
              $region61: #{continuous_energy_forward.10} parent=55 // loop_footer
                %s288 = sadd.s32 1, %s284
              $region62: #{continuous_energy_forward.10} parent=55 // loop_footer_branch
                %283 = sbr.rel target = $region58
              $region63: #{continuous_energy_forward.10} parent=55 // loop_exit
                _
            $region56: #{continuous_energy_forward.10} parent=47 // pred_fallthru
              _
          $region48: #{continuous_energy_forward.10} parent=43 // pred_fallthru
            _
          %318 = vnop
        $region44: #{continuous_energy_forward.10} parent=31 // pred_fallthru
          _
      $region32: #{continuous_energy_forward.10} parent=5 // pred_fallthru
        _
      %p319 = scmp.le.s32.totalorder 1, %s13
      %p320 = scmp.lt.s32.totalorder %s13, 5
      %p321 = pnand %p319, %p320
      %p322 = pneg %p321
      // Predicated region
      $region82: #{continuous_energy_forward.10} parent=5 // pred_check
        _
      $region83: #{continuous_energy_forward.10} parent=5 // pred_check_branch
        %324 = sbr.rel (%p321) target = $region85
      $region84: #{continuous_energy_forward.10} parent=5 // pred_region
        %s325 = ssub.s32 %s13, 1
        %s326 = sand.u32 %s92, 1
        %s327 = sand.u32 %s92, 1
        %s328 = smul.addr %s327, 8
        %s329 = scalar_lea.vmem [#allocation3], %s328
        // Predicated region
        $region86: #{continuous_energy_forward.10} parent=84 // pred_check
          %p330 = pneg %p105
        $region87: #{continuous_energy_forward.10} parent=84 // pred_check_branch
          %332 = sbr.rel (%p330) target = $region89
        $region88: #{continuous_energy_forward.10} parent=84 // pred_region
          _
        $region89: #{continuous_energy_forward.10} parent=84 // pred_fallthru
          _
        %s333 = smul.u32 2, %s22
        %p334 = scmp.lt.s32.totalorder %s333, 3
        %s335 = scalar_select %p334, %s333, 3
        %s336 = smul.addr %s335, 8
        %s337 = scalar_lea.vmem %s0, %s336
        %p338 = pneg %p51
        %p339 = pneg %p48
        %s340 = smul.u32 16, %s23
        %p341 = scmp.lt.s32.totalorder %s340, 31
        %s342 = scalar_select %p341, %s340, 31
        %s343 = smul.addr %s342, 4
        %s344 = scalar_lea.vmem %s1, %s343
        %p345 = pneg %p77
        %p346 = pneg %p74
        %s347 = sand.u32 %s92, 1
        %s348 = sand.u32 %s92, 1
        %s349 = smul.addr %s348, 8
        %s350 = scalar_lea.vmem [#allocation3], %s349
        %p351 = pneg %p105
        %p352 = pneg %p102
        %p353 = pneg %p126
        %p354 = pneg %p123
        %p355 = pneg %p147
        %p356 = pneg %p144
        %p357 = pneg %p168
        %p358 = pneg %p165
        %p359 = pneg %p189
        %p360 = pneg %p186
        %p361 = pneg %p215
        %p362 = pneg %p212
        %s363 = smul.u32 2, %s22
        %p364 = scmp.lt.s32.totalorder %s363, 3
        %s365 = scalar_select %p364, %s363, 3
        %s366 = smul.addr %s365, 8
        %s367 = scalar_lea.vmem %s7, %s366
        %s368 = smul.u32 2, %s22
        %p369 = scmp.lt.s32.totalorder %s368, 3
        %s370 = scalar_select %p369, %s368, 3
        %s371 = smul.addr %s370, 8
        %s372 = scalar_lea.vmem %s0, %s371
        %s373 = smul.u32 2, %s22
        %s374 = smul.u32 16, %s23
        %p375 = scmp.lt.s32.totalorder %s374, 31
        %s376 = scalar_select %p375, %s374, 31
        %s377 = smul.addr %s376, 4
        %s378 = scalar_lea.vmem %s1, %s377
        %s379 = smul.u32 16, %s23
        %s380 = smul.u32 2, %s22
        %s381 = smul.u32 2, %s22
        %p382 = scmp.lt.s32.totalorder %s381, 3
        %s383 = scalar_select %p382, %s381, 3
        %s384 = smul.addr %s383, 8
        %s385 = scalar_lea.vmem %s7, %s384
        %s386 = smul.u32 2, %s22
        %p388 = scmp.eq.s32.totalorder %s23, 0
        // Predicated region
        $region90: #{continuous_energy_forward.10} parent=84 // pred_check
          %p389 = pneg %p388
        $region91: #{continuous_energy_forward.10} parent=84 // pred_check_branch
          %391 = sbr.rel (%p389) target = $region93
        $region92: #{continuous_energy_forward.10} parent=84 // pred_region
          %392 = vst [vmem:[#allocation2] sm:$0xff] 0.0
          %393 = vst [vmem:[#allocation2 + $0x8] sm:$0xff] 0.0
        $region93: #{continuous_energy_forward.10} parent=84 // pred_fallthru
          _
        %v394 = vld [vmem:[#allocation2] sm:$0xff]
        %v395 = vld [vmem:[#allocation2 + $0x8] sm:$0xff]
        %v396 = vld [vmem:[%s329] sm:$0xf]
        %v397 = vld [vmem:[%s329 + $0x4] sm:$0xf]
        %v398 = vld [vmem:[%s378] sm:$0xf]
        %v399 = vld [vmem:[%s378 + $0x4] sm:$0xf]
        %v400 = vld [vmem:[%s378 + $0x8] sm:$0xf]
        %v401 = vld [vmem:[%s378 + $0xc] sm:$0xf]
        %v402 = vld [vmem:[%s378 + $0x10] sm:$0xf]
        %v403 = vld [vmem:[%s378 + $0x14] sm:$0xf]
        %v404 = vld [vmem:[%s378 + $0x18] sm:$0xf]
        %v405 = vld [vmem:[%s378 + $0x1c] sm:$0xf]
        %v406 = vld [vmem:[%s378 + $0x20] sm:$0xf]
        %v407 = vld [vmem:[%s378 + $0x24] sm:$0xf]
        %v408 = vld [vmem:[%s378 + $0x28] sm:$0xf]
        %v409 = vld [vmem:[%s378 + $0x2c] sm:$0xf]
        %v410 = vld [vmem:[%s378 + $0x30] sm:$0xf]
        %v411 = vld [vmem:[%s378 + $0x34] sm:$0xf]
        %v412 = vld [vmem:[%s378 + $0x38] sm:$0xf]
        %v413 = vld [vmem:[%s378 + $0x3c] sm:$0xf]
        %v416 = vunpack.c.l.b16 %v396
        %v417 = vunpack.c.l.b16 %v397
        %v418 = vpack.c.b16 %v417, %v416
        %v436 = vunpack.c.l.b16 %v398
        %v437 = vunpack.c.l.b16 %v399
        %v438 = vunpack.c.l.b16 %v400
        %v439 = vunpack.c.l.b16 %v401
        %v440 = vunpack.c.l.b16 %v402
        %v441 = vunpack.c.l.b16 %v403
        %v442 = vunpack.c.l.b16 %v404
        %v443 = vunpack.c.l.b16 %v405
        %v444 = vunpack.c.l.b16 %v406
        %v445 = vunpack.c.l.b16 %v407
        %v446 = vunpack.c.l.b16 %v408
        %v447 = vunpack.c.l.b16 %v409
        %v448 = vunpack.c.l.b16 %v410
        %v449 = vunpack.c.l.b16 %v411
        %v450 = vunpack.c.l.b16 %v412
        %v451 = vunpack.c.l.b16 %v413
        %v452 = vpack.c.b16 %v437, %v436
        %v453 = vpack.c.b16 %v439, %v438
        %v454 = vpack.c.b16 %v441, %v440
        %v455 = vpack.c.b16 %v443, %v442
        %v456 = vpack.c.b16 %v445, %v444
        %v457 = vpack.c.b16 %v447, %v446
        %v458 = vpack.c.b16 %v449, %v448
        %v459 = vpack.c.b16 %v451, %v450
        %468 = vmatprep.subr.bf16.mxu0 0
        %469 = vmatpush1.bf16.msra.mxu0 %v452
        %470 = vmatprep.subr.bf16.mxu0 0
        %471 = vmatpush1.bf16.msra.mxu0 %v453
        %472 = vmatprep.subr.bf16.mxu0 0
        %473 = vmatpush1.bf16.msra.mxu0 %v454
        %474 = vmatprep.subr.bf16.mxu0 0
        %475 = vmatpush1.bf16.msra.mxu0 %v455
        %476 = vmatprep.subr.bf16.mxu0 0
        %477 = vmatpush1.bf16.msra.mxu0 %v456
        %478 = vmatprep.subr.bf16.mxu0 0
        %479 = vmatpush1.bf16.msra.mxu0 %v457
        %480 = vmatprep.subr.bf16.mxu0 0
        %481 = vmatpush1.bf16.msra.mxu0 %v458
        %482 = vmatprep.subr.bf16.mxu0 0
        %483 = vmatpush1.bf16.msra.mxu0 %v459
        %484 = vmatprep.subr.bf16.mxu0 0
        %485 = vmatpush1.bf16.msra.mxu0 0
        %486 = vmatprep.subr.bf16.mxu0 0
        %487 = vmatpush1.bf16.msra.mxu0 0
        %488 = vmatprep.subr.bf16.mxu0 0
        %489 = vmatpush1.bf16.msra.mxu0 0
        %490 = vmatprep.subr.bf16.mxu0 0
        %491 = vmatpush1.bf16.msra.mxu0 0
        %492 = vmatprep.subr.bf16.mxu0 0
        %493 = vmatpush1.bf16.msra.mxu0 0
        %494 = vmatprep.subr.bf16.mxu0 0
        %495 = vmatpush1.bf16.msra.mxu0 0
        %496 = vmatprep.subr.bf16.mxu0 0
        %497 = vmatpush1.bf16.msra.mxu0 0
        %498 = vmatprep.subr.bf16.mxu0 0
        %499 = vmatpush1.bf16.msra.mxu0 0
        %500 = vmatprep.mubr.bf16.mxu0 0
        %501 = vmatmul.mubr.bf16.gmra.mrb[0].mxu0 %v418
        %v502 = vpop.f32.mrb[0].mxu0
        %v503 = vadd.f32 0.0, %v502
        %v504 = vpop.f32.mrb[0].mxu0
        %v505 = vpop.f32.mrb[0].mxu0
        %v506 = vadd.f32 0.0, %v505
        %v507 = vpop.f32.mrb[0].mxu0
        %508 = vdwg.mxu0
        %v509 = vadd.f32 %v394, %v503
        %v510 = vadd.f32 %v395, %v506
        %511 = vst [vmem:[#allocation2] sm:$0xff] %v509
        %512 = vst [vmem:[#allocation2 + $0x8] sm:$0xff] %v510
        %p513 = scmp.eq.s32.totalorder %s23, 1
        // Predicated region
        $region94: #{continuous_energy_forward.10} parent=84 // pred_check
          %p514 = pneg %p513
        $region95: #{continuous_energy_forward.10} parent=84 // pred_check_branch
          %516 = sbr.rel (%p514) target = $region97
        $region96: #{continuous_energy_forward.10} parent=84 // pred_region
          %v517 = vld [vmem:[%s372] sm:$0xff]
          %v518 = vld [vmem:[%s372 + $0x8] sm:$0xff]
          %v519 = vld [vmem:[%s3] sm:$0xff]
          %v520 = vld [vmem:[%s3 + $0x8] sm:$0xff]
          %v521 = vld [vmem:[%s3 + $0x10] sm:$0xff]
          %v522 = vld [vmem:[%s3 + $0x18] sm:$0xff]
          %v523 = vld [vmem:[%s3 + $0x20] sm:$0xff]
          %v524 = vld [vmem:[%s3 + $0x28] sm:$0xff]
          %v525 = vld [vmem:[%s3 + $0x30] sm:$0xff]
          %v526 = vld [vmem:[%s3 + $0x38] sm:$0xff]
          %v527 = vld [vmem:[%s3 + $0x40] sm:$0xff]
          %v528 = vld [vmem:[%s3 + $0x48] sm:$0xff]
          %v529 = vld [vmem:[%s3 + $0x50] sm:$0xff]
          %v530 = vld [vmem:[%s3 + $0x58] sm:$0xff]
          %v531 = vld [vmem:[%s3 + $0x60] sm:$0xff]
          %v532 = vld [vmem:[%s3 + $0x68] sm:$0xff]
          %v533 = vld [vmem:[%s3 + $0x70] sm:$0xff]
          %v534 = vld [vmem:[%s3 + $0x78] sm:$0xff]
          %v535 = vld [vmem:[%s4] sm:$0x1]
          %v537 = vlaneseq
          %v538 = vshrl.u32 %v537, 7
          %v539 = vsub.s32 0, %v538
          %v540 = vrot.slane %v535, %v539
          %542 = vmatprep.subr.mxu0 0.0
          %543 = vmatpush1.msra.mxu0 %v519
          %544 = vmatprep.subr.mxu0 0.0
          %545 = vmatpush1.msra.mxu0 %v520
          %546 = vmatprep.subr.mxu0 0.0
          %547 = vmatpush1.msra.mxu0 %v521
          %548 = vmatprep.subr.mxu0 0.0
          %549 = vmatpush1.msra.mxu0 %v522
          %550 = vmatprep.subr.mxu0 0.0
          %551 = vmatpush1.msra.mxu0 %v523
          %552 = vmatprep.subr.mxu0 0.0
          %553 = vmatpush1.msra.mxu0 %v524
          %554 = vmatprep.subr.mxu0 0.0
          %555 = vmatpush1.msra.mxu0 %v525
          %556 = vmatprep.subr.mxu0 0.0
          %557 = vmatpush1.msra.mxu0 %v526
          %558 = vmatprep.subr.mxu0 0.0
          %559 = vmatpush1.msra.mxu0 %v527
          %560 = vmatprep.subr.mxu0 0.0
          %561 = vmatpush1.msra.mxu0 %v528
          %562 = vmatprep.subr.mxu0 0.0
          %563 = vmatpush1.msra.mxu0 %v529
          %564 = vmatprep.subr.mxu0 0.0
          %565 = vmatpush1.msra.mxu0 %v530
          %566 = vmatprep.subr.mxu0 0.0
          %567 = vmatpush1.msra.mxu0 %v531
          %568 = vmatprep.subr.mxu0 0.0
          %569 = vmatpush1.msra.mxu0 %v532
          %570 = vmatprep.subr.mxu0 0.0
          %571 = vmatpush1.msra.mxu0 %v533
          %572 = vmatprep.subr.mxu0 0.0
          %573 = vmatpush1.msra.mxu0 %v534
          %574 = vmatprep.subr.mxu0 0.0
          %575 = vmatpush1.msra.mxu0 0.0
          %576 = vmatprep.subr.mxu0 0.0
          %577 = vmatpush1.msra.mxu0 0.0
          %578 = vmatprep.subr.mxu0 0.0
          %579 = vmatpush1.msra.mxu0 0.0
          %580 = vmatprep.subr.mxu0 0.0
          %581 = vmatpush1.msra.mxu0 0.0
          %582 = vmatprep.subr.mxu0 0.0
          %583 = vmatpush1.msra.mxu0 0.0
          %584 = vmatprep.subr.mxu0 0.0
          %585 = vmatpush1.msra.mxu0 0.0
          %586 = vmatprep.subr.mxu0 0.0
          %587 = vmatpush1.msra.mxu0 0.0
          %588 = vmatprep.subr.mxu0 0.0
          %589 = vmatpush1.msra.mxu0 0.0
          %590 = vmatprep.subr.mxu0 0.0
          %591 = vmatpush1.msra.mxu0 0.0
          %592 = vmatprep.subr.mxu0 0.0
          %593 = vmatpush1.msra.mxu0 0.0
          %594 = vmatprep.subr.mxu0 0.0
          %595 = vmatpush1.msra.mxu0 0.0
          %596 = vmatprep.subr.mxu0 0.0
          %597 = vmatpush1.msra.mxu0 0.0
          %598 = vmatprep.subr.mxu0 0.0
          %599 = vmatpush1.msra.mxu0 0.0
          %600 = vmatprep.subr.mxu0 0.0
          %601 = vmatpush1.msra.mxu0 0.0
          %602 = vmatprep.subr.mxu0 0.0
          %603 = vmatpush1.msra.mxu0 0.0
          %604 = vmatprep.subr.mxu0 0.0
          %605 = vmatpush1.msra.mxu0 0.0
          %606 = vmatprep.mubr.f32.mxu0 0.0
          %607 = vmatmul.mubr.f32.gmra.mrb[0].mxu0 %v517
          %v608 = vpop.f32.mrb[0].mxu0
          %v609 = vadd.f32 %v540, %v608
          %v610 = vpop.f32.mrb[0].mxu0
          %611 = vmatprep.mubr.f32.mxu0 0.0
          %612 = vmatmul.mubr.f32.gmra.mrb[0].mxu0 %v518
          %v613 = vpop.f32.mrb[0].mxu0
          %v614 = vadd.f32 %v540, %v613
          %v615 = vpop.f32.mrb[0].mxu0
          %616 = vdwg.mxu0
          %v617 = vld [vmem:[#allocation2] sm:$0xff]
          %v618 = vld [vmem:[#allocation2 + $0x8] sm:$0xff]
          %v619 = vld [vmem:[%s5] sm:$0xff]
          %v620 = vld [vmem:[%s5 + $0x8] sm:$0xff]
          %v621 = vld [vmem:[%s5 + $0x10] sm:$0xff]
          %v622 = vld [vmem:[%s5 + $0x18] sm:$0xff]
          %v623 = vld [vmem:[%s5 + $0x20] sm:$0xff]
          %v624 = vld [vmem:[%s5 + $0x28] sm:$0xff]
          %v625 = vld [vmem:[%s5 + $0x30] sm:$0xff]
          %v626 = vld [vmem:[%s5 + $0x38] sm:$0xff]
          %v627 = vld [vmem:[%s5 + $0x40] sm:$0xff]
          %v628 = vld [vmem:[%s5 + $0x48] sm:$0xff]
          %v629 = vld [vmem:[%s5 + $0x50] sm:$0xff]
          %v630 = vld [vmem:[%s5 + $0x58] sm:$0xff]
          %v631 = vld [vmem:[%s5 + $0x60] sm:$0xff]
          %v632 = vld [vmem:[%s5 + $0x68] sm:$0xff]
          %v633 = vld [vmem:[%s5 + $0x70] sm:$0xff]
          %v634 = vld [vmem:[%s5 + $0x78] sm:$0xff]
          %635 = vmatprep.subr.mxu0 0.0
          %636 = vmatpush1.msra.mxu0 %v619
          %637 = vmatprep.subr.mxu0 0.0
          %638 = vmatpush1.msra.mxu0 %v620
          %639 = vmatprep.subr.mxu0 0.0
          %640 = vmatpush1.msra.mxu0 %v621
          %641 = vmatprep.subr.mxu0 0.0
          %642 = vmatpush1.msra.mxu0 %v622
          %643 = vmatprep.subr.mxu0 0.0
          %644 = vmatpush1.msra.mxu0 %v623
          %645 = vmatprep.subr.mxu0 0.0
          %646 = vmatpush1.msra.mxu0 %v624
          %647 = vmatprep.subr.mxu0 0.0
          %648 = vmatpush1.msra.mxu0 %v625
          %649 = vmatprep.subr.mxu0 0.0
          %650 = vmatpush1.msra.mxu0 %v626
          %651 = vmatprep.subr.mxu0 0.0
          %652 = vmatpush1.msra.mxu0 %v627
          %653 = vmatprep.subr.mxu0 0.0
          %654 = vmatpush1.msra.mxu0 %v628
          %655 = vmatprep.subr.mxu0 0.0
          %656 = vmatpush1.msra.mxu0 %v629
          %657 = vmatprep.subr.mxu0 0.0
          %658 = vmatpush1.msra.mxu0 %v630
          %659 = vmatprep.subr.mxu0 0.0
          %660 = vmatpush1.msra.mxu0 %v631
          %661 = vmatprep.subr.mxu0 0.0
          %662 = vmatpush1.msra.mxu0 %v632
          %663 = vmatprep.subr.mxu0 0.0
          %664 = vmatpush1.msra.mxu0 %v633
          %665 = vmatprep.subr.mxu0 0.0
          %666 = vmatpush1.msra.mxu0 %v634
          %667 = vmatprep.subr.mxu0 0.0
          %668 = vmatpush1.msra.mxu0 0.0
          %669 = vmatprep.subr.mxu0 0.0
          %670 = vmatpush1.msra.mxu0 0.0
          %671 = vmatprep.subr.mxu0 0.0
          %672 = vmatpush1.msra.mxu0 0.0
          %673 = vmatprep.subr.mxu0 0.0
          %674 = vmatpush1.msra.mxu0 0.0
          %675 = vmatprep.subr.mxu0 0.0
          %676 = vmatpush1.msra.mxu0 0.0
          %677 = vmatprep.subr.mxu0 0.0
          %678 = vmatpush1.msra.mxu0 0.0
          %679 = vmatprep.subr.mxu0 0.0
          %680 = vmatpush1.msra.mxu0 0.0
          %681 = vmatprep.subr.mxu0 0.0
          %682 = vmatpush1.msra.mxu0 0.0
          %683 = vmatprep.subr.mxu0 0.0
          %684 = vmatpush1.msra.mxu0 0.0
          %685 = vmatprep.subr.mxu0 0.0
          %686 = vmatpush1.msra.mxu0 0.0
          %687 = vmatprep.subr.mxu0 0.0
          %688 = vmatpush1.msra.mxu0 0.0
          %689 = vmatprep.subr.mxu0 0.0
          %690 = vmatpush1.msra.mxu0 0.0
          %691 = vmatprep.subr.mxu0 0.0
          %692 = vmatpush1.msra.mxu0 0.0
          %693 = vmatprep.subr.mxu0 0.0
          %694 = vmatpush1.msra.mxu0 0.0
          %695 = vmatprep.subr.mxu0 0.0
          %696 = vmatpush1.msra.mxu0 0.0
          %697 = vmatprep.subr.mxu0 0.0
          %698 = vmatpush1.msra.mxu0 0.0
          %699 = vmatprep.mubr.f32.mxu0 0.0
          %700 = vmatmul.mubr.f32.gmra.mrb[0].mxu0 %v617
          %v701 = vpop.f32.mrb[0].mxu0
          %v702 = vadd.f32 0.0, %v701
          %v703 = vpop.f32.mrb[0].mxu0
          %704 = vmatprep.mubr.f32.mxu0 0.0
          %705 = vmatmul.mubr.f32.gmra.mrb[0].mxu0 %v618
          %v706 = vpop.f32.mrb[0].mxu0
          %v707 = vadd.f32 0.0, %v706
          %v708 = vpop.f32.mrb[0].mxu0
          %709 = vdwg.mxu0
          %v710 = vadd.f32 %v609, %v702
          %v711 = vadd.f32 %v614, %v707
          %v712 = vld [vmem:[%s6] sm:$0x1]
          %v714 = vlaneseq
          %v715 = vshrl.u32 %v714, 7
          %v716 = vsub.s32 0, %v715
          %v717 = vrot.slane %v712, %v716
          %v719 = vadd.f32 %v710, %v717
          %v720 = vadd.f32 %v711, %v717
          %v721 = vmax.f32 %v719, 0.0
          %v722 = vmax.f32 %v720, 0.0
          %v723 = vand.u32 2147483647, %v719
          %v724 = vand.u32 2147483647, %v720
          %v725 = vsub.f32 0.0, %v723
          %v726 = vsub.f32 0.0, %v724
          %v727 = vmul.f32 %v725, 1.442695
          %v728 = vpow.pop %v727
          %v729 = vmul.f32 %v726, 1.442695
          %v730 = vpow.pop %v729
          %v731 = vadd.f32 %v728, 1.0
          %v732 = vadd.f32 %v730, 1.0
          %v733 = vlog2.pop %v731
          %v734 = vmul.f32 %v733, 0.6931472
          %v735 = vlog2.pop %v732
          %v736 = vmul.f32 %v735, 0.6931472
          %v737 = vadd.f32 %v721, %v734
          %v738 = vadd.f32 %v722, %v736
          %739 = vst [vmem:[%s385] sm:$0xff] %v737
          %740 = vst [vmem:[%s385 + $0x8] sm:$0xff] %v738
        $region97: #{continuous_energy_forward.10} parent=84 // pred_fallthru
          _
        %s741 = smul.u32 2, %s22
        %p742 = scmp.lt.s32.totalorder %s741, 3
        %s743 = scalar_select %p742, %s741, 3
        %s744 = smul.addr %s743, 8
        %s745 = scalar_lea.vmem %s7, %s744
        // Predicated region
        $region98: #{continuous_energy_forward.10} parent=84 // pred_check
          %p746 = pneg %p212
        $region99: #{continuous_energy_forward.10} parent=84 // pred_check_branch
          %748 = sbr.rel (%p746) target = $region101
        $region100: #{continuous_energy_forward.10} parent=84 // pred_region
          %s749 = smul.u32 2, %s22
        $region101: #{continuous_energy_forward.10} parent=84 // pred_fallthru
          _
      $region85: #{continuous_energy_forward.10} parent=5 // pred_fallthru
        _
      %p750 = scmp.le.s32.totalorder 2, %s13
      // Predicated region
      $region102: #{continuous_energy_forward.10} parent=5 // pred_check
        %p751 = pneg %p750
      $region103: #{continuous_energy_forward.10} parent=5 // pred_check_branch
        %753 = sbr.rel (%p751) target = $region105
      $region104: #{continuous_energy_forward.10} parent=5 // pred_region
        %s754 = ssub.s32 %s13, 2
        // Predicated region
        $region106: #{continuous_energy_forward.10} parent=104 // pred_check
          %p755 = pneg %p218
        $region107: #{continuous_energy_forward.10} parent=104 // pred_check_branch
          %757 = sbr.rel (%p755) target = $region109
        $region108: #{continuous_energy_forward.10} parent=104 // pred_region
          %s758 = smul.u32 2, %s24
          %p759 = scmp.lt.s32.totalorder %s758, 3
          %s760 = scalar_select %p759, %s758, 3
          %s761 = smul.addr %s760, 8
          %s762 = scalar_lea.vmem %s7, %s761
        $region109: #{continuous_energy_forward.10} parent=104 // pred_fallthru
          _
      $region105: #{continuous_energy_forward.10} parent=5 // pred_fallthru
        _
    $region6: #{continuous_energy_forward.10} parent=1 // loop_footer
      %s17 = sadd.s32 1, %s13
    $region7: #{continuous_energy_forward.10} parent=1 // loop_footer_branch
      %12 = sbr.rel target = $region3
    $region8: #{continuous_energy_forward.10} parent=1 // loop_exit
      _

// kernel: continuous_energy_forward.13
$region0: #{continuous_energy_forward.13}
  #allocation0 [shape = 'u32[]', space=smem, size = 0x4, offset = 0x4, fixed_abs, tag = 'smem constant byte address 0x4 - core index']
  #allocation1 [shape = 'u32[144,128]{1,0:T(1,128)}', space=vmem, size = 0x12000, scoped, tag = 'internal scratch']
  #allocation2 [shape = 'f32[1,1]{1,0:T(1,128)S(1)}', space=vmem, size = 0x200, scoped, tag = 'scoped memory for continuous_energy_forward.13']
  %s0 = inlined_call_operand.vmem [shape: f32[32,128], index: 0, kind: input, shape index: {}]
  %s1 = inlined_call_operand.vmem [shape: f32[2,32], index: 1, kind: input, shape index: {}]
  %s2 = inlined_call_operand.vmem [shape: f32[128,128], index: 2, kind: input, shape index: {}]
  %s3 = inlined_call_operand.vmem [shape: f32[1,128], index: 3, kind: input, shape index: {}]
  %s4 = inlined_call_operand.vmem [shape: f32[128,1], index: 4, kind: input, shape index: {}]
  %s5 = inlined_call_operand.<no memory space> [shape: f32[1,1], index: 5, kind: input, shape index: {}]
  %s6 = inlined_call_operand.vmem [shape: f32[2,1], index: 6, kind: output, shape index: {}]
  %s7 = sld [smem:[#allocation0]]
  $region34: #{continuous_energy_forward.13} parent=0
    _
  %s9 = ssub.s32 1, %s7
  %s10 = scalar_select 0, %s9, %s7
  %v11 = vstv %s5
  %12 = vst [vmem:[#allocation2] sm:$0x1] %v11
  // Predicated region
  $region2: #{continuous_energy_forward.13} parent=0 // pred_check
    _
  $region3: #{continuous_energy_forward.13} parent=0 // pred_check_branch
    %14 = sbr.rel (0) target = $region5
  $region4: #{continuous_energy_forward.13} parent=0 // pred_region
    _
  $region5: #{continuous_energy_forward.13} parent=0 // pred_fallthru
    _
  // Predicated region
  $region6: #{continuous_energy_forward.13} parent=0 // pred_check
    _
  $region7: #{continuous_energy_forward.13} parent=0 // pred_check_branch
    %16 = sbr.rel (0) target = $region9
  $region8: #{continuous_energy_forward.13} parent=0 // pred_region
    _
  $region9: #{continuous_energy_forward.13} parent=0 // pred_fallthru
    _
  // Predicated region
  $region10: #{continuous_energy_forward.13} parent=0 // pred_check
    _
  $region11: #{continuous_energy_forward.13} parent=0 // pred_check_branch
    %18 = sbr.rel (0) target = $region13
  $region12: #{continuous_energy_forward.13} parent=0 // pred_region
    _
  $region13: #{continuous_energy_forward.13} parent=0 // pred_fallthru
    _
  // Predicated region
  $region14: #{continuous_energy_forward.13} parent=0 // pred_check
    _
  $region15: #{continuous_energy_forward.13} parent=0 // pred_check_branch
    %20 = sbr.rel (0) target = $region17
  $region16: #{continuous_energy_forward.13} parent=0 // pred_region
    _
  $region17: #{continuous_energy_forward.13} parent=0 // pred_fallthru
    _
  // Predicated region
  $region18: #{continuous_energy_forward.13} parent=0 // pred_check
    _
  $region19: #{continuous_energy_forward.13} parent=0 // pred_check_branch
    %22 = sbr.rel (0) target = $region21
  $region20: #{continuous_energy_forward.13} parent=0 // pred_region
    _
  $region21: #{continuous_energy_forward.13} parent=0 // pred_fallthru
    _
  // Predicated region
  $region22: #{continuous_energy_forward.13} parent=0 // pred_check
    _
  $region23: #{continuous_energy_forward.13} parent=0 // pred_check_branch
    %24 = sbr.rel (0) target = $region25
  $region24: #{continuous_energy_forward.13} parent=0 // pred_region
    _
  $region25: #{continuous_energy_forward.13} parent=0 // pred_fallthru
    _
  %v25 = vld [vmem:[%s1] sm:$0x3]
  %v26 = vld [vmem:[%s0] sm:$0xff]
  %v27 = vld [vmem:[%s0 + $0x8] sm:$0xff]
  %v28 = vld [vmem:[%s0 + $0x10] sm:$0xff]
  %v29 = vld [vmem:[%s0 + $0x18] sm:$0xff]
  %vm30 = vcmask 261120
  %v32 = vsel %vm30, %v25, 0
  %34 = vmatprep.subr.mxu0 0.0
  %35 = vmatpush1.msra.mxu0 %v26
  %36 = vmatprep.subr.mxu0 0.0
  %37 = vmatpush1.msra.mxu0 %v27
  %38 = vmatprep.subr.mxu0 0.0
  %39 = vmatpush1.msra.mxu0 %v28
  %40 = vmatprep.subr.mxu0 0.0
  %41 = vmatpush1.msra.mxu0 %v29
  %42 = vmatprep.subr.mxu0 0.0
  %43 = vmatpush1.msra.mxu0 0.0
  %44 = vmatprep.subr.mxu0 0.0
  %45 = vmatpush1.msra.mxu0 0.0
  %46 = vmatprep.subr.mxu0 0.0
  %47 = vmatpush1.msra.mxu0 0.0
  %48 = vmatprep.subr.mxu0 0.0
  %49 = vmatpush1.msra.mxu0 0.0
  %50 = vmatprep.subr.mxu0 0.0
  %51 = vmatpush1.msra.mxu0 0.0
  %52 = vmatprep.subr.mxu0 0.0
  %53 = vmatpush1.msra.mxu0 0.0
  %54 = vmatprep.subr.mxu0 0.0
  %55 = vmatpush1.msra.mxu0 0.0
  %56 = vmatprep.subr.mxu0 0.0
  %57 = vmatpush1.msra.mxu0 0.0
  %58 = vmatprep.subr.mxu0 0.0
  %59 = vmatpush1.msra.mxu0 0.0
  %60 = vmatprep.subr.mxu0 0.0
  %61 = vmatpush1.msra.mxu0 0.0
  %62 = vmatprep.subr.mxu0 0.0
  %63 = vmatpush1.msra.mxu0 0.0
  %64 = vmatprep.subr.mxu0 0.0
  %65 = vmatpush1.msra.mxu0 0.0
  %66 = vmatprep.subr.mxu0 0.0
  %67 = vmatpush1.msra.mxu0 0.0
  %68 = vmatprep.subr.mxu0 0.0
  %69 = vmatpush1.msra.mxu0 0.0
  %70 = vmatprep.subr.mxu0 0.0
  %71 = vmatpush1.msra.mxu0 0.0
  %72 = vmatprep.subr.mxu0 0.0
  %73 = vmatpush1.msra.mxu0 0.0
  %74 = vmatprep.subr.mxu0 0.0
  %75 = vmatpush1.msra.mxu0 0.0
  %76 = vmatprep.subr.mxu0 0.0
  %77 = vmatpush1.msra.mxu0 0.0
  %78 = vmatprep.subr.mxu0 0.0
  %79 = vmatpush1.msra.mxu0 0.0
  %80 = vmatprep.subr.mxu0 0.0
  %81 = vmatpush1.msra.mxu0 0.0
  %82 = vmatprep.subr.mxu0 0.0
  %83 = vmatpush1.msra.mxu0 0.0
  %84 = vmatprep.subr.mxu0 0.0
  %85 = vmatpush1.msra.mxu0 0.0
  %86 = vmatprep.subr.mxu0 0.0
  %87 = vmatpush1.msra.mxu0 0.0
  %88 = vmatprep.subr.mxu0 0.0
  %89 = vmatpush1.msra.mxu0 0.0
  %90 = vmatprep.subr.mxu0 0.0
  %91 = vmatpush1.msra.mxu0 0.0
  %92 = vmatprep.subr.mxu0 0.0
  %93 = vmatpush1.msra.mxu0 0.0
  %94 = vmatprep.subr.mxu0 0.0
  %95 = vmatpush1.msra.mxu0 0.0
  %96 = vmatprep.subr.mxu0 0.0
  %97 = vmatpush1.msra.mxu0 0.0
  %98 = vmatprep.mubr.f32.mxu0 0.0
  %99 = vmatmul.mubr.f32.gmra.mrb[0].mxu0 %v32
  %v100 = vpop.f32.mrb[0].mxu0
  %v101 = vadd.f32 0.0, %v100
  %v102 = vpop.f32.mrb[0].mxu0
  %103 = vdwg.mxu0
  %v104 = vld [vmem:[%s2] sm:$0xff]
  %v105 = vld [vmem:[%s2 + $0x8] sm:$0xff]
  %v106 = vld [vmem:[%s2 + $0x10] sm:$0xff]
  %v107 = vld [vmem:[%s2 + $0x18] sm:$0xff]
  %v108 = vld [vmem:[%s2 + $0x20] sm:$0xff]
  %v109 = vld [vmem:[%s2 + $0x28] sm:$0xff]
  %v110 = vld [vmem:[%s2 + $0x30] sm:$0xff]
  %v111 = vld [vmem:[%s2 + $0x38] sm:$0xff]
  %v112 = vld [vmem:[%s2 + $0x40] sm:$0xff]
  %v113 = vld [vmem:[%s2 + $0x48] sm:$0xff]
  %v114 = vld [vmem:[%s2 + $0x50] sm:$0xff]
  %v115 = vld [vmem:[%s2 + $0x58] sm:$0xff]
  %v116 = vld [vmem:[%s2 + $0x60] sm:$0xff]
  %v117 = vld [vmem:[%s2 + $0x68] sm:$0xff]
  %v118 = vld [vmem:[%s2 + $0x70] sm:$0xff]
  %v119 = vld [vmem:[%s2 + $0x78] sm:$0xff]
  %v120 = vld [vmem:[%s3] sm:$0x1]
  %v122 = vlaneseq
  %v123 = vshrl.u32 %v122, 7
  %v124 = vsub.s32 0, %v123
  %v125 = vrot.slane %v120, %v124
  %127 = vmatprep.subr.mxu0 0.0
  %128 = vmatpush1.msra.mxu0 %v104
  %129 = vmatprep.subr.mxu0 0.0
  %130 = vmatpush1.msra.mxu0 %v105
  %131 = vmatprep.subr.mxu0 0.0
  %132 = vmatpush1.msra.mxu0 %v106
  %133 = vmatprep.subr.mxu0 0.0
  %134 = vmatpush1.msra.mxu0 %v107
  %135 = vmatprep.subr.mxu0 0.0
  %136 = vmatpush1.msra.mxu0 %v108
  %137 = vmatprep.subr.mxu0 0.0
  %138 = vmatpush1.msra.mxu0 %v109
  %139 = vmatprep.subr.mxu0 0.0
  %140 = vmatpush1.msra.mxu0 %v110
  %141 = vmatprep.subr.mxu0 0.0
  %142 = vmatpush1.msra.mxu0 %v111
  %143 = vmatprep.subr.mxu0 0.0
  %144 = vmatpush1.msra.mxu0 %v112
  %145 = vmatprep.subr.mxu0 0.0
  %146 = vmatpush1.msra.mxu0 %v113
  %147 = vmatprep.subr.mxu0 0.0
  %148 = vmatpush1.msra.mxu0 %v114
  %149 = vmatprep.subr.mxu0 0.0
  %150 = vmatpush1.msra.mxu0 %v115
  %151 = vmatprep.subr.mxu0 0.0
  %152 = vmatpush1.msra.mxu0 %v116
  %153 = vmatprep.subr.mxu0 0.0
  %154 = vmatpush1.msra.mxu0 %v117
  %155 = vmatprep.subr.mxu0 0.0
  %156 = vmatpush1.msra.mxu0 %v118
  %157 = vmatprep.subr.mxu0 0.0
  %158 = vmatpush1.msra.mxu0 %v119
  %159 = vmatprep.subr.mxu0 0.0
  %160 = vmatpush1.msra.mxu0 0.0
  %161 = vmatprep.subr.mxu0 0.0
  %162 = vmatpush1.msra.mxu0 0.0
  %163 = vmatprep.subr.mxu0 0.0
  %164 = vmatpush1.msra.mxu0 0.0
  %165 = vmatprep.subr.mxu0 0.0
  %166 = vmatpush1.msra.mxu0 0.0
  %167 = vmatprep.subr.mxu0 0.0
  %168 = vmatpush1.msra.mxu0 0.0
  %169 = vmatprep.subr.mxu0 0.0
  %170 = vmatpush1.msra.mxu0 0.0
  %171 = vmatprep.subr.mxu0 0.0
  %172 = vmatpush1.msra.mxu0 0.0
  %173 = vmatprep.subr.mxu0 0.0
  %174 = vmatpush1.msra.mxu0 0.0
  %175 = vmatprep.subr.mxu0 0.0
  %176 = vmatpush1.msra.mxu0 0.0
  %177 = vmatprep.subr.mxu0 0.0
  %178 = vmatpush1.msra.mxu0 0.0
  %179 = vmatprep.subr.mxu0 0.0
  %180 = vmatpush1.msra.mxu0 0.0
  %181 = vmatprep.subr.mxu0 0.0
  %182 = vmatpush1.msra.mxu0 0.0
  %183 = vmatprep.subr.mxu0 0.0
  %184 = vmatpush1.msra.mxu0 0.0
  %185 = vmatprep.subr.mxu0 0.0
  %186 = vmatpush1.msra.mxu0 0.0
  %187 = vmatprep.subr.mxu0 0.0
  %188 = vmatpush1.msra.mxu0 0.0
  %189 = vmatprep.subr.mxu0 0.0
  %190 = vmatpush1.msra.mxu0 0.0
  %191 = vmatprep.mubr.f32.mxu0 0.0
  %192 = vmatmul.mubr.f32.gmra.mrb[0].mxu0 %v101
  %v193 = vpop.f32.mrb[0].mxu0
  %v194 = vadd.f32 %v125, %v193
  %v195 = vpop.f32.mrb[0].mxu0
  %196 = vdwg.mxu0
  %v197 = vmax.f32 %v194, 0.0
  %v198 = vand.u32 2147483647, %v194
  %v199 = vsub.f32 0.0, %v198
  %v200 = vmul.f32 %v199, 1.442695
  %v201 = vpow.pop %v200
  %v202 = vadd.f32 %v201, 1.0
  %v203 = vlog2.pop %v202
  %v204 = vmul.f32 %v203, 0.6931472
  %v205 = vadd.f32 %v197, %v204
  %v206 = vld [vmem:[%s4] sm:$0xff]
  %v207 = vld [vmem:[%s4 + $0x8] sm:$0xff]
  %v208 = vld [vmem:[%s4 + $0x10] sm:$0xff]
  %v209 = vld [vmem:[%s4 + $0x18] sm:$0xff]
  %v210 = vld [vmem:[%s4 + $0x20] sm:$0xff]
  %v211 = vld [vmem:[%s4 + $0x28] sm:$0xff]
  %v212 = vld [vmem:[%s4 + $0x30] sm:$0xff]
  %v213 = vld [vmem:[%s4 + $0x38] sm:$0xff]
  %v214 = vld [vmem:[%s4 + $0x40] sm:$0xff]
  %v215 = vld [vmem:[%s4 + $0x48] sm:$0xff]
  %v216 = vld [vmem:[%s4 + $0x50] sm:$0xff]
  %v217 = vld [vmem:[%s4 + $0x58] sm:$0xff]
  %v218 = vld [vmem:[%s4 + $0x60] sm:$0xff]
  %v219 = vld [vmem:[%s4 + $0x68] sm:$0xff]
  %v220 = vld [vmem:[%s4 + $0x70] sm:$0xff]
  %v221 = vld [vmem:[%s4 + $0x78] sm:$0xff]
  %v222 = vld [vmem:[#allocation2] sm:$0x1]
  %v224 = vlaneseq
  %v225 = vshrl.u32 %v224, 7
  %v226 = vsub.s32 0, %v225
  %v227 = vrot.slane %v222, %v226
  %229 = vmatprep.subr.mxu0 0.0
  %230 = vmatpush1.msra.mxu0 %v206
  %231 = vmatprep.subr.mxu0 0.0
  %232 = vmatpush1.msra.mxu0 %v207
  %233 = vmatprep.subr.mxu0 0.0
  %234 = vmatpush1.msra.mxu0 %v208
  %235 = vmatprep.subr.mxu0 0.0
  %236 = vmatpush1.msra.mxu0 %v209
  %237 = vmatprep.subr.mxu0 0.0
  %238 = vmatpush1.msra.mxu0 %v210
  %239 = vmatprep.subr.mxu0 0.0
  %240 = vmatpush1.msra.mxu0 %v211
  %241 = vmatprep.subr.mxu0 0.0
  %242 = vmatpush1.msra.mxu0 %v212
  %243 = vmatprep.subr.mxu0 0.0
  %244 = vmatpush1.msra.mxu0 %v213
  %245 = vmatprep.subr.mxu0 0.0
  %246 = vmatpush1.msra.mxu0 %v214
  %247 = vmatprep.subr.mxu0 0.0
  %248 = vmatpush1.msra.mxu0 %v215
  %249 = vmatprep.subr.mxu0 0.0
  %250 = vmatpush1.msra.mxu0 %v216
  %251 = vmatprep.subr.mxu0 0.0
  %252 = vmatpush1.msra.mxu0 %v217
  %253 = vmatprep.subr.mxu0 0.0
  %254 = vmatpush1.msra.mxu0 %v218
  %255 = vmatprep.subr.mxu0 0.0
  %256 = vmatpush1.msra.mxu0 %v219
  %257 = vmatprep.subr.mxu0 0.0
  %258 = vmatpush1.msra.mxu0 %v220
  %259 = vmatprep.subr.mxu0 0.0
  %260 = vmatpush1.msra.mxu0 %v221
  %261 = vmatprep.subr.mxu0 0.0
  %262 = vmatpush1.msra.mxu0 0.0
  %263 = vmatprep.subr.mxu0 0.0
  %264 = vmatpush1.msra.mxu0 0.0
  %265 = vmatprep.subr.mxu0 0.0
  %266 = vmatpush1.msra.mxu0 0.0
  %267 = vmatprep.subr.mxu0 0.0
  %268 = vmatpush1.msra.mxu0 0.0
  %269 = vmatprep.subr.mxu0 0.0
  %270 = vmatpush1.msra.mxu0 0.0
  %271 = vmatprep.subr.mxu0 0.0
  %272 = vmatpush1.msra.mxu0 0.0
  %273 = vmatprep.subr.mxu0 0.0
  %274 = vmatpush1.msra.mxu0 0.0
  %275 = vmatprep.subr.mxu0 0.0
  %276 = vmatpush1.msra.mxu0 0.0
  %277 = vmatprep.subr.mxu0 0.0
  %278 = vmatpush1.msra.mxu0 0.0
  %279 = vmatprep.subr.mxu0 0.0
  %280 = vmatpush1.msra.mxu0 0.0
  %281 = vmatprep.subr.mxu0 0.0
  %282 = vmatpush1.msra.mxu0 0.0
  %283 = vmatprep.subr.mxu0 0.0
  %284 = vmatpush1.msra.mxu0 0.0
  %285 = vmatprep.subr.mxu0 0.0
  %286 = vmatpush1.msra.mxu0 0.0
  %287 = vmatprep.subr.mxu0 0.0
  %288 = vmatpush1.msra.mxu0 0.0
  %289 = vmatprep.subr.mxu0 0.0
  %290 = vmatpush1.msra.mxu0 0.0
  %291 = vmatprep.subr.mxu0 0.0
  %292 = vmatpush1.msra.mxu0 0.0
  %293 = vmatprep.mubr.f32.mxu0 0.0
  %294 = vmatmul.mubr.f32.gmra.mrb[0].mxu0 %v205
  %v295 = vpop.f32.mrb[0].mxu0
  %v296 = vadd.f32 %v227, %v295
  %v297 = vpop.f32.mrb[0].mxu0
  %298 = vdwg.mxu0
  %vm299 = vcmask 1024
  %300 = vst.msk [vmem:[%s6] sm:$0x3] %vm299, %v296
  // Predicated region
  $region26: #{continuous_energy_forward.13} parent=0 // pred_check
    _
  $region27: #{continuous_energy_forward.13} parent=0 // pred_check_branch
    %302 = sbr.rel (0) target = $region29
  $region28: #{continuous_energy_forward.13} parent=0 // pred_region
    _
  $region29: #{continuous_energy_forward.13} parent=0 // pred_fallthru
    _
  // Predicated region
  $region30: #{continuous_energy_forward.13} parent=0 // pred_check
    _
  $region31: #{continuous_energy_forward.13} parent=0 // pred_check_branch
    %304 = sbr.rel (0) target = $region33
  $region32: #{continuous_energy_forward.13} parent=0 // pred_region
    _
  $region33: #{continuous_energy_forward.13} parent=0 // pred_fallthru
    _

</llo_original>
